<compile_context>
chip_gen: v5e
topology: v5e:2x2
jax: 0.10.0
libtpu: 0.0.40
codegen_flags: <defaults>
</compile_context>

<pallas_src>
import functools

import jax
import jax.numpy as jnp
from jax import lax
from jax.experimental import pallas as pl
from jax.experimental.pallas import tpu as pltpu


def rb_kernel(x_ref, w1_ref, w2_ref, out_ref, pad_ref, col_ref, *, H, W, C):
    """One batch image per grid step.

    x_ref  : (1, H, W, C)    f32   unpadded input image
    w1_ref : (9*C, C)        bf16  conv1 weights, rows ordered (dy, dx, ci)
    w2_ref : (9*C, C)        bf16  conv2 weights
    out_ref: (1, H*W, C)     f32   output (wrapper reshapes back to NHWC)
    pad_ref: (H+2, W+2, C)   f32   reusable zero-halo scratch (holds x, then h)
    col_ref: (H*W, 9*C)      bf16  im2col scratch shared by both convs
    """
    x = x_ref[0]                                       # (H, W, C) f32

    # ---- zero only the 1-pixel halo (interior is fully overwritten below) ----
    pad_ref[0:1, :, :] = jnp.zeros((1, W + 2, C), jnp.float32)
    pad_ref[H + 1:H + 2, :, :] = jnp.zeros((1, W + 2, C), jnp.float32)
    pad_ref[:, 0:1, :] = jnp.zeros((H + 2, 1, C), jnp.float32)
    pad_ref[:, W + 1:W + 2, :] = jnp.zeros((H + 2, 1, C), jnp.float32)

    def conv3x3(w_flat):
        # pad_ref currently holds the zero-padded activation (f32).
        # Build the im2col tile once (bf16), then a single fused MXU dot (K = 9*C).
        for dy in range(3):
            for dx in range(3):
                t = dy * 3 + dx
                col_ref[:, t * C:(t + 1) * C] = (
                    pad_ref[dy:dy + H, dx:dx + W, :]
                    .reshape(H * W, C)
                    .astype(jnp.bfloat16))
        return jnp.dot(col_ref[...], w_flat,
                       preferred_element_type=jnp.float32)   # (H*W, C) f32

    # ---- conv1 (no bias) + ReLU (f32) ----
    pad_ref[1:1 + H, 1:1 + W, :] = x
    h = jnp.maximum(conv3x3(w1_ref[...]), 0.0)                # (H*W, C) f32

    # ---- conv2 (no bias), reusing the same padded scratch ----
    pad_ref[1:1 + H, 1:1 + W, :] = h.reshape(H, W, C)
    y = conv3x3(w2_ref[...])                                  # (H*W, C) f32

    # ---- residual add (f32) ----
    out_ref[0] = y + x.reshape(H * W, C)


def rb_forward(x_nhwc, w1, w2):
    """x_nhwc: (N, H, W, C) f32; w1, w2: (3, 3, C, C) f32/bf16 (HWIO)."""
    N, H, W, C = x_nhwc.shape
    # Pre-flatten weights to (9*C, C) and cast to bf16 (MXU-native input type).
    w1f = w1.reshape(9 * C, C).astype(jnp.bfloat16)
    w2f = w2.reshape(9 * C, C).astype(jnp.bfloat16)

    kernel = functools.partial(rb_kernel, H=H, W=W, C=C)

    out_flat = pl.pallas_call(
        kernel,
        out_shape=jax.ShapeDtypeStruct((N, H * W, C), x_nhwc.dtype),
        grid_spec=pltpu.PrefetchScalarGridSpec(
            num_scalar_prefetch=0,
            grid=(N,),
            in_specs=[
                pl.BlockSpec((1, H, W, C), lambda n: (n, 0, 0, 0)),
                pl.BlockSpec((9 * C, C), lambda n: (0, 0)),
                pl.BlockSpec((9 * C, C), lambda n: (0, 0)),
            ],
            out_specs=pl.BlockSpec((1, H * W, C), lambda n: (n, 0, 0)),
            scratch_shapes=[
                pltpu.VMEM((H + 2, W + 2, C), jnp.float32),   # zero-halo x / h
                pltpu.VMEM((H * W, 9 * C), jnp.bfloat16),     # im2col tile
            ],
        ),
        compiler_params=pltpu.CompilerParams(
            dimension_semantics=("parallel",)),
    )(x_nhwc, w1f, w2f)

    return out_flat.reshape(N, H, W, C)


def rb_reference(x_nhwc, w1, w2):
    """Pure-JAX reference with the same bf16-input / f32-accumulate semantics."""
    w1b = w1.astype(jnp.bfloat16)
    w2b = w2.astype(jnp.bfloat16)
    dn = lax.conv_dimension_numbers(x_nhwc.shape, w1.shape,
                                    ("NHWC", "HWIO", "NHWC"))
    h = lax.conv_general_dilated(x_nhwc.astype(jnp.bfloat16), w1b, (1, 1), "SAME",
                                 dimension_numbers=dn,
                                 preferred_element_type=jnp.float32)
    h = jnp.maximum(h, 0.0)
    o = lax.conv_general_dilated(h.astype(jnp.bfloat16), w2b, (1, 1), "SAME",
                                 dimension_numbers=dn,
                                 preferred_element_type=jnp.float32)
    return o + x_nhwc


if __name__ == "__main__":
    N, C, H, W = 2, 32, 16, 16

    key = jax.random.PRNGKey(0)
    kx, k1, k2 = jax.random.split(key, 3)

    # deterministic synthetic params (kaiming-ish scale for 3x3xC fan-in)
    scale = (2.0 / (3 * 3 * C)) ** 0.5
    w1 = scale * jax.random.normal(k1, (3, 3, C, C), jnp.float32)
    w2 = scale * jax.random.normal(k2, (3, 3, C, C), jnp.float32)

    # module takes NCHW; convert to NHWC for the kernel
    x_nchw = jax.random.normal(kx, (N, C, H, W), jnp.float32)
    x_nhwc = jnp.transpose(x_nchw, (0, 2, 3, 1))

    out = jax.block_until_ready(rb_forward(x_nhwc, w1, w2))

    ref = rb_reference(x_nhwc, w1, w2)
    assert out.shape == (N, H, W, C)
    assert jnp.allclose(out, ref, atol=1e-3, rtol=1e-3), "mismatch vs reference"

    print("KERNEL_OK")
</pallas_src>

<mosaic_0001>
module attributes {stable_mosaic.version = 11 : i64} {
  func.func @rb_kernel(%arg0: i32, %arg1: memref<1x16x16x32xf32, #tpu.memory_space<vmem>>, %arg2: memref<288x32xbf16, #tpu.memory_space<vmem>>, %arg3: memref<288x32xbf16, #tpu.memory_space<vmem>>, %arg4: memref<1x256x32xf32, #tpu.memory_space<vmem>>, %arg5: memref<18x18x32xf32, #tpu.memory_space<vmem>>, %arg6: memref<256x288xbf16, #tpu.memory_space<vmem>>) attributes {dimension_semantics = [#tpu.dimension_semantics<parallel>], iteration_bounds = array<i64: 2>, scalar_prefetch = 0 : i64, scratch_operands = 2 : i64, tpu.core_type = #tpu.core_type<tc>, window_params = [{transform_indices = @transform_0, window_bounds = array<i64: 1, 16, 16, 32>}, {pipeline_mode = #tpu.pipeline_mode<synchronous>, transform_indices = @transform_1, window_bounds = array<i64: 288, 32>}, {pipeline_mode = #tpu.pipeline_mode<synchronous>, transform_indices = @transform_2, window_bounds = array<i64: 288, 32>}, {transform_indices = @transform_3, window_bounds = array<i64: 1, 256, 32>}]} {
    %c0 = arith.constant 0 : index
    %c0_0 = arith.constant 0 : index
    %c0_1 = arith.constant 0 : index
    %c0_2 = arith.constant 0 : index
    %0 = vector.load %arg1[%c0, %c0_0, %c0_1, %c0_2] : memref<1x16x16x32xf32, #tpu.memory_space<vmem>>, vector<1x16x16x32xf32>
    %1 = vector.shape_cast %0 : vector<1x16x16x32xf32> to vector<16x16x32xf32>
    %cst = arith.constant 0.000000e+00 : f32
    %2 = vector.broadcast %cst : f32 to vector<1x18x32xf32>
    %c0_3 = arith.constant 0 : index
    %c0_4 = arith.constant 0 : index
    %c0_5 = arith.constant 0 : index
    %3 = vector.load %arg5[%c0_3, %c0_4, %c0_5] : memref<18x18x32xf32, #tpu.memory_space<vmem>>, vector<1x18x32xf32>
    tpu.vector_store %arg5[%c0_3, %c0_4, %c0_5], %2 {strides = array<i32>} : memref<18x18x32xf32, #tpu.memory_space<vmem>>, vector<1x18x32xf32>,
    %cst_6 = arith.constant 0.000000e+00 : f32
    %4 = vector.broadcast %cst_6 : f32 to vector<1x18x32xf32>
    %c17 = arith.constant 17 : index
    %c0_7 = arith.constant 0 : index
    %c0_8 = arith.constant 0 : index
    %5 = vector.load %arg5[%c17, %c0_7, %c0_8] : memref<18x18x32xf32, #tpu.memory_space<vmem>>, vector<1x18x32xf32>
    tpu.vector_store %arg5[%c17, %c0_7, %c0_8], %4 {strides = array<i32>} : memref<18x18x32xf32, #tpu.memory_space<vmem>>, vector<1x18x32xf32>,
    %cst_9 = arith.constant 0.000000e+00 : f32
    %6 = vector.broadcast %cst_9 : f32 to vector<18x1x32xf32>
    %c0_10 = arith.constant 0 : index
    %c0_11 = arith.constant 0 : index
    %c0_12 = arith.constant 0 : index
    %7 = vector.load %arg5[%c0_10, %c0_11, %c0_12] : memref<18x18x32xf32, #tpu.memory_space<vmem>>, vector<18x1x32xf32>
    tpu.vector_store %arg5[%c0_10, %c0_11, %c0_12], %6 {strides = array<i32>} : memref<18x18x32xf32, #tpu.memory_space<vmem>>, vector<18x1x32xf32>,
    %cst_13 = arith.constant 0.000000e+00 : f32
    %8 = vector.broadcast %cst_13 : f32 to vector<18x1x32xf32>
    %c0_14 = arith.constant 0 : index
    %c17_15 = arith.constant 17 : index
    %c0_16 = arith.constant 0 : index
    %9 = vector.load %arg5[%c0_14, %c17_15, %c0_16] : memref<18x18x32xf32, #tpu.memory_space<vmem>>, vector<18x1x32xf32>
    tpu.vector_store %arg5[%c0_14, %c17_15, %c0_16], %8 {strides = array<i32>} : memref<18x18x32xf32, #tpu.memory_space<vmem>>, vector<18x1x32xf32>,
    %c1 = arith.constant 1 : index
    %c1_17 = arith.constant 1 : index
    %c0_18 = arith.constant 0 : index
    %10 = vector.load %arg5[%c1, %c1_17, %c0_18] : memref<18x18x32xf32, #tpu.memory_space<vmem>>, vector<16x16x32xf32>
    tpu.vector_store %arg5[%c1, %c1_17, %c0_18], %1 {strides = array<i32>} : memref<18x18x32xf32, #tpu.memory_space<vmem>>, vector<16x16x32xf32>,
    %c0_19 = arith.constant 0 : index
    %c0_20 = arith.constant 0 : index
    %11 = vector.load %arg2[%c0_19, %c0_20] : memref<288x32xbf16, #tpu.memory_space<vmem>>, vector<288x32xbf16>
    %c0_21 = arith.constant 0 : index
    %c0_22 = arith.constant 0 : index
    %c0_23 = arith.constant 0 : index
    %12 = vector.load %arg5[%c0_21, %c0_22, %c0_23] : memref<18x18x32xf32, #tpu.memory_space<vmem>>, vector<16x16x32xf32>
    %13 = vector.shape_cast %12 : vector<16x16x32xf32> to vector<256x32xf32>
    %14 = arith.truncf %13 : vector<256x32xf32> to vector<256x32xbf16>
    %c0_24 = arith.constant 0 : index
    %c0_25 = arith.constant 0 : index
    %15 = vector.load %arg6[%c0_24, %c0_25] : memref<256x288xbf16, #tpu.memory_space<vmem>>, vector<256x32xbf16>
    tpu.vector_store %arg6[%c0_24, %c0_25], %14 {strides = array<i32>} : memref<256x288xbf16, #tpu.memory_space<vmem>>, vector<256x32xbf16>,
    %c0_26 = arith.constant 0 : index
    %c1_27 = arith.constant 1 : index
    %c0_28 = arith.constant 0 : index
    %16 = vector.load %arg5[%c0_26, %c1_27, %c0_28] : memref<18x18x32xf32, #tpu.memory_space<vmem>>, vector<16x16x32xf32>
    %17 = vector.shape_cast %16 : vector<16x16x32xf32> to vector<256x32xf32>
    %18 = arith.truncf %17 : vector<256x32xf32> to vector<256x32xbf16>
    %c0_29 = arith.constant 0 : index
    %c32 = arith.constant 32 : index
    %19 = vector.load %arg6[%c0_29, %c32] : memref<256x288xbf16, #tpu.memory_space<vmem>>, vector<256x32xbf16>
    tpu.vector_store %arg6[%c0_29, %c32], %18 {strides = array<i32>} : memref<256x288xbf16, #tpu.memory_space<vmem>>, vector<256x32xbf16>,
    %c0_30 = arith.constant 0 : index
    %c2 = arith.constant 2 : index
    %c0_31 = arith.constant 0 : index
    %20 = vector.load %arg5[%c0_30, %c2, %c0_31] : memref<18x18x32xf32, #tpu.memory_space<vmem>>, vector<16x16x32xf32>
    %21 = vector.shape_cast %20 : vector<16x16x32xf32> to vector<256x32xf32>
    %22 = arith.truncf %21 : vector<256x32xf32> to vector<256x32xbf16>
    %c0_32 = arith.constant 0 : index
    %c64 = arith.constant 64 : index
    %23 = vector.load %arg6[%c0_32, %c64] : memref<256x288xbf16, #tpu.memory_space<vmem>>, vector<256x32xbf16>
    tpu.vector_store %arg6[%c0_32, %c64], %22 {strides = array<i32>} : memref<256x288xbf16, #tpu.memory_space<vmem>>, vector<256x32xbf16>,
    %c1_33 = arith.constant 1 : index
    %c0_34 = arith.constant 0 : index
    %c0_35 = arith.constant 0 : index
    %24 = vector.load %arg5[%c1_33, %c0_34, %c0_35] : memref<18x18x32xf32, #tpu.memory_space<vmem>>, vector<16x16x32xf32>
    %25 = vector.shape_cast %24 : vector<16x16x32xf32> to vector<256x32xf32>
    %26 = arith.truncf %25 : vector<256x32xf32> to vector<256x32xbf16>
    %c0_36 = arith.constant 0 : index
    %c96 = arith.constant 96 : index
    %27 = vector.load %arg6[%c0_36, %c96] : memref<256x288xbf16, #tpu.memory_space<vmem>>, vector<256x32xbf16>
    tpu.vector_store %arg6[%c0_36, %c96], %26 {strides = array<i32>} : memref<256x288xbf16, #tpu.memory_space<vmem>>, vector<256x32xbf16>,
    %c1_37 = arith.constant 1 : index
    %c1_38 = arith.constant 1 : index
    %c0_39 = arith.constant 0 : index
    %28 = vector.load %arg5[%c1_37, %c1_38, %c0_39] : memref<18x18x32xf32, #tpu.memory_space<vmem>>, vector<16x16x32xf32>
    %29 = vector.shape_cast %28 : vector<16x16x32xf32> to vector<256x32xf32>
    %30 = arith.truncf %29 : vector<256x32xf32> to vector<256x32xbf16>
    %c0_40 = arith.constant 0 : index
    %c128 = arith.constant 128 : index
    %31 = vector.load %arg6[%c0_40, %c128] : memref<256x288xbf16, #tpu.memory_space<vmem>>, vector<256x32xbf16>
    tpu.vector_store %arg6[%c0_40, %c128], %30 {strides = array<i32>} : memref<256x288xbf16, #tpu.memory_space<vmem>>, vector<256x32xbf16>,
    %c1_41 = arith.constant 1 : index
    %c2_42 = arith.constant 2 : index
    %c0_43 = arith.constant 0 : index
    %32 = vector.load %arg5[%c1_41, %c2_42, %c0_43] : memref<18x18x32xf32, #tpu.memory_space<vmem>>, vector<16x16x32xf32>
    %33 = vector.shape_cast %32 : vector<16x16x32xf32> to vector<256x32xf32>
    %34 = arith.truncf %33 : vector<256x32xf32> to vector<256x32xbf16>
    %c0_44 = arith.constant 0 : index
    %c160 = arith.constant 160 : index
    %35 = vector.load %arg6[%c0_44, %c160] : memref<256x288xbf16, #tpu.memory_space<vmem>>, vector<256x32xbf16>
    tpu.vector_store %arg6[%c0_44, %c160], %34 {strides = array<i32>} : memref<256x288xbf16, #tpu.memory_space<vmem>>, vector<256x32xbf16>,
    %c2_45 = arith.constant 2 : index
    %c0_46 = arith.constant 0 : index
    %c0_47 = arith.constant 0 : index
    %36 = vector.load %arg5[%c2_45, %c0_46, %c0_47] : memref<18x18x32xf32, #tpu.memory_space<vmem>>, vector<16x16x32xf32>
    %37 = vector.shape_cast %36 : vector<16x16x32xf32> to vector<256x32xf32>
    %38 = arith.truncf %37 : vector<256x32xf32> to vector<256x32xbf16>
    %c0_48 = arith.constant 0 : index
    %c192 = arith.constant 192 : index
    %39 = vector.load %arg6[%c0_48, %c192] : memref<256x288xbf16, #tpu.memory_space<vmem>>, vector<256x32xbf16>
    tpu.vector_store %arg6[%c0_48, %c192], %38 {strides = array<i32>} : memref<256x288xbf16, #tpu.memory_space<vmem>>, vector<256x32xbf16>,
    %c2_49 = arith.constant 2 : index
    %c1_50 = arith.constant 1 : index
    %c0_51 = arith.constant 0 : index
    %40 = vector.load %arg5[%c2_49, %c1_50, %c0_51] : memref<18x18x32xf32, #tpu.memory_space<vmem>>, vector<16x16x32xf32>
    %41 = vector.shape_cast %40 : vector<16x16x32xf32> to vector<256x32xf32>
    %42 = arith.truncf %41 : vector<256x32xf32> to vector<256x32xbf16>
    %c0_52 = arith.constant 0 : index
    %c224 = arith.constant 224 : index
    %43 = vector.load %arg6[%c0_52, %c224] : memref<256x288xbf16, #tpu.memory_space<vmem>>, vector<256x32xbf16>
    tpu.vector_store %arg6[%c0_52, %c224], %42 {strides = array<i32>} : memref<256x288xbf16, #tpu.memory_space<vmem>>, vector<256x32xbf16>,
    %c2_53 = arith.constant 2 : index
    %c2_54 = arith.constant 2 : index
    %c0_55 = arith.constant 0 : index
    %44 = vector.load %arg5[%c2_53, %c2_54, %c0_55] : memref<18x18x32xf32, #tpu.memory_space<vmem>>, vector<16x16x32xf32>
    %45 = vector.shape_cast %44 : vector<16x16x32xf32> to vector<256x32xf32>
    %46 = arith.truncf %45 : vector<256x32xf32> to vector<256x32xbf16>
    %c0_56 = arith.constant 0 : index
    %c256 = arith.constant 256 : index
    %47 = vector.load %arg6[%c0_56, %c256] : memref<256x288xbf16, #tpu.memory_space<vmem>>, vector<256x32xbf16>
    tpu.vector_store %arg6[%c0_56, %c256], %46 {strides = array<i32>} : memref<256x288xbf16, #tpu.memory_space<vmem>>, vector<256x32xbf16>,
    %c0_57 = arith.constant 0 : index
    %c0_58 = arith.constant 0 : index
    %48 = vector.load %arg6[%c0_57, %c0_58] : memref<256x288xbf16, #tpu.memory_space<vmem>>, vector<256x288xbf16>
    %cst_59 = arith.constant dense<0.000000e+00> : vector<256x32xf32>
    %49 = tpu.matmul %48, %11, %cst_59 {dimension_numbers = #tpu.dot_dimension_numbers<[1], [0], [0], [1], [0, 0, 1, 1], [], []>} : vector<256x288xbf16>, vector<288x32xbf16>, vector<256x32xf32> -> vector<256x32xf32>
    %cst_60 = arith.constant 0.000000e+00 : f32
    %50 = vector.broadcast %cst_60 : f32 to vector<256x32xf32>
    %51 = arith.maximumf %49, %50 : vector<256x32xf32>
    %52 = vector.shape_cast %51 : vector<256x32xf32> to vector<16x16x32xf32>
    %c1_61 = arith.constant 1 : index
    %c1_62 = arith.constant 1 : index
    %c0_63 = arith.constant 0 : index
    %53 = vector.load %arg5[%c1_61, %c1_62, %c0_63] : memref<18x18x32xf32, #tpu.memory_space<vmem>>, vector<16x16x32xf32>
    tpu.vector_store %arg5[%c1_61, %c1_62, %c0_63], %52 {strides = array<i32>} : memref<18x18x32xf32, #tpu.memory_space<vmem>>, vector<16x16x32xf32>,
    %c0_64 = arith.constant 0 : index
    %c0_65 = arith.constant 0 : index
    %54 = vector.load %arg3[%c0_64, %c0_65] : memref<288x32xbf16, #tpu.memory_space<vmem>>, vector<288x32xbf16>
    %c0_66 = arith.constant 0 : index
    %c0_67 = arith.constant 0 : index
    %c0_68 = arith.constant 0 : index
    %55 = vector.load %arg5[%c0_66, %c0_67, %c0_68] : memref<18x18x32xf32, #tpu.memory_space<vmem>>, vector<16x16x32xf32>
    %56 = vector.shape_cast %55 : vector<16x16x32xf32> to vector<256x32xf32>
    %57 = arith.truncf %56 : vector<256x32xf32> to vector<256x32xbf16>
    %c0_69 = arith.constant 0 : index
    %c0_70 = arith.constant 0 : index
    %58 = vector.load %arg6[%c0_69, %c0_70] : memref<256x288xbf16, #tpu.memory_space<vmem>>, vector<256x32xbf16>
    tpu.vector_store %arg6[%c0_69, %c0_70], %57 {strides = array<i32>} : memref<256x288xbf16, #tpu.memory_space<vmem>>, vector<256x32xbf16>,
    %c0_71 = arith.constant 0 : index
    %c1_72 = arith.constant 1 : index
    %c0_73 = arith.constant 0 : index
    %59 = vector.load %arg5[%c0_71, %c1_72, %c0_73] : memref<18x18x32xf32, #tpu.memory_space<vmem>>, vector<16x16x32xf32>
    %60 = vector.shape_cast %59 : vector<16x16x32xf32> to vector<256x32xf32>
    %61 = arith.truncf %60 : vector<256x32xf32> to vector<256x32xbf16>
    %c0_74 = arith.constant 0 : index
    %c32_75 = arith.constant 32 : index
    %62 = vector.load %arg6[%c0_74, %c32_75] : memref<256x288xbf16, #tpu.memory_space<vmem>>, vector<256x32xbf16>
    tpu.vector_store %arg6[%c0_74, %c32_75], %61 {strides = array<i32>} : memref<256x288xbf16, #tpu.memory_space<vmem>>, vector<256x32xbf16>,
    %c0_76 = arith.constant 0 : index
    %c2_77 = arith.constant 2 : index
    %c0_78 = arith.constant 0 : index
    %63 = vector.load %arg5[%c0_76, %c2_77, %c0_78] : memref<18x18x32xf32, #tpu.memory_space<vmem>>, vector<16x16x32xf32>
    %64 = vector.shape_cast %63 : vector<16x16x32xf32> to vector<256x32xf32>
    %65 = arith.truncf %64 : vector<256x32xf32> to vector<256x32xbf16>
    %c0_79 = arith.constant 0 : index
    %c64_80 = arith.constant 64 : index
    %66 = vector.load %arg6[%c0_79, %c64_80] : memref<256x288xbf16, #tpu.memory_space<vmem>>, vector<256x32xbf16>
    tpu.vector_store %arg6[%c0_79, %c64_80], %65 {strides = array<i32>} : memref<256x288xbf16, #tpu.memory_space<vmem>>, vector<256x32xbf16>,
    %c1_81 = arith.constant 1 : index
    %c0_82 = arith.constant 0 : index
    %c0_83 = arith.constant 0 : index
    %67 = vector.load %arg5[%c1_81, %c0_82, %c0_83] : memref<18x18x32xf32, #tpu.memory_space<vmem>>, vector<16x16x32xf32>
    %68 = vector.shape_cast %67 : vector<16x16x32xf32> to vector<256x32xf32>
    %69 = arith.truncf %68 : vector<256x32xf32> to vector<256x32xbf16>
    %c0_84 = arith.constant 0 : index
    %c96_85 = arith.constant 96 : index
    %70 = vector.load %arg6[%c0_84, %c96_85] : memref<256x288xbf16, #tpu.memory_space<vmem>>, vector<256x32xbf16>
    tpu.vector_store %arg6[%c0_84, %c96_85], %69 {strides = array<i32>} : memref<256x288xbf16, #tpu.memory_space<vmem>>, vector<256x32xbf16>,
    %c1_86 = arith.constant 1 : index
    %c1_87 = arith.constant 1 : index
    %c0_88 = arith.constant 0 : index
    %71 = vector.load %arg5[%c1_86, %c1_87, %c0_88] : memref<18x18x32xf32, #tpu.memory_space<vmem>>, vector<16x16x32xf32>
    %72 = vector.shape_cast %71 : vector<16x16x32xf32> to vector<256x32xf32>
    %73 = arith.truncf %72 : vector<256x32xf32> to vector<256x32xbf16>
    %c0_89 = arith.constant 0 : index
    %c128_90 = arith.constant 128 : index
    %74 = vector.load %arg6[%c0_89, %c128_90] : memref<256x288xbf16, #tpu.memory_space<vmem>>, vector<256x32xbf16>
    tpu.vector_store %arg6[%c0_89, %c128_90], %73 {strides = array<i32>} : memref<256x288xbf16, #tpu.memory_space<vmem>>, vector<256x32xbf16>,
    %c1_91 = arith.constant 1 : index
    %c2_92 = arith.constant 2 : index
    %c0_93 = arith.constant 0 : index
    %75 = vector.load %arg5[%c1_91, %c2_92, %c0_93] : memref<18x18x32xf32, #tpu.memory_space<vmem>>, vector<16x16x32xf32>
    %76 = vector.shape_cast %75 : vector<16x16x32xf32> to vector<256x32xf32>
    %77 = arith.truncf %76 : vector<256x32xf32> to vector<256x32xbf16>
    %c0_94 = arith.constant 0 : index
    %c160_95 = arith.constant 160 : index
    %78 = vector.load %arg6[%c0_94, %c160_95] : memref<256x288xbf16, #tpu.memory_space<vmem>>, vector<256x32xbf16>
    tpu.vector_store %arg6[%c0_94, %c160_95], %77 {strides = array<i32>} : memref<256x288xbf16, #tpu.memory_space<vmem>>, vector<256x32xbf16>,
    %c2_96 = arith.constant 2 : index
    %c0_97 = arith.constant 0 : index
    %c0_98 = arith.constant 0 : index
    %79 = vector.load %arg5[%c2_96, %c0_97, %c0_98] : memref<18x18x32xf32, #tpu.memory_space<vmem>>, vector<16x16x32xf32>
    %80 = vector.shape_cast %79 : vector<16x16x32xf32> to vector<256x32xf32>
    %81 = arith.truncf %80 : vector<256x32xf32> to vector<256x32xbf16>
    %c0_99 = arith.constant 0 : index
    %c192_100 = arith.constant 192 : index
    %82 = vector.load %arg6[%c0_99, %c192_100] : memref<256x288xbf16, #tpu.memory_space<vmem>>, vector<256x32xbf16>
    tpu.vector_store %arg6[%c0_99, %c192_100], %81 {strides = array<i32>} : memref<256x288xbf16, #tpu.memory_space<vmem>>, vector<256x32xbf16>,
    %c2_101 = arith.constant 2 : index
    %c1_102 = arith.constant 1 : index
    %c0_103 = arith.constant 0 : index
    %83 = vector.load %arg5[%c2_101, %c1_102, %c0_103] : memref<18x18x32xf32, #tpu.memory_space<vmem>>, vector<16x16x32xf32>
    %84 = vector.shape_cast %83 : vector<16x16x32xf32> to vector<256x32xf32>
    %85 = arith.truncf %84 : vector<256x32xf32> to vector<256x32xbf16>
    %c0_104 = arith.constant 0 : index
    %c224_105 = arith.constant 224 : index
    %86 = vector.load %arg6[%c0_104, %c224_105] : memref<256x288xbf16, #tpu.memory_space<vmem>>, vector<256x32xbf16>
    tpu.vector_store %arg6[%c0_104, %c224_105], %85 {strides = array<i32>} : memref<256x288xbf16, #tpu.memory_space<vmem>>, vector<256x32xbf16>,
    %c2_106 = arith.constant 2 : index
    %c2_107 = arith.constant 2 : index
    %c0_108 = arith.constant 0 : index
    %87 = vector.load %arg5[%c2_106, %c2_107, %c0_108] : memref<18x18x32xf32, #tpu.memory_space<vmem>>, vector<16x16x32xf32>
    %88 = vector.shape_cast %87 : vector<16x16x32xf32> to vector<256x32xf32>
    %89 = arith.truncf %88 : vector<256x32xf32> to vector<256x32xbf16>
    %c0_109 = arith.constant 0 : index
    %c256_110 = arith.constant 256 : index
    %90 = vector.load %arg6[%c0_109, %c256_110] : memref<256x288xbf16, #tpu.memory_space<vmem>>, vector<256x32xbf16>
    tpu.vector_store %arg6[%c0_109, %c256_110], %89 {strides = array<i32>} : memref<256x288xbf16, #tpu.memory_space<vmem>>, vector<256x32xbf16>,
    %c0_111 = arith.constant 0 : index
    %c0_112 = arith.constant 0 : index
    %91 = vector.load %arg6[%c0_111, %c0_112] : memref<256x288xbf16, #tpu.memory_space<vmem>>, vector<256x288xbf16>
    %cst_113 = arith.constant dense<0.000000e+00> : vector<256x32xf32>
    %92 = tpu.matmul %91, %54, %cst_113 {dimension_numbers = #tpu.dot_dimension_numbers<[1], [0], [0], [1], [0, 0, 1, 1], [], []>} : vector<256x288xbf16>, vector<288x32xbf16>, vector<256x32xf32> -> vector<256x32xf32>
    %93 = vector.shape_cast %1 : vector<16x16x32xf32> to vector<256x32xf32>
    %94 = arith.addf %92, %93 : vector<256x32xf32>
    %c0_114 = arith.constant 0 : index
    %c0_115 = arith.constant 0 : index
    %c0_116 = arith.constant 0 : index
    %95 = vector.load %arg4[%c0_114, %c0_115, %c0_116] : memref<1x256x32xf32, #tpu.memory_space<vmem>>, vector<1x256x32xf32>
    %96 = vector.shape_cast %95 : vector<1x256x32xf32> to vector<256x32xf32>
    %97 = vector.shape_cast %94 : vector<256x32xf32> to vector<1x256x32xf32>
    tpu.vector_store %arg4[%c0_114, %c0_115, %c0_116], %97 {strides = array<i32>} : memref<1x256x32xf32, #tpu.memory_space<vmem>>, vector<1x256x32xf32>,
    return
  }
  func.func @transform_0(%arg0: i32) -> (i32, i32, i32, i32) {
    %c0_i32 = arith.constant 0 : i32
    %c0_i32_0 = arith.constant 0 : i32
    %c0_i32_1 = arith.constant 0 : i32
    %c0_i32_2 = arith.constant 0 : i32
    return %arg0, %c0_i32, %c0_i32_0, %c0_i32_1 : i32, i32, i32, i32
  }
  func.func @transform_1(%arg0: i32) -> (i32, i32) {
    %c0_i32 = arith.constant 0 : i32
    %c0_i32_0 = arith.constant 0 : i32
    %c0_i32_1 = arith.constant 0 : i32
    return %c0_i32, %c0_i32_0 : i32, i32
  }
  func.func @transform_2(%arg0: i32) -> (i32, i32) {
    %c0_i32 = arith.constant 0 : i32
    %c0_i32_0 = arith.constant 0 : i32
    %c0_i32_1 = arith.constant 0 : i32
    return %c0_i32, %c0_i32_0 : i32, i32
  }
  func.func @transform_3(%arg0: i32) -> (i32, i32, i32) {
    %c0_i32 = arith.constant 0 : i32
    %c0_i32_0 = arith.constant 0 : i32
    %c0_i32_1 = arith.constant 0 : i32
    return %arg0, %c0_i32, %c0_i32_0 : i32, i32, i32
  }
}

</mosaic_0001>

<llo_original>
// kernel: tpu_custom_call.1
$region0: #{tpu_custom_call.1}
  #allocation0 [shape = 'u32[]', space=smem, size = 0x4, offset = 0x4, fixed_abs, tag = 'smem constant byte address 0x4 - core index']
  #allocation1 [shape = 'u32[72,128]{1,0:T(1,128)}', space=vmem, size = 0x9000, scoped, tag = 'internal scratch']
  #allocation2 [shape = 'f32[18,18,32]{2,1,0:T(8,128)}', space=vmem, size = 0x36000, scoped, tag = 'scratch operand']
  #allocation3 [shape = 'bf16[256,288]{1,0:T(8,128)(2,1)}', space=vmem, size = 0x30000, scoped, tag = 'scratch operand']
  %s0 = inlined_call_operand.hbm [shape: f32[2,16,16,32], index: 0, kind: input, shape index: {}]
  %s1 = inlined_call_operand.vmem [shape: bf16[288,32], index: 1, kind: input, shape index: {}]
  %s2 = inlined_call_operand.vmem [shape: bf16[288,32], index: 2, kind: input, shape index: {}]
  %s3 = inlined_call_operand.vmem [shape: f32[2,256,32], index: 3, kind: output, shape index: {}]
  %s4 = sld [smem:[#allocation0]]
  $region49: #{tpu_custom_call.1} parent=0
    _
  %s6 = ssub.s32 1, %s4
  %s7 = scalar_select 0, %s6, %s4
  $region1: #{tpu_custom_call.1} parent=0
    #allocation4 [shape = 'u8[262144]{0}', space=vmem, size = 0x40000, scoped, tag = 'input window, operand 0']
    #allocation5 [shape = 's32[2]{0}', space=sflag, size = 0x8, scoped, tag = 'scoped memory for tpu_custom_call.1']
    %8 = vsyncpa [#allocation5], 0
    %s9 = scalar_lea.sflag [#allocation5], 1
    %10 = vsyncpa %s9, 0
    loop: start=0, step=1, limit=4
    $region2: #{tpu_custom_call.1} parent=1 // loop_pre_header
      _
    $region3: #{tpu_custom_call.1} parent=1 // loop_header
      %s12 = sphi 0, %s16
      %p13 = scmp.ge.s32.totalorder %s12, 4
      %s22 = sphi 0, %s24
      %s25 = sphi 0, %s22
      %s26 = sphi 0, %s25
      %s42 = sphi 0, %s26
      %s46 = sphi 0, %s46
      %s48 = sphi 0, %s46
      %s49 = sphi 0, %s48
      %s63 = sphi 0, %s49
      %s67 = sphi 0, %s67
      %s69 = sphi 0, %s67
      %s70 = sphi 0, %s69
      %s84 = sphi 0, %s70
      %s90 = sphi 0, %s92
      %s93 = sphi 0, %s90
      %s94 = sphi 0, %s93
      %s110 = sphi 0, %s94
    $region4: #{tpu_custom_call.1} parent=1 // loop_header_branch
      %15 = sbr.rel (%p13) target = $region8
    $region5: #{tpu_custom_call.1} parent=1 // loop_body
      %s17 = ssub.s32 %s12, 1
      %s18 = ssub.s32 %s12, 2
      %s19 = sadd.s32 %s12, 1
      %s20 = ssub.s32 %s12, %s19
      %p21 = scmp.eq.s32.totalorder %s20, 0
      %s23 = sadd.s32 %s22, 1
      %s24 = scalar_select %p21, %s22, %s23
      %p27 = pneg %p21
      %p28 = scmp.eq.s32.totalorder %s12, 1
      %p29 = por %p27, %p28
      %p30 = scmp.ne.s32.totalorder %s22, %s25
      %p31 = scmp.eq.s32.totalorder %s12, 0
      %p32 = por %p30, %p31
      %p33 = scmp.ne.s32.totalorder %s22, %s25
      %p34 = scmp.eq.s32.totalorder %s17, 1
      %p35 = por %p33, %p34
      %p36 = scmp.ne.s32.totalorder %s25, %s26
      %p37 = scmp.eq.s32.totalorder %s17, 0
      %p38 = por %p36, %p37
      %p39 = scmp.ne.s32.totalorder %s25, %s26
      %p40 = scmp.eq.s32.totalorder %s18, 1
      %p41 = por %p39, %p40
      %p43 = scmp.ne.s32.totalorder %s26, %s42
      %p44 = scmp.eq.s32.totalorder %s18, 0
      %p45 = por %p43, %p44
      %s47 = sadd.s32 %s46, 1
      %p50 = scmp.eq.s32.totalorder %s12, 1
      %p51 = scmp.ne.s32.totalorder %s46, %s48
      %p52 = scmp.eq.s32.totalorder %s12, 0
      %p53 = por %p51, %p52
      %p54 = scmp.ne.s32.totalorder %s46, %s48
      %p55 = scmp.eq.s32.totalorder %s17, 1
      %p56 = por %p54, %p55
      %p57 = scmp.ne.s32.totalorder %s48, %s49
      %p58 = scmp.eq.s32.totalorder %s17, 0
      %p59 = por %p57, %p58
      %p60 = scmp.ne.s32.totalorder %s48, %s49
      %p61 = scmp.eq.s32.totalorder %s18, 1
      %p62 = por %p60, %p61
      %p64 = scmp.ne.s32.totalorder %s49, %s63
      %p65 = scmp.eq.s32.totalorder %s18, 0
      %p66 = por %p64, %p65
      %s68 = sadd.s32 %s67, 1
      %p71 = scmp.eq.s32.totalorder %s12, 1
      %p72 = scmp.ne.s32.totalorder %s67, %s69
      %p73 = scmp.eq.s32.totalorder %s12, 0
      %p74 = por %p72, %p73
      %p75 = scmp.ne.s32.totalorder %s67, %s69
      %p76 = scmp.eq.s32.totalorder %s17, 1
      %p77 = por %p75, %p76
      %p78 = scmp.ne.s32.totalorder %s69, %s70
      %p79 = scmp.eq.s32.totalorder %s17, 0
      %p80 = por %p78, %p79
      %p81 = scmp.ne.s32.totalorder %s69, %s70
      %p82 = scmp.eq.s32.totalorder %s18, 1
      %p83 = por %p81, %p82
      %p85 = scmp.ne.s32.totalorder %s70, %s84
      %p86 = scmp.eq.s32.totalorder %s18, 0
      %p87 = por %p85, %p86
      %s88 = ssub.s32 %s12, %s19
      %p89 = scmp.eq.s32.totalorder %s88, 0
      %s91 = sadd.s32 %s90, 1
      %s92 = scalar_select %p89, %s90, %s91
      %p95 = pneg %p89
      %p96 = scmp.eq.s32.totalorder %s12, 1
      %p97 = por %p95, %p96
      %p98 = scmp.ne.s32.totalorder %s90, %s93
      %p99 = scmp.eq.s32.totalorder %s12, 0
      %p100 = por %p98, %p99
      %p101 = scmp.ne.s32.totalorder %s90, %s93
      %p102 = scmp.eq.s32.totalorder %s17, 1
      %p103 = por %p101, %p102
      %p104 = scmp.ne.s32.totalorder %s93, %s94
      %p105 = scmp.eq.s32.totalorder %s17, 0
      %p106 = por %p104, %p105
      %p107 = scmp.ne.s32.totalorder %s93, %s94
      %p108 = scmp.eq.s32.totalorder %s18, 1
      %p109 = por %p107, %p108
      %p111 = scmp.ne.s32.totalorder %s94, %s110
      %p112 = scmp.eq.s32.totalorder %s18, 0
      %p113 = por %p111, %p112
      %p114 = scmp.le.s32.totalorder 1, %s12
      %p115 = scmp.lt.s32.totalorder %s12, 3
      %p116 = pnand %p114, %p115
      %p117 = pneg %p116
      // Predicated region
      $region9: #{tpu_custom_call.1} parent=5 // pred_check
        _
      $region10: #{tpu_custom_call.1} parent=5 // pred_check_branch
        %119 = sbr.rel (%p116) target = $region12
      $region11: #{tpu_custom_call.1} parent=5 // pred_region
        %s120 = ssub.s32 %s12, 1
        // Predicated region
        $region13: #{tpu_custom_call.1} parent=11 // pred_check
          %p121 = pneg %p59
        $region14: #{tpu_custom_call.1} parent=11 // pred_check_branch
          %123 = sbr.rel (%p121) target = $region16
        $region15: #{tpu_custom_call.1} parent=11 // pred_region
          _
        $region16: #{tpu_custom_call.1} parent=11 // pred_fallthru
          _
        // Predicated region
        $region17: #{tpu_custom_call.1} parent=11 // pred_check
          %p124 = pneg %p80
        $region18: #{tpu_custom_call.1} parent=11 // pred_check_branch
          %126 = sbr.rel (%p124) target = $region20
        $region19: #{tpu_custom_call.1} parent=11 // pred_region
          _
        $region20: #{tpu_custom_call.1} parent=11 // pred_fallthru
          _
      $region12: #{tpu_custom_call.1} parent=5 // pred_fallthru
        _
      %p127 = scmp.lt.s32.totalorder %s12, 2
      // Predicated region
      $region21: #{tpu_custom_call.1} parent=5 // pred_check
        %p128 = pneg %p127
      $region22: #{tpu_custom_call.1} parent=5 // pred_check_branch
        %130 = sbr.rel (%p128) target = $region24
      $region23: #{tpu_custom_call.1} parent=5 // pred_region
        // Predicated region
        $region25: #{tpu_custom_call.1} parent=23 // pred_check
          %p131 = pneg %p32
        $region26: #{tpu_custom_call.1} parent=23 // pred_check_branch
          %133 = sbr.rel (%p131) target = $region28
        $region27: #{tpu_custom_call.1} parent=23 // pred_region
          %s134 = sand.u32 %s22, 1
          %s135 = scalar_lea.sflag [#allocation5], %s134
          %s136 = sand.u32 %s22, 1
          %s137 = smul.addr %s136, 256
          %s138 = scalar_lea.vmem [#allocation4], %s137
          %140 = vsyncadd %s135, 0
          %s141 = smul.addr %s12, 32
          %s142 = smul.addr %s141, 8
          %s143 = scalar_lea.hbm %s0, %s142
          %s144 = sshll.u32 %s143, 4
          %s145 = int_to_ptr.hbm [resolvable:$true] %s144
          %s146 = sshll.u32 %s138, 4
          %s147 = int_to_ptr.vmem [resolvable:$true] %s146
          %152 = dma.hbm_to_vmem [thread:$0]  %s145, 4096, %s147, %s135, 128, 128, 8
        $region28: #{tpu_custom_call.1} parent=23 // pred_fallthru
          _
      $region24: #{tpu_custom_call.1} parent=5 // pred_fallthru
        _
      %p153 = scmp.le.s32.totalorder 1, %s12
      %p154 = scmp.lt.s32.totalorder %s12, 3
      %p155 = pnand %p153, %p154
      %p156 = pneg %p155
      // Predicated region
      $region29: #{tpu_custom_call.1} parent=5 // pred_check
        _
      $region30: #{tpu_custom_call.1} parent=5 // pred_check_branch
        %158 = sbr.rel (%p155) target = $region32
      $region31: #{tpu_custom_call.1} parent=5 // pred_region
        %s159 = ssub.s32 %s12, 1
        %s160 = sand.u32 %s25, 1
        %s161 = scalar_lea.sflag [#allocation5], %s160
        %s162 = sand.u32 %s25, 1
        %s163 = smul.addr %s162, 256
        %s164 = scalar_lea.vmem [#allocation4], %s163
        // Predicated region
        $region33: #{tpu_custom_call.1} parent=31 // pred_check
          %p165 = pneg %p38
        $region34: #{tpu_custom_call.1} parent=31 // pred_check_branch
          %167 = sbr.rel (%p165) target = $region36
        $region35: #{tpu_custom_call.1} parent=31 // pred_region
          %169 = dma.done %s161, 4096
        $region36: #{tpu_custom_call.1} parent=31 // pred_fallthru
          _
        %s170 = sand.u32 %s25, 1
        %s171 = scalar_lea.sflag [#allocation5], %s170
        %s172 = sand.u32 %s25, 1
        %s173 = smul.addr %s172, 256
        %s174 = scalar_lea.vmem [#allocation4], %s173
        %p175 = pneg %p38
        %p176 = pneg %p35
        %p177 = pneg %p59
        %p178 = pneg %p56
        %p179 = pneg %p80
        %p180 = pneg %p77
        %p181 = pneg %p106
        %p182 = pneg %p103
        %p183 = scmp.lt.s32.totalorder %s17, 1
        %s184 = scalar_select %p183, %s17, 1
        %s185 = smul.addr %s184, 32
        %s186 = smul.addr %s185, 8
        %s187 = scalar_lea.vmem %s3, %s186
        %p188 = scmp.lt.s32.totalorder %s17, 1
        %s189 = scalar_select %p188, %s17, 1
        %s190 = smul.addr %s189, 32
        %s191 = smul.addr %s190, 8
        %s192 = scalar_lea.vmem %s3, %s191
        %v194 = vld [vmem:[%s164] sm:$0xff]
        %v195 = vld [vmem:[%s164 + $0x8] sm:$0xff]
        %v196 = vld [vmem:[%s164 + $0x10] sm:$0xff]
        %v197 = vld [vmem:[%s164 + $0x18] sm:$0xff]
        %v198 = vld [vmem:[%s164 + $0x20] sm:$0xff]
        %v199 = vld [vmem:[%s164 + $0x28] sm:$0xff]
        %v200 = vld [vmem:[%s164 + $0x30] sm:$0xff]
        %v201 = vld [vmem:[%s164 + $0x38] sm:$0xff]
        %v202 = vld [vmem:[%s164 + $0x40] sm:$0xff]
        %v203 = vld [vmem:[%s164 + $0x48] sm:$0xff]
        %v204 = vld [vmem:[%s164 + $0x50] sm:$0xff]
        %v205 = vld [vmem:[%s164 + $0x58] sm:$0xff]
        %v206 = vld [vmem:[%s164 + $0x60] sm:$0xff]
        %v207 = vld [vmem:[%s164 + $0x68] sm:$0xff]
        %v208 = vld [vmem:[%s164 + $0x70] sm:$0xff]
        %v209 = vld [vmem:[%s164 + $0x78] sm:$0xff]
        %v210 = vld [vmem:[%s164 + $0x80] sm:$0xff]
        %v211 = vld [vmem:[%s164 + $0x88] sm:$0xff]
        %v212 = vld [vmem:[%s164 + $0x90] sm:$0xff]
        %v213 = vld [vmem:[%s164 + $0x98] sm:$0xff]
        %v214 = vld [vmem:[%s164 + $0xa0] sm:$0xff]
        %v215 = vld [vmem:[%s164 + $0xa8] sm:$0xff]
        %v216 = vld [vmem:[%s164 + $0xb0] sm:$0xff]
        %v217 = vld [vmem:[%s164 + $0xb8] sm:$0xff]
        %v218 = vld [vmem:[%s164 + $0xc0] sm:$0xff]
        %v219 = vld [vmem:[%s164 + $0xc8] sm:$0xff]
        %v220 = vld [vmem:[%s164 + $0xd0] sm:$0xff]
        %v221 = vld [vmem:[%s164 + $0xd8] sm:$0xff]
        %v222 = vld [vmem:[%s164 + $0xe0] sm:$0xff]
        %v223 = vld [vmem:[%s164 + $0xe8] sm:$0xff]
        %v224 = vld [vmem:[%s164 + $0xf0] sm:$0xff]
        %v225 = vld [vmem:[%s164 + $0xf8] sm:$0xff]
        %vm226 = vcmask 261120
        %227 = vst.msk [vmem:[#allocation2] sm:$0xff] %vm226, 0.0
        %228 = vst.msk [vmem:[#allocation2 + $0x8] sm:$0xff] %vm226, 0.0
        %vm229 = vcmask 254976
        %230 = vst.msk [vmem:[#allocation2 + $0x10] sm:$0x3] %vm229, 0.0
        %s231 = scalar_lea.vmem [#allocation2], 408
        %232 = vst.msk [vmem:[%s231] sm:$0xff] %vm226, 0.0
        %233 = vst.msk [vmem:[%s231 + $0x8] sm:$0xff] %vm226, 0.0
        %234 = vst.msk [vmem:[%s231 + $0x10] sm:$0x3] %vm229, 0.0
        %vm235 = vcmask 253952
        %236 = vst.msk [vmem:[#allocation2] sm:$0x1] %vm235, 0.0
        %237 = vst.msk [vmem:[#allocation2 + $0x18] sm:$0x1] %vm235, 0.0
        %238 = vst.msk [vmem:[#allocation2 + $0x30] sm:$0x1] %vm235, 0.0
        %239 = vst.msk [vmem:[#allocation2 + $0x48] sm:$0x1] %vm235, 0.0
        %240 = vst.msk [vmem:[#allocation2 + $0x60] sm:$0x1] %vm235, 0.0
        %241 = vst.msk [vmem:[#allocation2 + $0x78] sm:$0x1] %vm235, 0.0
        %242 = vst.msk [vmem:[#allocation2 + $0x90] sm:$0x1] %vm235, 0.0
        %243 = vst.msk [vmem:[#allocation2 + $0xa8] sm:$0x1] %vm235, 0.0
        %244 = vst.msk [vmem:[#allocation2 + $0xc0] sm:$0x1] %vm235, 0.0
        %245 = vst.msk [vmem:[#allocation2 + $0xd8] sm:$0x1] %vm235, 0.0
        %246 = vst.msk [vmem:[#allocation2 + $0xf0] sm:$0x1] %vm235, 0.0
        %247 = vst.msk [vmem:[#allocation2 + $0x108] sm:$0x1] %vm235, 0.0
        %248 = vst.msk [vmem:[#allocation2 + $0x120] sm:$0x1] %vm235, 0.0
        %249 = vst.msk [vmem:[#allocation2 + $0x138] sm:$0x1] %vm235, 0.0
        %250 = vst.msk [vmem:[#allocation2 + $0x150] sm:$0x1] %vm235, 0.0
        %251 = vst.msk [vmem:[#allocation2 + $0x168] sm:$0x1] %vm235, 0.0
        %252 = vst.msk [vmem:[#allocation2 + $0x180] sm:$0x1] %vm235, 0.0
        %253 = vst.msk [vmem:[#allocation2 + $0x198] sm:$0x1] %vm235, 0.0
        %254 = vst.msk [vmem:[#allocation2 + $0x11] sm:$0x1] %vm235, 0.0
        %255 = vst.msk [vmem:[#allocation2 + $0x29] sm:$0x1] %vm235, 0.0
        %256 = vst.msk [vmem:[#allocation2 + $0x41] sm:$0x1] %vm235, 0.0
        %257 = vst.msk [vmem:[#allocation2 + $0x59] sm:$0x1] %vm235, 0.0
        %258 = vst.msk [vmem:[#allocation2 + $0x71] sm:$0x1] %vm235, 0.0
        %259 = vst.msk [vmem:[#allocation2 + $0x89] sm:$0x1] %vm235, 0.0
        %260 = vst.msk [vmem:[#allocation2 + $0xa1] sm:$0x1] %vm235, 0.0
        %261 = vst.msk [vmem:[#allocation2 + $0xb9] sm:$0x1] %vm235, 0.0
        %262 = vst.msk [vmem:[#allocation2 + $0xd1] sm:$0x1] %vm235, 0.0
        %263 = vst.msk [vmem:[#allocation2 + $0xe9] sm:$0x1] %vm235, 0.0
        %264 = vst.msk [vmem:[#allocation2 + $0x101] sm:$0x1] %vm235, 0.0
        %265 = vst.msk [vmem:[#allocation2 + $0x119] sm:$0x1] %vm235, 0.0
        %266 = vst.msk [vmem:[#allocation2 + $0x131] sm:$0x1] %vm235, 0.0
        %267 = vst.msk [vmem:[#allocation2 + $0x149] sm:$0x1] %vm235, 0.0
        %268 = vst.msk [vmem:[#allocation2 + $0x161] sm:$0x1] %vm235, 0.0
        %269 = vst.msk [vmem:[#allocation2 + $0x179] sm:$0x1] %vm235, 0.0
        %270 = vst.msk [vmem:[#allocation2 + $0x191] sm:$0x1] %vm235, 0.0
        %271 = vst.msk [vmem:[#allocation2 + $0x1a9] sm:$0x1] %vm235, 0.0
        %s272 = scalar_lea.vmem [#allocation2], 24
        %273 = vst.msk [vmem:[%s272 + $0x1] sm:$0xff] %vm226, %v194
        %274 = vst.msk [vmem:[%s272 + $0x9] sm:$0xff] %vm226, %v195
        %275 = vst.msk [vmem:[%s272 + $0x19] sm:$0xff] %vm226, %v196
        %276 = vst.msk [vmem:[%s272 + $0x21] sm:$0xff] %vm226, %v197
        %277 = vst.msk [vmem:[%s272 + $0x31] sm:$0xff] %vm226, %v198
        %278 = vst.msk [vmem:[%s272 + $0x39] sm:$0xff] %vm226, %v199
        %279 = vst.msk [vmem:[%s272 + $0x49] sm:$0xff] %vm226, %v200
        %280 = vst.msk [vmem:[%s272 + $0x51] sm:$0xff] %vm226, %v201
        %281 = vst.msk [vmem:[%s272 + $0x61] sm:$0xff] %vm226, %v202
        %282 = vst.msk [vmem:[%s272 + $0x69] sm:$0xff] %vm226, %v203
        %283 = vst.msk [vmem:[%s272 + $0x79] sm:$0xff] %vm226, %v204
        %284 = vst.msk [vmem:[%s272 + $0x81] sm:$0xff] %vm226, %v205
        %285 = vst.msk [vmem:[%s272 + $0x91] sm:$0xff] %vm226, %v206
        %286 = vst.msk [vmem:[%s272 + $0x99] sm:$0xff] %vm226, %v207
        %287 = vst.msk [vmem:[%s272 + $0xa9] sm:$0xff] %vm226, %v208
        %288 = vst.msk [vmem:[%s272 + $0xb1] sm:$0xff] %vm226, %v209
        %289 = vst.msk [vmem:[%s272 + $0xc1] sm:$0xff] %vm226, %v210
        %290 = vst.msk [vmem:[%s272 + $0xc9] sm:$0xff] %vm226, %v211
        %291 = vst.msk [vmem:[%s272 + $0xd9] sm:$0xff] %vm226, %v212
        %292 = vst.msk [vmem:[%s272 + $0xe1] sm:$0xff] %vm226, %v213
        %293 = vst.msk [vmem:[%s272 + $0xf1] sm:$0xff] %vm226, %v214
        %294 = vst.msk [vmem:[%s272 + $0xf9] sm:$0xff] %vm226, %v215
        %295 = vst.msk [vmem:[%s272 + $0x109] sm:$0xff] %vm226, %v216
        %296 = vst.msk [vmem:[%s272 + $0x111] sm:$0xff] %vm226, %v217
        %297 = vst.msk [vmem:[%s272 + $0x121] sm:$0xff] %vm226, %v218
        %298 = vst.msk [vmem:[%s272 + $0x129] sm:$0xff] %vm226, %v219
        %299 = vst.msk [vmem:[%s272 + $0x139] sm:$0xff] %vm226, %v220
        %300 = vst.msk [vmem:[%s272 + $0x141] sm:$0xff] %vm226, %v221
        %301 = vst.msk [vmem:[%s272 + $0x151] sm:$0xff] %vm226, %v222
        %302 = vst.msk [vmem:[%s272 + $0x159] sm:$0xff] %vm226, %v223
        %303 = vst.msk [vmem:[%s272 + $0x169] sm:$0xff] %vm226, %v224
        %304 = vst.msk [vmem:[%s272 + $0x171] sm:$0xff] %vm226, %v225
        %v305 = vld [vmem:[%s1] sm:$0xf]
        %v306 = vld [vmem:[%s1 + $0x4] sm:$0xf]
        %v307 = vld [vmem:[%s1 + $0x8] sm:$0xf]
        %v308 = vld [vmem:[%s1 + $0xc] sm:$0xf]
        %v309 = vld [vmem:[%s1 + $0x10] sm:$0xf]
        %v310 = vld [vmem:[%s1 + $0x14] sm:$0xf]
        %v311 = vld [vmem:[%s1 + $0x18] sm:$0xf]
        %v312 = vld [vmem:[%s1 + $0x1c] sm:$0xf]
        %v313 = vld [vmem:[%s1 + $0x20] sm:$0xf]
        %v314 = vld [vmem:[%s1 + $0x24] sm:$0xf]
        %v315 = vld [vmem:[%s1 + $0x28] sm:$0xf]
        %v316 = vld [vmem:[%s1 + $0x2c] sm:$0xf]
        %v317 = vld [vmem:[%s1 + $0x30] sm:$0xf]
        %v318 = vld [vmem:[%s1 + $0x34] sm:$0xf]
        %v319 = vld [vmem:[%s1 + $0x38] sm:$0xf]
        %v320 = vld [vmem:[%s1 + $0x3c] sm:$0xf]
        %v321 = vld [vmem:[%s1 + $0x40] sm:$0xf]
        %v322 = vld [vmem:[%s1 + $0x44] sm:$0xf]
        %v323 = vld [vmem:[%s1 + $0x48] sm:$0xf]
        %v324 = vld [vmem:[%s1 + $0x4c] sm:$0xf]
        %v325 = vld [vmem:[%s1 + $0x50] sm:$0xf]
        %v326 = vld [vmem:[%s1 + $0x54] sm:$0xf]
        %v327 = vld [vmem:[%s1 + $0x58] sm:$0xf]
        %v328 = vld [vmem:[%s1 + $0x5c] sm:$0xf]
        %v329 = vld [vmem:[%s1 + $0x60] sm:$0xf]
        %v330 = vld [vmem:[%s1 + $0x64] sm:$0xf]
        %v331 = vld [vmem:[%s1 + $0x68] sm:$0xf]
        %v332 = vld [vmem:[%s1 + $0x6c] sm:$0xf]
        %v333 = vld [vmem:[%s1 + $0x70] sm:$0xf]
        %v334 = vld [vmem:[%s1 + $0x74] sm:$0xf]
        %v335 = vld [vmem:[%s1 + $0x78] sm:$0xf]
        %v336 = vld [vmem:[%s1 + $0x7c] sm:$0xf]
        %v337 = vld [vmem:[%s1 + $0x80] sm:$0xf]
        %v338 = vld [vmem:[%s1 + $0x84] sm:$0xf]
        %v339 = vld [vmem:[%s1 + $0x88] sm:$0xf]
        %v340 = vld [vmem:[%s1 + $0x8c] sm:$0xf]
        %v341 = vld [vmem:[#allocation2] sm:$0xff]
        %v342 = vld [vmem:[#allocation2 + $0x8] sm:$0xff]
        %v343 = vld [vmem:[#allocation2 + $0x18] sm:$0xff]
        %v344 = vld [vmem:[#allocation2 + $0x20] sm:$0xff]
        %v345 = vld [vmem:[#allocation2 + $0x30] sm:$0xff]
        %v346 = vld [vmem:[#allocation2 + $0x38] sm:$0xff]
        %v347 = vld [vmem:[#allocation2 + $0x48] sm:$0xff]
        %v348 = vld [vmem:[#allocation2 + $0x50] sm:$0xff]
        %v349 = vld [vmem:[#allocation2 + $0x60] sm:$0xff]
        %v350 = vld [vmem:[#allocation2 + $0x68] sm:$0xff]
        %v351 = vld [vmem:[#allocation2 + $0x78] sm:$0xff]
        %v352 = vld [vmem:[#allocation2 + $0x80] sm:$0xff]
        %v353 = vld [vmem:[#allocation2 + $0x90] sm:$0xff]
        %v354 = vld [vmem:[#allocation2 + $0x98] sm:$0xff]
        %v355 = vld [vmem:[#allocation2 + $0xa8] sm:$0xff]
        %v356 = vld [vmem:[#allocation2 + $0xb0] sm:$0xff]
        %v357 = vld [vmem:[#allocation2 + $0xc0] sm:$0xff]
        %v358 = vld [vmem:[#allocation2 + $0xc8] sm:$0xff]
        %v359 = vld [vmem:[#allocation2 + $0xd8] sm:$0xff]
        %v360 = vld [vmem:[#allocation2 + $0xe0] sm:$0xff]
        %v361 = vld [vmem:[#allocation2 + $0xf0] sm:$0xff]
        %v362 = vld [vmem:[#allocation2 + $0xf8] sm:$0xff]
        %v363 = vld [vmem:[#allocation2 + $0x108] sm:$0xff]
        %v364 = vld [vmem:[#allocation2 + $0x110] sm:$0xff]
        %v365 = vld [vmem:[#allocation2 + $0x120] sm:$0xff]
        %v366 = vld [vmem:[#allocation2 + $0x128] sm:$0xff]
        %v367 = vld [vmem:[#allocation2 + $0x138] sm:$0xff]
        %v368 = vld [vmem:[#allocation2 + $0x140] sm:$0xff]
        %v369 = vld [vmem:[#allocation2 + $0x150] sm:$0xff]
        %v370 = vld [vmem:[#allocation2 + $0x158] sm:$0xff]
        %v371 = vld [vmem:[#allocation2 + $0x168] sm:$0xff]
        %v372 = vld [vmem:[#allocation2 + $0x170] sm:$0xff]
        %v373 = vpack.c.bf16 %v341, %v341
        %v374 = vpack.c.bf16 %v342, %v342
        %v375 = vpack.c.bf16 %v343, %v343
        %v376 = vpack.c.bf16 %v344, %v344
        %v377 = vpack.c.bf16 %v345, %v345
        %v378 = vpack.c.bf16 %v346, %v346
        %v379 = vpack.c.bf16 %v347, %v347
        %v380 = vpack.c.bf16 %v348, %v348
        %v381 = vpack.c.bf16 %v349, %v349
        %v382 = vpack.c.bf16 %v350, %v350
        %v383 = vpack.c.bf16 %v351, %v351
        %v384 = vpack.c.bf16 %v352, %v352
        %v385 = vpack.c.bf16 %v353, %v353
        %v386 = vpack.c.bf16 %v354, %v354
        %v387 = vpack.c.bf16 %v355, %v355
        %v388 = vpack.c.bf16 %v356, %v356
        %v389 = vpack.c.bf16 %v357, %v357
        %v390 = vpack.c.bf16 %v358, %v358
        %v391 = vpack.c.bf16 %v359, %v359
        %v392 = vpack.c.bf16 %v360, %v360
        %v393 = vpack.c.bf16 %v361, %v361
        %v394 = vpack.c.bf16 %v362, %v362
        %v395 = vpack.c.bf16 %v363, %v363
        %v396 = vpack.c.bf16 %v364, %v364
        %v397 = vpack.c.bf16 %v365, %v365
        %v398 = vpack.c.bf16 %v366, %v366
        %v399 = vpack.c.bf16 %v367, %v367
        %v400 = vpack.c.bf16 %v368, %v368
        %v401 = vpack.c.bf16 %v369, %v369
        %v402 = vpack.c.bf16 %v370, %v370
        %v403 = vpack.c.bf16 %v371, %v371
        %v404 = vpack.c.bf16 %v372, %v372
        %vm405 = vcmask 257024
        %406 = vst.msk [vmem:[#allocation3] sm:$0xf] %vm405, %v373
        %407 = vst.msk [vmem:[#allocation3 + $0xc] sm:$0xf] %vm405, %v374
        %408 = vst.msk [vmem:[#allocation3 + $0x18] sm:$0xf] %vm405, %v375
        %409 = vst.msk [vmem:[#allocation3 + $0x24] sm:$0xf] %vm405, %v376
        %410 = vst.msk [vmem:[#allocation3 + $0x30] sm:$0xf] %vm405, %v377
        %411 = vst.msk [vmem:[#allocation3 + $0x3c] sm:$0xf] %vm405, %v378
        %412 = vst.msk [vmem:[#allocation3 + $0x48] sm:$0xf] %vm405, %v379
        %413 = vst.msk [vmem:[#allocation3 + $0x54] sm:$0xf] %vm405, %v380
        %414 = vst.msk [vmem:[#allocation3 + $0x60] sm:$0xf] %vm405, %v381
        %415 = vst.msk [vmem:[#allocation3 + $0x6c] sm:$0xf] %vm405, %v382
        %416 = vst.msk [vmem:[#allocation3 + $0x78] sm:$0xf] %vm405, %v383
        %417 = vst.msk [vmem:[#allocation3 + $0x84] sm:$0xf] %vm405, %v384
        %418 = vst.msk [vmem:[#allocation3 + $0x90] sm:$0xf] %vm405, %v385
        %419 = vst.msk [vmem:[#allocation3 + $0x9c] sm:$0xf] %vm405, %v386
        %420 = vst.msk [vmem:[#allocation3 + $0xa8] sm:$0xf] %vm405, %v387
        %421 = vst.msk [vmem:[#allocation3 + $0xb4] sm:$0xf] %vm405, %v388
        %422 = vst.msk [vmem:[#allocation3 + $0xc0] sm:$0xf] %vm405, %v389
        %423 = vst.msk [vmem:[#allocation3 + $0xcc] sm:$0xf] %vm405, %v390
        %424 = vst.msk [vmem:[#allocation3 + $0xd8] sm:$0xf] %vm405, %v391
        %425 = vst.msk [vmem:[#allocation3 + $0xe4] sm:$0xf] %vm405, %v392
        %426 = vst.msk [vmem:[#allocation3 + $0xf0] sm:$0xf] %vm405, %v393
        %427 = vst.msk [vmem:[#allocation3 + $0xfc] sm:$0xf] %vm405, %v394
        %428 = vst.msk [vmem:[#allocation3 + $0x108] sm:$0xf] %vm405, %v395
        %429 = vst.msk [vmem:[#allocation3 + $0x114] sm:$0xf] %vm405, %v396
        %430 = vst.msk [vmem:[#allocation3 + $0x120] sm:$0xf] %vm405, %v397
        %431 = vst.msk [vmem:[#allocation3 + $0x12c] sm:$0xf] %vm405, %v398
        %432 = vst.msk [vmem:[#allocation3 + $0x138] sm:$0xf] %vm405, %v399
        %433 = vst.msk [vmem:[#allocation3 + $0x144] sm:$0xf] %vm405, %v400
        %434 = vst.msk [vmem:[#allocation3 + $0x150] sm:$0xf] %vm405, %v401
        %435 = vst.msk [vmem:[#allocation3 + $0x15c] sm:$0xf] %vm405, %v402
        %436 = vst.msk [vmem:[#allocation3 + $0x168] sm:$0xf] %vm405, %v403
        %437 = vst.msk [vmem:[#allocation3 + $0x174] sm:$0xf] %vm405, %v404
        %v438 = vld [vmem:[#allocation2 + $0x1] sm:$0xff]
        %v439 = vld [vmem:[#allocation2 + $0x9] sm:$0xff]
        %v440 = vld [vmem:[#allocation2 + $0x19] sm:$0xff]
        %v441 = vld [vmem:[#allocation2 + $0x21] sm:$0xff]
        %v442 = vld [vmem:[#allocation2 + $0x31] sm:$0xff]
        %v443 = vld [vmem:[#allocation2 + $0x39] sm:$0xff]
        %v444 = vld [vmem:[#allocation2 + $0x49] sm:$0xff]
        %v445 = vld [vmem:[#allocation2 + $0x51] sm:$0xff]
        %v446 = vld [vmem:[#allocation2 + $0x61] sm:$0xff]
        %v447 = vld [vmem:[#allocation2 + $0x69] sm:$0xff]
        %v448 = vld [vmem:[#allocation2 + $0x79] sm:$0xff]
        %v449 = vld [vmem:[#allocation2 + $0x81] sm:$0xff]
        %v450 = vld [vmem:[#allocation2 + $0x91] sm:$0xff]
        %v451 = vld [vmem:[#allocation2 + $0x99] sm:$0xff]
        %v452 = vld [vmem:[#allocation2 + $0xa9] sm:$0xff]
        %v453 = vld [vmem:[#allocation2 + $0xb1] sm:$0xff]
        %v454 = vld [vmem:[#allocation2 + $0xc1] sm:$0xff]
        %v455 = vld [vmem:[#allocation2 + $0xc9] sm:$0xff]
        %v456 = vld [vmem:[#allocation2 + $0xd9] sm:$0xff]
        %v457 = vld [vmem:[#allocation2 + $0xe1] sm:$0xff]
        %v458 = vld [vmem:[#allocation2 + $0xf1] sm:$0xff]
        %v459 = vld [vmem:[#allocation2 + $0xf9] sm:$0xff]
        %v460 = vld [vmem:[#allocation2 + $0x109] sm:$0xff]
        %v461 = vld [vmem:[#allocation2 + $0x111] sm:$0xff]
        %v462 = vld [vmem:[#allocation2 + $0x121] sm:$0xff]
        %v463 = vld [vmem:[#allocation2 + $0x129] sm:$0xff]
        %v464 = vld [vmem:[#allocation2 + $0x139] sm:$0xff]
        %v465 = vld [vmem:[#allocation2 + $0x141] sm:$0xff]
        %v466 = vld [vmem:[#allocation2 + $0x151] sm:$0xff]
        %v467 = vld [vmem:[#allocation2 + $0x159] sm:$0xff]
        %v468 = vld [vmem:[#allocation2 + $0x169] sm:$0xff]
        %v469 = vld [vmem:[#allocation2 + $0x171] sm:$0xff]
        %v470 = vpack.c.bf16 %v438, %v438
        %v471 = vpack.c.bf16 %v439, %v439
        %v472 = vpack.c.bf16 %v440, %v440
        %v473 = vpack.c.bf16 %v441, %v441
        %v474 = vpack.c.bf16 %v442, %v442
        %v475 = vpack.c.bf16 %v443, %v443
        %v476 = vpack.c.bf16 %v444, %v444
        %v477 = vpack.c.bf16 %v445, %v445
        %v478 = vpack.c.bf16 %v446, %v446
        %v479 = vpack.c.bf16 %v447, %v447
        %v480 = vpack.c.bf16 %v448, %v448
        %v481 = vpack.c.bf16 %v449, %v449
        %v482 = vpack.c.bf16 %v450, %v450
        %v483 = vpack.c.bf16 %v451, %v451
        %v484 = vpack.c.bf16 %v452, %v452
        %v485 = vpack.c.bf16 %v453, %v453
        %v486 = vpack.c.bf16 %v454, %v454
        %v487 = vpack.c.bf16 %v455, %v455
        %v488 = vpack.c.bf16 %v456, %v456
        %v489 = vpack.c.bf16 %v457, %v457
        %v490 = vpack.c.bf16 %v458, %v458
        %v491 = vpack.c.bf16 %v459, %v459
        %v492 = vpack.c.bf16 %v460, %v460
        %v493 = vpack.c.bf16 %v461, %v461
        %v494 = vpack.c.bf16 %v462, %v462
        %v495 = vpack.c.bf16 %v463, %v463
        %v496 = vpack.c.bf16 %v464, %v464
        %v497 = vpack.c.bf16 %v465, %v465
        %v498 = vpack.c.bf16 %v466, %v466
        %v499 = vpack.c.bf16 %v467, %v467
        %v500 = vpack.c.bf16 %v468, %v468
        %v501 = vpack.c.bf16 %v469, %v469
        %534 = vrot.lane.b32.xlu0 %v470, 32
        %v535 = vpop.permute.xlu0 %534
        %536 = vrot.lane.b32.xlu0 %v471, 32
        %v537 = vpop.permute.xlu0 %536
        %538 = vrot.lane.b32.xlu0 %v472, 32
        %v539 = vpop.permute.xlu0 %538
        %540 = vrot.lane.b32.xlu0 %v473, 32
        %v541 = vpop.permute.xlu0 %540
        %542 = vrot.lane.b32.xlu0 %v474, 32
        %v543 = vpop.permute.xlu0 %542
        %544 = vrot.lane.b32.xlu0 %v475, 32
        %v545 = vpop.permute.xlu0 %544
        %546 = vrot.lane.b32.xlu0 %v476, 32
        %v547 = vpop.permute.xlu0 %546
        %548 = vrot.lane.b32.xlu0 %v477, 32
        %v549 = vpop.permute.xlu0 %548
        %550 = vrot.lane.b32.xlu0 %v478, 32
        %v551 = vpop.permute.xlu0 %550
        %552 = vrot.lane.b32.xlu0 %v479, 32
        %v553 = vpop.permute.xlu0 %552
        %554 = vrot.lane.b32.xlu0 %v480, 32
        %v555 = vpop.permute.xlu0 %554
        %556 = vrot.lane.b32.xlu0 %v481, 32
        %v557 = vpop.permute.xlu0 %556
        %558 = vrot.lane.b32.xlu0 %v482, 32
        %v559 = vpop.permute.xlu0 %558
        %560 = vrot.lane.b32.xlu0 %v483, 32
        %v561 = vpop.permute.xlu0 %560
        %562 = vrot.lane.b32.xlu0 %v484, 32
        %v563 = vpop.permute.xlu0 %562
        %564 = vrot.lane.b32.xlu0 %v485, 32
        %v565 = vpop.permute.xlu0 %564
        %566 = vrot.lane.b32.xlu0 %v486, 32
        %v567 = vpop.permute.xlu0 %566
        %568 = vrot.lane.b32.xlu0 %v487, 32
        %v569 = vpop.permute.xlu0 %568
        %570 = vrot.lane.b32.xlu0 %v488, 32
        %v571 = vpop.permute.xlu0 %570
        %572 = vrot.lane.b32.xlu0 %v489, 32
        %v573 = vpop.permute.xlu0 %572
        %574 = vrot.lane.b32.xlu0 %v490, 32
        %v575 = vpop.permute.xlu0 %574
        %576 = vrot.lane.b32.xlu0 %v491, 32
        %v577 = vpop.permute.xlu0 %576
        %578 = vrot.lane.b32.xlu0 %v492, 32
        %v579 = vpop.permute.xlu0 %578
        %580 = vrot.lane.b32.xlu0 %v493, 32
        %v581 = vpop.permute.xlu0 %580
        %582 = vrot.lane.b32.xlu0 %v494, 32
        %v583 = vpop.permute.xlu0 %582
        %584 = vrot.lane.b32.xlu0 %v495, 32
        %v585 = vpop.permute.xlu0 %584
        %586 = vrot.lane.b32.xlu0 %v496, 32
        %v587 = vpop.permute.xlu0 %586
        %588 = vrot.lane.b32.xlu0 %v497, 32
        %v589 = vpop.permute.xlu0 %588
        %590 = vrot.lane.b32.xlu0 %v498, 32
        %v591 = vpop.permute.xlu0 %590
        %592 = vrot.lane.b32.xlu0 %v499, 32
        %v593 = vpop.permute.xlu0 %592
        %594 = vrot.lane.b32.xlu0 %v500, 32
        %v595 = vpop.permute.xlu0 %594
        %596 = vrot.lane.b32.xlu0 %v501, 32
        %v597 = vpop.permute.xlu0 %596
        %vm630 = vcmask 519424
        %631 = vst.msk [vmem:[#allocation3] sm:$0xf] %vm630, %v535
        %632 = vst.msk [vmem:[#allocation3 + $0xc] sm:$0xf] %vm630, %v537
        %633 = vst.msk [vmem:[#allocation3 + $0x18] sm:$0xf] %vm630, %v539
        %634 = vst.msk [vmem:[#allocation3 + $0x24] sm:$0xf] %vm630, %v541
        %635 = vst.msk [vmem:[#allocation3 + $0x30] sm:$0xf] %vm630, %v543
        %636 = vst.msk [vmem:[#allocation3 + $0x3c] sm:$0xf] %vm630, %v545
        %637 = vst.msk [vmem:[#allocation3 + $0x48] sm:$0xf] %vm630, %v547
        %638 = vst.msk [vmem:[#allocation3 + $0x54] sm:$0xf] %vm630, %v549
        %639 = vst.msk [vmem:[#allocation3 + $0x60] sm:$0xf] %vm630, %v551
        %640 = vst.msk [vmem:[#allocation3 + $0x6c] sm:$0xf] %vm630, %v553
        %641 = vst.msk [vmem:[#allocation3 + $0x78] sm:$0xf] %vm630, %v555
        %642 = vst.msk [vmem:[#allocation3 + $0x84] sm:$0xf] %vm630, %v557
        %643 = vst.msk [vmem:[#allocation3 + $0x90] sm:$0xf] %vm630, %v559
        %644 = vst.msk [vmem:[#allocation3 + $0x9c] sm:$0xf] %vm630, %v561
        %645 = vst.msk [vmem:[#allocation3 + $0xa8] sm:$0xf] %vm630, %v563
        %646 = vst.msk [vmem:[#allocation3 + $0xb4] sm:$0xf] %vm630, %v565
        %647 = vst.msk [vmem:[#allocation3 + $0xc0] sm:$0xf] %vm630, %v567
        %648 = vst.msk [vmem:[#allocation3 + $0xcc] sm:$0xf] %vm630, %v569
        %649 = vst.msk [vmem:[#allocation3 + $0xd8] sm:$0xf] %vm630, %v571
        %650 = vst.msk [vmem:[#allocation3 + $0xe4] sm:$0xf] %vm630, %v573
        %651 = vst.msk [vmem:[#allocation3 + $0xf0] sm:$0xf] %vm630, %v575
        %652 = vst.msk [vmem:[#allocation3 + $0xfc] sm:$0xf] %vm630, %v577
        %653 = vst.msk [vmem:[#allocation3 + $0x108] sm:$0xf] %vm630, %v579
        %654 = vst.msk [vmem:[#allocation3 + $0x114] sm:$0xf] %vm630, %v581
        %655 = vst.msk [vmem:[#allocation3 + $0x120] sm:$0xf] %vm630, %v583
        %656 = vst.msk [vmem:[#allocation3 + $0x12c] sm:$0xf] %vm630, %v585
        %657 = vst.msk [vmem:[#allocation3 + $0x138] sm:$0xf] %vm630, %v587
        %658 = vst.msk [vmem:[#allocation3 + $0x144] sm:$0xf] %vm630, %v589
        %659 = vst.msk [vmem:[#allocation3 + $0x150] sm:$0xf] %vm630, %v591
        %660 = vst.msk [vmem:[#allocation3 + $0x15c] sm:$0xf] %vm630, %v593
        %661 = vst.msk [vmem:[#allocation3 + $0x168] sm:$0xf] %vm630, %v595
        %662 = vst.msk [vmem:[#allocation3 + $0x174] sm:$0xf] %vm630, %v597
        %v663 = vld [vmem:[#allocation2 + $0x2] sm:$0xff]
        %v664 = vld [vmem:[#allocation2 + $0xa] sm:$0xff]
        %v665 = vld [vmem:[#allocation2 + $0x1a] sm:$0xff]
        %v666 = vld [vmem:[#allocation2 + $0x22] sm:$0xff]
        %v667 = vld [vmem:[#allocation2 + $0x32] sm:$0xff]
        %v668 = vld [vmem:[#allocation2 + $0x3a] sm:$0xff]
        %v669 = vld [vmem:[#allocation2 + $0x4a] sm:$0xff]
        %v670 = vld [vmem:[#allocation2 + $0x52] sm:$0xff]
        %v671 = vld [vmem:[#allocation2 + $0x62] sm:$0xff]
        %v672 = vld [vmem:[#allocation2 + $0x6a] sm:$0xff]
        %v673 = vld [vmem:[#allocation2 + $0x7a] sm:$0xff]
        %v674 = vld [vmem:[#allocation2 + $0x82] sm:$0xff]
        %v675 = vld [vmem:[#allocation2 + $0x92] sm:$0xff]
        %v676 = vld [vmem:[#allocation2 + $0x9a] sm:$0xff]
        %v677 = vld [vmem:[#allocation2 + $0xaa] sm:$0xff]
        %v678 = vld [vmem:[#allocation2 + $0xb2] sm:$0xff]
        %v679 = vld [vmem:[#allocation2 + $0xc2] sm:$0xff]
        %v680 = vld [vmem:[#allocation2 + $0xca] sm:$0xff]
        %v681 = vld [vmem:[#allocation2 + $0xda] sm:$0xff]
        %v682 = vld [vmem:[#allocation2 + $0xe2] sm:$0xff]
        %v683 = vld [vmem:[#allocation2 + $0xf2] sm:$0xff]
        %v684 = vld [vmem:[#allocation2 + $0xfa] sm:$0xff]
        %v685 = vld [vmem:[#allocation2 + $0x10a] sm:$0xff]
        %v686 = vld [vmem:[#allocation2 + $0x112] sm:$0xff]
        %v687 = vld [vmem:[#allocation2 + $0x122] sm:$0xff]
        %v688 = vld [vmem:[#allocation2 + $0x12a] sm:$0xff]
        %v689 = vld [vmem:[#allocation2 + $0x13a] sm:$0xff]
        %v690 = vld [vmem:[#allocation2 + $0x142] sm:$0xff]
        %v691 = vld [vmem:[#allocation2 + $0x152] sm:$0xff]
        %v692 = vld [vmem:[#allocation2 + $0x15a] sm:$0xff]
        %v693 = vld [vmem:[#allocation2 + $0x16a] sm:$0xff]
        %v694 = vld [vmem:[#allocation2 + $0x172] sm:$0xff]
        %v695 = vpack.c.bf16 %v663, %v663
        %v696 = vpack.c.bf16 %v664, %v664
        %v697 = vpack.c.bf16 %v665, %v665
        %v698 = vpack.c.bf16 %v666, %v666
        %v699 = vpack.c.bf16 %v667, %v667
        %v700 = vpack.c.bf16 %v668, %v668
        %v701 = vpack.c.bf16 %v669, %v669
        %v702 = vpack.c.bf16 %v670, %v670
        %v703 = vpack.c.bf16 %v671, %v671
        %v704 = vpack.c.bf16 %v672, %v672
        %v705 = vpack.c.bf16 %v673, %v673
        %v706 = vpack.c.bf16 %v674, %v674
        %v707 = vpack.c.bf16 %v675, %v675
        %v708 = vpack.c.bf16 %v676, %v676
        %v709 = vpack.c.bf16 %v677, %v677
        %v710 = vpack.c.bf16 %v678, %v678
        %v711 = vpack.c.bf16 %v679, %v679
        %v712 = vpack.c.bf16 %v680, %v680
        %v713 = vpack.c.bf16 %v681, %v681
        %v714 = vpack.c.bf16 %v682, %v682
        %v715 = vpack.c.bf16 %v683, %v683
        %v716 = vpack.c.bf16 %v684, %v684
        %v717 = vpack.c.bf16 %v685, %v685
        %v718 = vpack.c.bf16 %v686, %v686
        %v719 = vpack.c.bf16 %v687, %v687
        %v720 = vpack.c.bf16 %v688, %v688
        %v721 = vpack.c.bf16 %v689, %v689
        %v722 = vpack.c.bf16 %v690, %v690
        %v723 = vpack.c.bf16 %v691, %v691
        %v724 = vpack.c.bf16 %v692, %v692
        %v725 = vpack.c.bf16 %v693, %v693
        %v726 = vpack.c.bf16 %v694, %v694
        %759 = vrot.lane.b32.xlu0 %v695, 64
        %v760 = vpop.permute.xlu0 %759
        %761 = vrot.lane.b32.xlu0 %v696, 64
        %v762 = vpop.permute.xlu0 %761
        %763 = vrot.lane.b32.xlu0 %v697, 64
        %v764 = vpop.permute.xlu0 %763
        %765 = vrot.lane.b32.xlu0 %v698, 64
        %v766 = vpop.permute.xlu0 %765
        %767 = vrot.lane.b32.xlu0 %v699, 64
        %v768 = vpop.permute.xlu0 %767
        %769 = vrot.lane.b32.xlu0 %v700, 64
        %v770 = vpop.permute.xlu0 %769
        %771 = vrot.lane.b32.xlu0 %v701, 64
        %v772 = vpop.permute.xlu0 %771
        %773 = vrot.lane.b32.xlu0 %v702, 64
        %v774 = vpop.permute.xlu0 %773
        %775 = vrot.lane.b32.xlu0 %v703, 64
        %v776 = vpop.permute.xlu0 %775
        %777 = vrot.lane.b32.xlu0 %v704, 64
        %v778 = vpop.permute.xlu0 %777
        %779 = vrot.lane.b32.xlu0 %v705, 64
        %v780 = vpop.permute.xlu0 %779
        %781 = vrot.lane.b32.xlu0 %v706, 64
        %v782 = vpop.permute.xlu0 %781
        %783 = vrot.lane.b32.xlu0 %v707, 64
        %v784 = vpop.permute.xlu0 %783
        %785 = vrot.lane.b32.xlu0 %v708, 64
        %v786 = vpop.permute.xlu0 %785
        %787 = vrot.lane.b32.xlu0 %v709, 64
        %v788 = vpop.permute.xlu0 %787
        %789 = vrot.lane.b32.xlu0 %v710, 64
        %v790 = vpop.permute.xlu0 %789
        %791 = vrot.lane.b32.xlu0 %v711, 64
        %v792 = vpop.permute.xlu0 %791
        %793 = vrot.lane.b32.xlu0 %v712, 64
        %v794 = vpop.permute.xlu0 %793
        %795 = vrot.lane.b32.xlu0 %v713, 64
        %v796 = vpop.permute.xlu0 %795
        %797 = vrot.lane.b32.xlu0 %v714, 64
        %v798 = vpop.permute.xlu0 %797
        %799 = vrot.lane.b32.xlu0 %v715, 64
        %v800 = vpop.permute.xlu0 %799
        %801 = vrot.lane.b32.xlu0 %v716, 64
        %v802 = vpop.permute.xlu0 %801
        %803 = vrot.lane.b32.xlu0 %v717, 64
        %v804 = vpop.permute.xlu0 %803
        %805 = vrot.lane.b32.xlu0 %v718, 64
        %v806 = vpop.permute.xlu0 %805
        %807 = vrot.lane.b32.xlu0 %v719, 64
        %v808 = vpop.permute.xlu0 %807
        %809 = vrot.lane.b32.xlu0 %v720, 64
        %v810 = vpop.permute.xlu0 %809
        %811 = vrot.lane.b32.xlu0 %v721, 64
        %v812 = vpop.permute.xlu0 %811
        %813 = vrot.lane.b32.xlu0 %v722, 64
        %v814 = vpop.permute.xlu0 %813
        %815 = vrot.lane.b32.xlu0 %v723, 64
        %v816 = vpop.permute.xlu0 %815
        %817 = vrot.lane.b32.xlu0 %v724, 64
        %v818 = vpop.permute.xlu0 %817
        %819 = vrot.lane.b32.xlu0 %v725, 64
        %v820 = vpop.permute.xlu0 %819
        %821 = vrot.lane.b32.xlu0 %v726, 64
        %v822 = vpop.permute.xlu0 %821
        %vm855 = vcmask 781824
        %856 = vst.msk [vmem:[#allocation3] sm:$0xf] %vm855, %v760
        %857 = vst.msk [vmem:[#allocation3 + $0xc] sm:$0xf] %vm855, %v762
        %858 = vst.msk [vmem:[#allocation3 + $0x18] sm:$0xf] %vm855, %v764
        %859 = vst.msk [vmem:[#allocation3 + $0x24] sm:$0xf] %vm855, %v766
        %860 = vst.msk [vmem:[#allocation3 + $0x30] sm:$0xf] %vm855, %v768
        %861 = vst.msk [vmem:[#allocation3 + $0x3c] sm:$0xf] %vm855, %v770
        %862 = vst.msk [vmem:[#allocation3 + $0x48] sm:$0xf] %vm855, %v772
        %863 = vst.msk [vmem:[#allocation3 + $0x54] sm:$0xf] %vm855, %v774
        %864 = vst.msk [vmem:[#allocation3 + $0x60] sm:$0xf] %vm855, %v776
        %865 = vst.msk [vmem:[#allocation3 + $0x6c] sm:$0xf] %vm855, %v778
        %866 = vst.msk [vmem:[#allocation3 + $0x78] sm:$0xf] %vm855, %v780
        %867 = vst.msk [vmem:[#allocation3 + $0x84] sm:$0xf] %vm855, %v782
        %868 = vst.msk [vmem:[#allocation3 + $0x90] sm:$0xf] %vm855, %v784
        %869 = vst.msk [vmem:[#allocation3 + $0x9c] sm:$0xf] %vm855, %v786
        %870 = vst.msk [vmem:[#allocation3 + $0xa8] sm:$0xf] %vm855, %v788
        %871 = vst.msk [vmem:[#allocation3 + $0xb4] sm:$0xf] %vm855, %v790
        %872 = vst.msk [vmem:[#allocation3 + $0xc0] sm:$0xf] %vm855, %v792
        %873 = vst.msk [vmem:[#allocation3 + $0xcc] sm:$0xf] %vm855, %v794
        %874 = vst.msk [vmem:[#allocation3 + $0xd8] sm:$0xf] %vm855, %v796
        %875 = vst.msk [vmem:[#allocation3 + $0xe4] sm:$0xf] %vm855, %v798
        %876 = vst.msk [vmem:[#allocation3 + $0xf0] sm:$0xf] %vm855, %v800
        %877 = vst.msk [vmem:[#allocation3 + $0xfc] sm:$0xf] %vm855, %v802
        %878 = vst.msk [vmem:[#allocation3 + $0x108] sm:$0xf] %vm855, %v804
        %879 = vst.msk [vmem:[#allocation3 + $0x114] sm:$0xf] %vm855, %v806
        %880 = vst.msk [vmem:[#allocation3 + $0x120] sm:$0xf] %vm855, %v808
        %881 = vst.msk [vmem:[#allocation3 + $0x12c] sm:$0xf] %vm855, %v810
        %882 = vst.msk [vmem:[#allocation3 + $0x138] sm:$0xf] %vm855, %v812
        %883 = vst.msk [vmem:[#allocation3 + $0x144] sm:$0xf] %vm855, %v814
        %884 = vst.msk [vmem:[#allocation3 + $0x150] sm:$0xf] %vm855, %v816
        %885 = vst.msk [vmem:[#allocation3 + $0x15c] sm:$0xf] %vm855, %v818
        %886 = vst.msk [vmem:[#allocation3 + $0x168] sm:$0xf] %vm855, %v820
        %887 = vst.msk [vmem:[#allocation3 + $0x174] sm:$0xf] %vm855, %v822
        %v888 = vld [vmem:[%s272] sm:$0xff]
        %v889 = vld [vmem:[%s272 + $0x8] sm:$0xff]
        %v890 = vld [vmem:[%s272 + $0x18] sm:$0xff]
        %v891 = vld [vmem:[%s272 + $0x20] sm:$0xff]
        %v892 = vld [vmem:[%s272 + $0x30] sm:$0xff]
        %v893 = vld [vmem:[%s272 + $0x38] sm:$0xff]
        %v894 = vld [vmem:[%s272 + $0x48] sm:$0xff]
        %v895 = vld [vmem:[%s272 + $0x50] sm:$0xff]
        %v896 = vld [vmem:[%s272 + $0x60] sm:$0xff]
        %v897 = vld [vmem:[%s272 + $0x68] sm:$0xff]
        %v898 = vld [vmem:[%s272 + $0x78] sm:$0xff]
        %v899 = vld [vmem:[%s272 + $0x80] sm:$0xff]
        %v900 = vld [vmem:[%s272 + $0x90] sm:$0xff]
        %v901 = vld [vmem:[%s272 + $0x98] sm:$0xff]
        %v902 = vld [vmem:[%s272 + $0xa8] sm:$0xff]
        %v903 = vld [vmem:[%s272 + $0xb0] sm:$0xff]
        %v904 = vld [vmem:[%s272 + $0xc0] sm:$0xff]
        %v905 = vld [vmem:[%s272 + $0xc8] sm:$0xff]
        %v906 = vld [vmem:[%s272 + $0xd8] sm:$0xff]
        %v907 = vld [vmem:[%s272 + $0xe0] sm:$0xff]
        %v908 = vld [vmem:[%s272 + $0xf0] sm:$0xff]
        %v909 = vld [vmem:[%s272 + $0xf8] sm:$0xff]
        %v910 = vld [vmem:[%s272 + $0x108] sm:$0xff]
        %v911 = vld [vmem:[%s272 + $0x110] sm:$0xff]
        %v912 = vld [vmem:[%s272 + $0x120] sm:$0xff]
        %v913 = vld [vmem:[%s272 + $0x128] sm:$0xff]
        %v914 = vld [vmem:[%s272 + $0x138] sm:$0xff]
        %v915 = vld [vmem:[%s272 + $0x140] sm:$0xff]
        %v916 = vld [vmem:[%s272 + $0x150] sm:$0xff]
        %v917 = vld [vmem:[%s272 + $0x158] sm:$0xff]
        %v918 = vld [vmem:[%s272 + $0x168] sm:$0xff]
        %v919 = vld [vmem:[%s272 + $0x170] sm:$0xff]
        %v920 = vpack.c.bf16 %v888, %v888
        %v921 = vpack.c.bf16 %v889, %v889
        %v922 = vpack.c.bf16 %v890, %v890
        %v923 = vpack.c.bf16 %v891, %v891
        %v924 = vpack.c.bf16 %v892, %v892
        %v925 = vpack.c.bf16 %v893, %v893
        %v926 = vpack.c.bf16 %v894, %v894
        %v927 = vpack.c.bf16 %v895, %v895
        %v928 = vpack.c.bf16 %v896, %v896
        %v929 = vpack.c.bf16 %v897, %v897
        %v930 = vpack.c.bf16 %v898, %v898
        %v931 = vpack.c.bf16 %v899, %v899
        %v932 = vpack.c.bf16 %v900, %v900
        %v933 = vpack.c.bf16 %v901, %v901
        %v934 = vpack.c.bf16 %v902, %v902
        %v935 = vpack.c.bf16 %v903, %v903
        %v936 = vpack.c.bf16 %v904, %v904
        %v937 = vpack.c.bf16 %v905, %v905
        %v938 = vpack.c.bf16 %v906, %v906
        %v939 = vpack.c.bf16 %v907, %v907
        %v940 = vpack.c.bf16 %v908, %v908
        %v941 = vpack.c.bf16 %v909, %v909
        %v942 = vpack.c.bf16 %v910, %v910
        %v943 = vpack.c.bf16 %v911, %v911
        %v944 = vpack.c.bf16 %v912, %v912
        %v945 = vpack.c.bf16 %v913, %v913
        %v946 = vpack.c.bf16 %v914, %v914
        %v947 = vpack.c.bf16 %v915, %v915
        %v948 = vpack.c.bf16 %v916, %v916
        %v949 = vpack.c.bf16 %v917, %v917
        %v950 = vpack.c.bf16 %v918, %v918
        %v951 = vpack.c.bf16 %v919, %v919
        %984 = vrot.lane.b32.xlu0 %v920, 96
        %v985 = vpop.permute.xlu0 %984
        %986 = vrot.lane.b32.xlu0 %v921, 96
        %v987 = vpop.permute.xlu0 %986
        %988 = vrot.lane.b32.xlu0 %v922, 96
        %v989 = vpop.permute.xlu0 %988
        %990 = vrot.lane.b32.xlu0 %v923, 96
        %v991 = vpop.permute.xlu0 %990
        %992 = vrot.lane.b32.xlu0 %v924, 96
        %v993 = vpop.permute.xlu0 %992
        %994 = vrot.lane.b32.xlu0 %v925, 96
        %v995 = vpop.permute.xlu0 %994
        %996 = vrot.lane.b32.xlu0 %v926, 96
        %v997 = vpop.permute.xlu0 %996
        %998 = vrot.lane.b32.xlu0 %v927, 96
        %v999 = vpop.permute.xlu0 %998
        %1000 = vrot.lane.b32.xlu0 %v928, 96
        %v1001 = vpop.permute.xlu0 %1000
        %1002 = vrot.lane.b32.xlu0 %v929, 96
        %v1003 = vpop.permute.xlu0 %1002
        %1004 = vrot.lane.b32.xlu0 %v930, 96
        %v1005 = vpop.permute.xlu0 %1004
        %1006 = vrot.lane.b32.xlu0 %v931, 96
        %v1007 = vpop.permute.xlu0 %1006
        %1008 = vrot.lane.b32.xlu0 %v932, 96
        %v1009 = vpop.permute.xlu0 %1008
        %1010 = vrot.lane.b32.xlu0 %v933, 96
        %v1011 = vpop.permute.xlu0 %1010
        %1012 = vrot.lane.b32.xlu0 %v934, 96
        %v1013 = vpop.permute.xlu0 %1012
        %1014 = vrot.lane.b32.xlu0 %v935, 96
        %v1015 = vpop.permute.xlu0 %1014
        %1016 = vrot.lane.b32.xlu0 %v936, 96
        %v1017 = vpop.permute.xlu0 %1016
        %1018 = vrot.lane.b32.xlu0 %v937, 96
        %v1019 = vpop.permute.xlu0 %1018
        %1020 = vrot.lane.b32.xlu0 %v938, 96
        %v1021 = vpop.permute.xlu0 %1020
        %1022 = vrot.lane.b32.xlu0 %v939, 96
        %v1023 = vpop.permute.xlu0 %1022
        %1024 = vrot.lane.b32.xlu0 %v940, 96
        %v1025 = vpop.permute.xlu0 %1024
        %1026 = vrot.lane.b32.xlu0 %v941, 96
        %v1027 = vpop.permute.xlu0 %1026
        %1028 = vrot.lane.b32.xlu0 %v942, 96
        %v1029 = vpop.permute.xlu0 %1028
        %1030 = vrot.lane.b32.xlu0 %v943, 96
        %v1031 = vpop.permute.xlu0 %1030
        %1032 = vrot.lane.b32.xlu0 %v944, 96
        %v1033 = vpop.permute.xlu0 %1032
        %1034 = vrot.lane.b32.xlu0 %v945, 96
        %v1035 = vpop.permute.xlu0 %1034
        %1036 = vrot.lane.b32.xlu0 %v946, 96
        %v1037 = vpop.permute.xlu0 %1036
        %1038 = vrot.lane.b32.xlu0 %v947, 96
        %v1039 = vpop.permute.xlu0 %1038
        %1040 = vrot.lane.b32.xlu0 %v948, 96
        %v1041 = vpop.permute.xlu0 %1040
        %1042 = vrot.lane.b32.xlu0 %v949, 96
        %v1043 = vpop.permute.xlu0 %1042
        %1044 = vrot.lane.b32.xlu0 %v950, 96
        %v1045 = vpop.permute.xlu0 %1044
        %1046 = vrot.lane.b32.xlu0 %v951, 96
        %v1047 = vpop.permute.xlu0 %1046
        %vm1080 = vcmask 1044224
        %1081 = vst.msk [vmem:[#allocation3] sm:$0xf] %vm1080, %v985
        %1082 = vst.msk [vmem:[#allocation3 + $0xc] sm:$0xf] %vm1080, %v987
        %1083 = vst.msk [vmem:[#allocation3 + $0x18] sm:$0xf] %vm1080, %v989
        %1084 = vst.msk [vmem:[#allocation3 + $0x24] sm:$0xf] %vm1080, %v991
        %1085 = vst.msk [vmem:[#allocation3 + $0x30] sm:$0xf] %vm1080, %v993
        %1086 = vst.msk [vmem:[#allocation3 + $0x3c] sm:$0xf] %vm1080, %v995
        %1087 = vst.msk [vmem:[#allocation3 + $0x48] sm:$0xf] %vm1080, %v997
        %1088 = vst.msk [vmem:[#allocation3 + $0x54] sm:$0xf] %vm1080, %v999
        %1089 = vst.msk [vmem:[#allocation3 + $0x60] sm:$0xf] %vm1080, %v1001
        %1090 = vst.msk [vmem:[#allocation3 + $0x6c] sm:$0xf] %vm1080, %v1003
        %1091 = vst.msk [vmem:[#allocation3 + $0x78] sm:$0xf] %vm1080, %v1005
        %1092 = vst.msk [vmem:[#allocation3 + $0x84] sm:$0xf] %vm1080, %v1007
        %1093 = vst.msk [vmem:[#allocation3 + $0x90] sm:$0xf] %vm1080, %v1009
        %1094 = vst.msk [vmem:[#allocation3 + $0x9c] sm:$0xf] %vm1080, %v1011
        %1095 = vst.msk [vmem:[#allocation3 + $0xa8] sm:$0xf] %vm1080, %v1013
        %1096 = vst.msk [vmem:[#allocation3 + $0xb4] sm:$0xf] %vm1080, %v1015
        %1097 = vst.msk [vmem:[#allocation3 + $0xc0] sm:$0xf] %vm1080, %v1017
        %1098 = vst.msk [vmem:[#allocation3 + $0xcc] sm:$0xf] %vm1080, %v1019
        %1099 = vst.msk [vmem:[#allocation3 + $0xd8] sm:$0xf] %vm1080, %v1021
        %1100 = vst.msk [vmem:[#allocation3 + $0xe4] sm:$0xf] %vm1080, %v1023
        %1101 = vst.msk [vmem:[#allocation3 + $0xf0] sm:$0xf] %vm1080, %v1025
        %1102 = vst.msk [vmem:[#allocation3 + $0xfc] sm:$0xf] %vm1080, %v1027
        %1103 = vst.msk [vmem:[#allocation3 + $0x108] sm:$0xf] %vm1080, %v1029
        %1104 = vst.msk [vmem:[#allocation3 + $0x114] sm:$0xf] %vm1080, %v1031
        %1105 = vst.msk [vmem:[#allocation3 + $0x120] sm:$0xf] %vm1080, %v1033
        %1106 = vst.msk [vmem:[#allocation3 + $0x12c] sm:$0xf] %vm1080, %v1035
        %1107 = vst.msk [vmem:[#allocation3 + $0x138] sm:$0xf] %vm1080, %v1037
        %1108 = vst.msk [vmem:[#allocation3 + $0x144] sm:$0xf] %vm1080, %v1039
        %1109 = vst.msk [vmem:[#allocation3 + $0x150] sm:$0xf] %vm1080, %v1041
        %1110 = vst.msk [vmem:[#allocation3 + $0x15c] sm:$0xf] %vm1080, %v1043
        %1111 = vst.msk [vmem:[#allocation3 + $0x168] sm:$0xf] %vm1080, %v1045
        %1112 = vst.msk [vmem:[#allocation3 + $0x174] sm:$0xf] %vm1080, %v1047
        %v1113 = vld [vmem:[%s272 + $0x1] sm:$0xff]
        %v1114 = vld [vmem:[%s272 + $0x9] sm:$0xff]
        %v1115 = vld [vmem:[%s272 + $0x19] sm:$0xff]
        %v1116 = vld [vmem:[%s272 + $0x21] sm:$0xff]
        %v1117 = vld [vmem:[%s272 + $0x31] sm:$0xff]
        %v1118 = vld [vmem:[%s272 + $0x39] sm:$0xff]
        %v1119 = vld [vmem:[%s272 + $0x49] sm:$0xff]
        %v1120 = vld [vmem:[%s272 + $0x51] sm:$0xff]
        %v1121 = vld [vmem:[%s272 + $0x61] sm:$0xff]
        %v1122 = vld [vmem:[%s272 + $0x69] sm:$0xff]
        %v1123 = vld [vmem:[%s272 + $0x79] sm:$0xff]
        %v1124 = vld [vmem:[%s272 + $0x81] sm:$0xff]
        %v1125 = vld [vmem:[%s272 + $0x91] sm:$0xff]
        %v1126 = vld [vmem:[%s272 + $0x99] sm:$0xff]
        %v1127 = vld [vmem:[%s272 + $0xa9] sm:$0xff]
        %v1128 = vld [vmem:[%s272 + $0xb1] sm:$0xff]
        %v1129 = vld [vmem:[%s272 + $0xc1] sm:$0xff]
        %v1130 = vld [vmem:[%s272 + $0xc9] sm:$0xff]
        %v1131 = vld [vmem:[%s272 + $0xd9] sm:$0xff]
        %v1132 = vld [vmem:[%s272 + $0xe1] sm:$0xff]
        %v1133 = vld [vmem:[%s272 + $0xf1] sm:$0xff]
        %v1134 = vld [vmem:[%s272 + $0xf9] sm:$0xff]
        %v1135 = vld [vmem:[%s272 + $0x109] sm:$0xff]
        %v1136 = vld [vmem:[%s272 + $0x111] sm:$0xff]
        %v1137 = vld [vmem:[%s272 + $0x121] sm:$0xff]
        %v1138 = vld [vmem:[%s272 + $0x129] sm:$0xff]
        %v1139 = vld [vmem:[%s272 + $0x139] sm:$0xff]
        %v1140 = vld [vmem:[%s272 + $0x141] sm:$0xff]
        %v1141 = vld [vmem:[%s272 + $0x151] sm:$0xff]
        %v1142 = vld [vmem:[%s272 + $0x159] sm:$0xff]
        %v1143 = vld [vmem:[%s272 + $0x169] sm:$0xff]
        %v1144 = vld [vmem:[%s272 + $0x171] sm:$0xff]
        %v1145 = vpack.c.bf16 %v1113, %v1113
        %v1146 = vpack.c.bf16 %v1114, %v1114
        %v1147 = vpack.c.bf16 %v1115, %v1115
        %v1148 = vpack.c.bf16 %v1116, %v1116
        %v1149 = vpack.c.bf16 %v1117, %v1117
        %v1150 = vpack.c.bf16 %v1118, %v1118
        %v1151 = vpack.c.bf16 %v1119, %v1119
        %v1152 = vpack.c.bf16 %v1120, %v1120
        %v1153 = vpack.c.bf16 %v1121, %v1121
        %v1154 = vpack.c.bf16 %v1122, %v1122
        %v1155 = vpack.c.bf16 %v1123, %v1123
        %v1156 = vpack.c.bf16 %v1124, %v1124
        %v1157 = vpack.c.bf16 %v1125, %v1125
        %v1158 = vpack.c.bf16 %v1126, %v1126
        %v1159 = vpack.c.bf16 %v1127, %v1127
        %v1160 = vpack.c.bf16 %v1128, %v1128
        %v1161 = vpack.c.bf16 %v1129, %v1129
        %v1162 = vpack.c.bf16 %v1130, %v1130
        %v1163 = vpack.c.bf16 %v1131, %v1131
        %v1164 = vpack.c.bf16 %v1132, %v1132
        %v1165 = vpack.c.bf16 %v1133, %v1133
        %v1166 = vpack.c.bf16 %v1134, %v1134
        %v1167 = vpack.c.bf16 %v1135, %v1135
        %v1168 = vpack.c.bf16 %v1136, %v1136
        %v1169 = vpack.c.bf16 %v1137, %v1137
        %v1170 = vpack.c.bf16 %v1138, %v1138
        %v1171 = vpack.c.bf16 %v1139, %v1139
        %v1172 = vpack.c.bf16 %v1140, %v1140
        %v1173 = vpack.c.bf16 %v1141, %v1141
        %v1174 = vpack.c.bf16 %v1142, %v1142
        %v1175 = vpack.c.bf16 %v1143, %v1143
        %v1176 = vpack.c.bf16 %v1144, %v1144
        %1177 = vst.msk [vmem:[#allocation3 + $0x4] sm:$0xf] %vm405, %v1145
        %1178 = vst.msk [vmem:[#allocation3 + $0x10] sm:$0xf] %vm405, %v1146
        %1179 = vst.msk [vmem:[#allocation3 + $0x1c] sm:$0xf] %vm405, %v1147
        %1180 = vst.msk [vmem:[#allocation3 + $0x28] sm:$0xf] %vm405, %v1148
        %1181 = vst.msk [vmem:[#allocation3 + $0x34] sm:$0xf] %vm405, %v1149
        %1182 = vst.msk [vmem:[#allocation3 + $0x40] sm:$0xf] %vm405, %v1150
        %1183 = vst.msk [vmem:[#allocation3 + $0x4c] sm:$0xf] %vm405, %v1151
        %1184 = vst.msk [vmem:[#allocation3 + $0x58] sm:$0xf] %vm405, %v1152
        %1185 = vst.msk [vmem:[#allocation3 + $0x64] sm:$0xf] %vm405, %v1153
        %1186 = vst.msk [vmem:[#allocation3 + $0x70] sm:$0xf] %vm405, %v1154
        %1187 = vst.msk [vmem:[#allocation3 + $0x7c] sm:$0xf] %vm405, %v1155
        %1188 = vst.msk [vmem:[#allocation3 + $0x88] sm:$0xf] %vm405, %v1156
        %1189 = vst.msk [vmem:[#allocation3 + $0x94] sm:$0xf] %vm405, %v1157
        %1190 = vst.msk [vmem:[#allocation3 + $0xa0] sm:$0xf] %vm405, %v1158
        %1191 = vst.msk [vmem:[#allocation3 + $0xac] sm:$0xf] %vm405, %v1159
        %1192 = vst.msk [vmem:[#allocation3 + $0xb8] sm:$0xf] %vm405, %v1160
        %1193 = vst.msk [vmem:[#allocation3 + $0xc4] sm:$0xf] %vm405, %v1161
        %1194 = vst.msk [vmem:[#allocation3 + $0xd0] sm:$0xf] %vm405, %v1162
        %1195 = vst.msk [vmem:[#allocation3 + $0xdc] sm:$0xf] %vm405, %v1163
        %1196 = vst.msk [vmem:[#allocation3 + $0xe8] sm:$0xf] %vm405, %v1164
        %1197 = vst.msk [vmem:[#allocation3 + $0xf4] sm:$0xf] %vm405, %v1165
        %1198 = vst.msk [vmem:[#allocation3 + $0x100] sm:$0xf] %vm405, %v1166
        %1199 = vst.msk [vmem:[#allocation3 + $0x10c] sm:$0xf] %vm405, %v1167
        %1200 = vst.msk [vmem:[#allocation3 + $0x118] sm:$0xf] %vm405, %v1168
        %1201 = vst.msk [vmem:[#allocation3 + $0x124] sm:$0xf] %vm405, %v1169
        %1202 = vst.msk [vmem:[#allocation3 + $0x130] sm:$0xf] %vm405, %v1170
        %1203 = vst.msk [vmem:[#allocation3 + $0x13c] sm:$0xf] %vm405, %v1171
        %1204 = vst.msk [vmem:[#allocation3 + $0x148] sm:$0xf] %vm405, %v1172
        %1205 = vst.msk [vmem:[#allocation3 + $0x154] sm:$0xf] %vm405, %v1173
        %1206 = vst.msk [vmem:[#allocation3 + $0x160] sm:$0xf] %vm405, %v1174
        %1207 = vst.msk [vmem:[#allocation3 + $0x16c] sm:$0xf] %vm405, %v1175
        %1208 = vst.msk [vmem:[#allocation3 + $0x178] sm:$0xf] %vm405, %v1176
        %v1209 = vld [vmem:[%s272 + $0x2] sm:$0xff]
        %v1210 = vld [vmem:[%s272 + $0xa] sm:$0xff]
        %v1211 = vld [vmem:[%s272 + $0x1a] sm:$0xff]
        %v1212 = vld [vmem:[%s272 + $0x22] sm:$0xff]
        %v1213 = vld [vmem:[%s272 + $0x32] sm:$0xff]
        %v1214 = vld [vmem:[%s272 + $0x3a] sm:$0xff]
        %v1215 = vld [vmem:[%s272 + $0x4a] sm:$0xff]
        %v1216 = vld [vmem:[%s272 + $0x52] sm:$0xff]
        %v1217 = vld [vmem:[%s272 + $0x62] sm:$0xff]
        %v1218 = vld [vmem:[%s272 + $0x6a] sm:$0xff]
        %v1219 = vld [vmem:[%s272 + $0x7a] sm:$0xff]
        %v1220 = vld [vmem:[%s272 + $0x82] sm:$0xff]
        %v1221 = vld [vmem:[%s272 + $0x92] sm:$0xff]
        %v1222 = vld [vmem:[%s272 + $0x9a] sm:$0xff]
        %v1223 = vld [vmem:[%s272 + $0xaa] sm:$0xff]
        %v1224 = vld [vmem:[%s272 + $0xb2] sm:$0xff]
        %v1225 = vld [vmem:[%s272 + $0xc2] sm:$0xff]
        %v1226 = vld [vmem:[%s272 + $0xca] sm:$0xff]
        %v1227 = vld [vmem:[%s272 + $0xda] sm:$0xff]
        %v1228 = vld [vmem:[%s272 + $0xe2] sm:$0xff]
        %v1229 = vld [vmem:[%s272 + $0xf2] sm:$0xff]
        %v1230 = vld [vmem:[%s272 + $0xfa] sm:$0xff]
        %v1231 = vld [vmem:[%s272 + $0x10a] sm:$0xff]
        %v1232 = vld [vmem:[%s272 + $0x112] sm:$0xff]
        %v1233 = vld [vmem:[%s272 + $0x122] sm:$0xff]
        %v1234 = vld [vmem:[%s272 + $0x12a] sm:$0xff]
        %v1235 = vld [vmem:[%s272 + $0x13a] sm:$0xff]
        %v1236 = vld [vmem:[%s272 + $0x142] sm:$0xff]
        %v1237 = vld [vmem:[%s272 + $0x152] sm:$0xff]
        %v1238 = vld [vmem:[%s272 + $0x15a] sm:$0xff]
        %v1239 = vld [vmem:[%s272 + $0x16a] sm:$0xff]
        %v1240 = vld [vmem:[%s272 + $0x172] sm:$0xff]
        %v1241 = vpack.c.bf16 %v1209, %v1209
        %v1242 = vpack.c.bf16 %v1210, %v1210
        %v1243 = vpack.c.bf16 %v1211, %v1211
        %v1244 = vpack.c.bf16 %v1212, %v1212
        %v1245 = vpack.c.bf16 %v1213, %v1213
        %v1246 = vpack.c.bf16 %v1214, %v1214
        %v1247 = vpack.c.bf16 %v1215, %v1215
        %v1248 = vpack.c.bf16 %v1216, %v1216
        %v1249 = vpack.c.bf16 %v1217, %v1217
        %v1250 = vpack.c.bf16 %v1218, %v1218
        %v1251 = vpack.c.bf16 %v1219, %v1219
        %v1252 = vpack.c.bf16 %v1220, %v1220
        %v1253 = vpack.c.bf16 %v1221, %v1221
        %v1254 = vpack.c.bf16 %v1222, %v1222
        %v1255 = vpack.c.bf16 %v1223, %v1223
        %v1256 = vpack.c.bf16 %v1224, %v1224
        %v1257 = vpack.c.bf16 %v1225, %v1225
        %v1258 = vpack.c.bf16 %v1226, %v1226
        %v1259 = vpack.c.bf16 %v1227, %v1227
        %v1260 = vpack.c.bf16 %v1228, %v1228
        %v1261 = vpack.c.bf16 %v1229, %v1229
        %v1262 = vpack.c.bf16 %v1230, %v1230
        %v1263 = vpack.c.bf16 %v1231, %v1231
        %v1264 = vpack.c.bf16 %v1232, %v1232
        %v1265 = vpack.c.bf16 %v1233, %v1233
        %v1266 = vpack.c.bf16 %v1234, %v1234
        %v1267 = vpack.c.bf16 %v1235, %v1235
        %v1268 = vpack.c.bf16 %v1236, %v1236
        %v1269 = vpack.c.bf16 %v1237, %v1237
        %v1270 = vpack.c.bf16 %v1238, %v1238
        %v1271 = vpack.c.bf16 %v1239, %v1239
        %v1272 = vpack.c.bf16 %v1240, %v1240
        %1305 = vrot.lane.b32.xlu0 %v1241, 32
        %v1306 = vpop.permute.xlu0 %1305
        %1307 = vrot.lane.b32.xlu0 %v1242, 32
        %v1308 = vpop.permute.xlu0 %1307
        %1309 = vrot.lane.b32.xlu0 %v1243, 32
        %v1310 = vpop.permute.xlu0 %1309
        %1311 = vrot.lane.b32.xlu0 %v1244, 32
        %v1312 = vpop.permute.xlu0 %1311
        %1313 = vrot.lane.b32.xlu0 %v1245, 32
        %v1314 = vpop.permute.xlu0 %1313
        %1315 = vrot.lane.b32.xlu0 %v1246, 32
        %v1316 = vpop.permute.xlu0 %1315
        %1317 = vrot.lane.b32.xlu0 %v1247, 32
        %v1318 = vpop.permute.xlu0 %1317
        %1319 = vrot.lane.b32.xlu0 %v1248, 32
        %v1320 = vpop.permute.xlu0 %1319
        %1321 = vrot.lane.b32.xlu0 %v1249, 32
        %v1322 = vpop.permute.xlu0 %1321
        %1323 = vrot.lane.b32.xlu0 %v1250, 32
        %v1324 = vpop.permute.xlu0 %1323
        %1325 = vrot.lane.b32.xlu0 %v1251, 32
        %v1326 = vpop.permute.xlu0 %1325
        %1327 = vrot.lane.b32.xlu0 %v1252, 32
        %v1328 = vpop.permute.xlu0 %1327
        %1329 = vrot.lane.b32.xlu0 %v1253, 32
        %v1330 = vpop.permute.xlu0 %1329
        %1331 = vrot.lane.b32.xlu0 %v1254, 32
        %v1332 = vpop.permute.xlu0 %1331
        %1333 = vrot.lane.b32.xlu0 %v1255, 32
        %v1334 = vpop.permute.xlu0 %1333
        %1335 = vrot.lane.b32.xlu0 %v1256, 32
        %v1336 = vpop.permute.xlu0 %1335
        %1337 = vrot.lane.b32.xlu0 %v1257, 32
        %v1338 = vpop.permute.xlu0 %1337
        %1339 = vrot.lane.b32.xlu0 %v1258, 32
        %v1340 = vpop.permute.xlu0 %1339
        %1341 = vrot.lane.b32.xlu0 %v1259, 32
        %v1342 = vpop.permute.xlu0 %1341
        %1343 = vrot.lane.b32.xlu0 %v1260, 32
        %v1344 = vpop.permute.xlu0 %1343
        %1345 = vrot.lane.b32.xlu0 %v1261, 32
        %v1346 = vpop.permute.xlu0 %1345
        %1347 = vrot.lane.b32.xlu0 %v1262, 32
        %v1348 = vpop.permute.xlu0 %1347
        %1349 = vrot.lane.b32.xlu0 %v1263, 32
        %v1350 = vpop.permute.xlu0 %1349
        %1351 = vrot.lane.b32.xlu0 %v1264, 32
        %v1352 = vpop.permute.xlu0 %1351
        %1353 = vrot.lane.b32.xlu0 %v1265, 32
        %v1354 = vpop.permute.xlu0 %1353
        %1355 = vrot.lane.b32.xlu0 %v1266, 32
        %v1356 = vpop.permute.xlu0 %1355
        %1357 = vrot.lane.b32.xlu0 %v1267, 32
        %v1358 = vpop.permute.xlu0 %1357
        %1359 = vrot.lane.b32.xlu0 %v1268, 32
        %v1360 = vpop.permute.xlu0 %1359
        %1361 = vrot.lane.b32.xlu0 %v1269, 32
        %v1362 = vpop.permute.xlu0 %1361
        %1363 = vrot.lane.b32.xlu0 %v1270, 32
        %v1364 = vpop.permute.xlu0 %1363
        %1365 = vrot.lane.b32.xlu0 %v1271, 32
        %v1366 = vpop.permute.xlu0 %1365
        %1367 = vrot.lane.b32.xlu0 %v1272, 32
        %v1368 = vpop.permute.xlu0 %1367
        %1401 = vst.msk [vmem:[#allocation3 + $0x4] sm:$0xf] %vm630, %v1306
        %1402 = vst.msk [vmem:[#allocation3 + $0x10] sm:$0xf] %vm630, %v1308
        %1403 = vst.msk [vmem:[#allocation3 + $0x1c] sm:$0xf] %vm630, %v1310
        %1404 = vst.msk [vmem:[#allocation3 + $0x28] sm:$0xf] %vm630, %v1312
        %1405 = vst.msk [vmem:[#allocation3 + $0x34] sm:$0xf] %vm630, %v1314
        %1406 = vst.msk [vmem:[#allocation3 + $0x40] sm:$0xf] %vm630, %v1316
        %1407 = vst.msk [vmem:[#allocation3 + $0x4c] sm:$0xf] %vm630, %v1318
        %1408 = vst.msk [vmem:[#allocation3 + $0x58] sm:$0xf] %vm630, %v1320
        %1409 = vst.msk [vmem:[#allocation3 + $0x64] sm:$0xf] %vm630, %v1322
        %1410 = vst.msk [vmem:[#allocation3 + $0x70] sm:$0xf] %vm630, %v1324
        %1411 = vst.msk [vmem:[#allocation3 + $0x7c] sm:$0xf] %vm630, %v1326
        %1412 = vst.msk [vmem:[#allocation3 + $0x88] sm:$0xf] %vm630, %v1328
        %1413 = vst.msk [vmem:[#allocation3 + $0x94] sm:$0xf] %vm630, %v1330
        %1414 = vst.msk [vmem:[#allocation3 + $0xa0] sm:$0xf] %vm630, %v1332
        %1415 = vst.msk [vmem:[#allocation3 + $0xac] sm:$0xf] %vm630, %v1334
        %1416 = vst.msk [vmem:[#allocation3 + $0xb8] sm:$0xf] %vm630, %v1336
        %1417 = vst.msk [vmem:[#allocation3 + $0xc4] sm:$0xf] %vm630, %v1338
        %1418 = vst.msk [vmem:[#allocation3 + $0xd0] sm:$0xf] %vm630, %v1340
        %1419 = vst.msk [vmem:[#allocation3 + $0xdc] sm:$0xf] %vm630, %v1342
        %1420 = vst.msk [vmem:[#allocation3 + $0xe8] sm:$0xf] %vm630, %v1344
        %1421 = vst.msk [vmem:[#allocation3 + $0xf4] sm:$0xf] %vm630, %v1346
        %1422 = vst.msk [vmem:[#allocation3 + $0x100] sm:$0xf] %vm630, %v1348
        %1423 = vst.msk [vmem:[#allocation3 + $0x10c] sm:$0xf] %vm630, %v1350
        %1424 = vst.msk [vmem:[#allocation3 + $0x118] sm:$0xf] %vm630, %v1352
        %1425 = vst.msk [vmem:[#allocation3 + $0x124] sm:$0xf] %vm630, %v1354
        %1426 = vst.msk [vmem:[#allocation3 + $0x130] sm:$0xf] %vm630, %v1356
        %1427 = vst.msk [vmem:[#allocation3 + $0x13c] sm:$0xf] %vm630, %v1358
        %1428 = vst.msk [vmem:[#allocation3 + $0x148] sm:$0xf] %vm630, %v1360
        %1429 = vst.msk [vmem:[#allocation3 + $0x154] sm:$0xf] %vm630, %v1362
        %1430 = vst.msk [vmem:[#allocation3 + $0x160] sm:$0xf] %vm630, %v1364
        %1431 = vst.msk [vmem:[#allocation3 + $0x16c] sm:$0xf] %vm630, %v1366
        %1432 = vst.msk [vmem:[#allocation3 + $0x178] sm:$0xf] %vm630, %v1368
        %s1433 = scalar_lea.vmem [#allocation2], 48
        %v1434 = vld [vmem:[%s1433] sm:$0xff]
        %v1435 = vld [vmem:[%s1433 + $0x8] sm:$0xff]
        %v1436 = vld [vmem:[%s1433 + $0x18] sm:$0xff]
        %v1437 = vld [vmem:[%s1433 + $0x20] sm:$0xff]
        %v1438 = vld [vmem:[%s1433 + $0x30] sm:$0xff]
        %v1439 = vld [vmem:[%s1433 + $0x38] sm:$0xff]
        %v1440 = vld [vmem:[%s1433 + $0x48] sm:$0xff]
        %v1441 = vld [vmem:[%s1433 + $0x50] sm:$0xff]
        %v1442 = vld [vmem:[%s1433 + $0x60] sm:$0xff]
        %v1443 = vld [vmem:[%s1433 + $0x68] sm:$0xff]
        %v1444 = vld [vmem:[%s1433 + $0x78] sm:$0xff]
        %v1445 = vld [vmem:[%s1433 + $0x80] sm:$0xff]
        %v1446 = vld [vmem:[%s1433 + $0x90] sm:$0xff]
        %v1447 = vld [vmem:[%s1433 + $0x98] sm:$0xff]
        %v1448 = vld [vmem:[%s1433 + $0xa8] sm:$0xff]
        %v1449 = vld [vmem:[%s1433 + $0xb0] sm:$0xff]
        %v1450 = vld [vmem:[%s1433 + $0xc0] sm:$0xff]
        %v1451 = vld [vmem:[%s1433 + $0xc8] sm:$0xff]
        %v1452 = vld [vmem:[%s1433 + $0xd8] sm:$0xff]
        %v1453 = vld [vmem:[%s1433 + $0xe0] sm:$0xff]
        %v1454 = vld [vmem:[%s1433 + $0xf0] sm:$0xff]
        %v1455 = vld [vmem:[%s1433 + $0xf8] sm:$0xff]
        %v1456 = vld [vmem:[%s1433 + $0x108] sm:$0xff]
        %v1457 = vld [vmem:[%s1433 + $0x110] sm:$0xff]
        %v1458 = vld [vmem:[%s1433 + $0x120] sm:$0xff]
        %v1459 = vld [vmem:[%s1433 + $0x128] sm:$0xff]
        %v1460 = vld [vmem:[%s1433 + $0x138] sm:$0xff]
        %v1461 = vld [vmem:[%s1433 + $0x140] sm:$0xff]
        %v1462 = vld [vmem:[%s1433 + $0x150] sm:$0xff]
        %v1463 = vld [vmem:[%s1433 + $0x158] sm:$0xff]
        %v1464 = vld [vmem:[%s1433 + $0x168] sm:$0xff]
        %v1465 = vld [vmem:[%s1433 + $0x170] sm:$0xff]
        %v1466 = vpack.c.bf16 %v1434, %v1434
        %v1467 = vpack.c.bf16 %v1435, %v1435
        %v1468 = vpack.c.bf16 %v1436, %v1436
        %v1469 = vpack.c.bf16 %v1437, %v1437
        %v1470 = vpack.c.bf16 %v1438, %v1438
        %v1471 = vpack.c.bf16 %v1439, %v1439
        %v1472 = vpack.c.bf16 %v1440, %v1440
        %v1473 = vpack.c.bf16 %v1441, %v1441
        %v1474 = vpack.c.bf16 %v1442, %v1442
        %v1475 = vpack.c.bf16 %v1443, %v1443
        %v1476 = vpack.c.bf16 %v1444, %v1444
        %v1477 = vpack.c.bf16 %v1445, %v1445
        %v1478 = vpack.c.bf16 %v1446, %v1446
        %v1479 = vpack.c.bf16 %v1447, %v1447
        %v1480 = vpack.c.bf16 %v1448, %v1448
        %v1481 = vpack.c.bf16 %v1449, %v1449
        %v1482 = vpack.c.bf16 %v1450, %v1450
        %v1483 = vpack.c.bf16 %v1451, %v1451
        %v1484 = vpack.c.bf16 %v1452, %v1452
        %v1485 = vpack.c.bf16 %v1453, %v1453
        %v1486 = vpack.c.bf16 %v1454, %v1454
        %v1487 = vpack.c.bf16 %v1455, %v1455
        %v1488 = vpack.c.bf16 %v1456, %v1456
        %v1489 = vpack.c.bf16 %v1457, %v1457
        %v1490 = vpack.c.bf16 %v1458, %v1458
        %v1491 = vpack.c.bf16 %v1459, %v1459
        %v1492 = vpack.c.bf16 %v1460, %v1460
        %v1493 = vpack.c.bf16 %v1461, %v1461
        %v1494 = vpack.c.bf16 %v1462, %v1462
        %v1495 = vpack.c.bf16 %v1463, %v1463
        %v1496 = vpack.c.bf16 %v1464, %v1464
        %v1497 = vpack.c.bf16 %v1465, %v1465
        %1530 = vrot.lane.b32.xlu0 %v1466, 64
        %v1531 = vpop.permute.xlu0 %1530
        %1532 = vrot.lane.b32.xlu0 %v1467, 64
        %v1533 = vpop.permute.xlu0 %1532
        %1534 = vrot.lane.b32.xlu0 %v1468, 64
        %v1535 = vpop.permute.xlu0 %1534
        %1536 = vrot.lane.b32.xlu0 %v1469, 64
        %v1537 = vpop.permute.xlu0 %1536
        %1538 = vrot.lane.b32.xlu0 %v1470, 64
        %v1539 = vpop.permute.xlu0 %1538
        %1540 = vrot.lane.b32.xlu0 %v1471, 64
        %v1541 = vpop.permute.xlu0 %1540
        %1542 = vrot.lane.b32.xlu0 %v1472, 64
        %v1543 = vpop.permute.xlu0 %1542
        %1544 = vrot.lane.b32.xlu0 %v1473, 64
        %v1545 = vpop.permute.xlu0 %1544
        %1546 = vrot.lane.b32.xlu0 %v1474, 64
        %v1547 = vpop.permute.xlu0 %1546
        %1548 = vrot.lane.b32.xlu0 %v1475, 64
        %v1549 = vpop.permute.xlu0 %1548
        %1550 = vrot.lane.b32.xlu0 %v1476, 64
        %v1551 = vpop.permute.xlu0 %1550
        %1552 = vrot.lane.b32.xlu0 %v1477, 64
        %v1553 = vpop.permute.xlu0 %1552
        %1554 = vrot.lane.b32.xlu0 %v1478, 64
        %v1555 = vpop.permute.xlu0 %1554
        %1556 = vrot.lane.b32.xlu0 %v1479, 64
        %v1557 = vpop.permute.xlu0 %1556
        %1558 = vrot.lane.b32.xlu0 %v1480, 64
        %v1559 = vpop.permute.xlu0 %1558
        %1560 = vrot.lane.b32.xlu0 %v1481, 64
        %v1561 = vpop.permute.xlu0 %1560
        %1562 = vrot.lane.b32.xlu0 %v1482, 64
        %v1563 = vpop.permute.xlu0 %1562
        %1564 = vrot.lane.b32.xlu0 %v1483, 64
        %v1565 = vpop.permute.xlu0 %1564
        %1566 = vrot.lane.b32.xlu0 %v1484, 64
        %v1567 = vpop.permute.xlu0 %1566
        %1568 = vrot.lane.b32.xlu0 %v1485, 64
        %v1569 = vpop.permute.xlu0 %1568
        %1570 = vrot.lane.b32.xlu0 %v1486, 64
        %v1571 = vpop.permute.xlu0 %1570
        %1572 = vrot.lane.b32.xlu0 %v1487, 64
        %v1573 = vpop.permute.xlu0 %1572
        %1574 = vrot.lane.b32.xlu0 %v1488, 64
        %v1575 = vpop.permute.xlu0 %1574
        %1576 = vrot.lane.b32.xlu0 %v1489, 64
        %v1577 = vpop.permute.xlu0 %1576
        %1578 = vrot.lane.b32.xlu0 %v1490, 64
        %v1579 = vpop.permute.xlu0 %1578
        %1580 = vrot.lane.b32.xlu0 %v1491, 64
        %v1581 = vpop.permute.xlu0 %1580
        %1582 = vrot.lane.b32.xlu0 %v1492, 64
        %v1583 = vpop.permute.xlu0 %1582
        %1584 = vrot.lane.b32.xlu0 %v1493, 64
        %v1585 = vpop.permute.xlu0 %1584
        %1586 = vrot.lane.b32.xlu0 %v1494, 64
        %v1587 = vpop.permute.xlu0 %1586
        %1588 = vrot.lane.b32.xlu0 %v1495, 64
        %v1589 = vpop.permute.xlu0 %1588
        %1590 = vrot.lane.b32.xlu0 %v1496, 64
        %v1591 = vpop.permute.xlu0 %1590
        %1592 = vrot.lane.b32.xlu0 %v1497, 64
        %v1593 = vpop.permute.xlu0 %1592
        %1626 = vst.msk [vmem:[#allocation3 + $0x4] sm:$0xf] %vm855, %v1531
        %1627 = vst.msk [vmem:[#allocation3 + $0x10] sm:$0xf] %vm855, %v1533
        %1628 = vst.msk [vmem:[#allocation3 + $0x1c] sm:$0xf] %vm855, %v1535
        %1629 = vst.msk [vmem:[#allocation3 + $0x28] sm:$0xf] %vm855, %v1537
        %1630 = vst.msk [vmem:[#allocation3 + $0x34] sm:$0xf] %vm855, %v1539
        %1631 = vst.msk [vmem:[#allocation3 + $0x40] sm:$0xf] %vm855, %v1541
        %1632 = vst.msk [vmem:[#allocation3 + $0x4c] sm:$0xf] %vm855, %v1543
        %1633 = vst.msk [vmem:[#allocation3 + $0x58] sm:$0xf] %vm855, %v1545
        %1634 = vst.msk [vmem:[#allocation3 + $0x64] sm:$0xf] %vm855, %v1547
        %1635 = vst.msk [vmem:[#allocation3 + $0x70] sm:$0xf] %vm855, %v1549
        %1636 = vst.msk [vmem:[#allocation3 + $0x7c] sm:$0xf] %vm855, %v1551
        %1637 = vst.msk [vmem:[#allocation3 + $0x88] sm:$0xf] %vm855, %v1553
        %1638 = vst.msk [vmem:[#allocation3 + $0x94] sm:$0xf] %vm855, %v1555
        %1639 = vst.msk [vmem:[#allocation3 + $0xa0] sm:$0xf] %vm855, %v1557
        %1640 = vst.msk [vmem:[#allocation3 + $0xac] sm:$0xf] %vm855, %v1559
        %1641 = vst.msk [vmem:[#allocation3 + $0xb8] sm:$0xf] %vm855, %v1561
        %1642 = vst.msk [vmem:[#allocation3 + $0xc4] sm:$0xf] %vm855, %v1563
        %1643 = vst.msk [vmem:[#allocation3 + $0xd0] sm:$0xf] %vm855, %v1565
        %1644 = vst.msk [vmem:[#allocation3 + $0xdc] sm:$0xf] %vm855, %v1567
        %1645 = vst.msk [vmem:[#allocation3 + $0xe8] sm:$0xf] %vm855, %v1569
        %1646 = vst.msk [vmem:[#allocation3 + $0xf4] sm:$0xf] %vm855, %v1571
        %1647 = vst.msk [vmem:[#allocation3 + $0x100] sm:$0xf] %vm855, %v1573
        %1648 = vst.msk [vmem:[#allocation3 + $0x10c] sm:$0xf] %vm855, %v1575
        %1649 = vst.msk [vmem:[#allocation3 + $0x118] sm:$0xf] %vm855, %v1577
        %1650 = vst.msk [vmem:[#allocation3 + $0x124] sm:$0xf] %vm855, %v1579
        %1651 = vst.msk [vmem:[#allocation3 + $0x130] sm:$0xf] %vm855, %v1581
        %1652 = vst.msk [vmem:[#allocation3 + $0x13c] sm:$0xf] %vm855, %v1583
        %1653 = vst.msk [vmem:[#allocation3 + $0x148] sm:$0xf] %vm855, %v1585
        %1654 = vst.msk [vmem:[#allocation3 + $0x154] sm:$0xf] %vm855, %v1587
        %1655 = vst.msk [vmem:[#allocation3 + $0x160] sm:$0xf] %vm855, %v1589
        %1656 = vst.msk [vmem:[#allocation3 + $0x16c] sm:$0xf] %vm855, %v1591
        %1657 = vst.msk [vmem:[#allocation3 + $0x178] sm:$0xf] %vm855, %v1593
        %v1658 = vld [vmem:[%s1433 + $0x1] sm:$0xff]
        %v1659 = vld [vmem:[%s1433 + $0x9] sm:$0xff]
        %v1660 = vld [vmem:[%s1433 + $0x19] sm:$0xff]
        %v1661 = vld [vmem:[%s1433 + $0x21] sm:$0xff]
        %v1662 = vld [vmem:[%s1433 + $0x31] sm:$0xff]
        %v1663 = vld [vmem:[%s1433 + $0x39] sm:$0xff]
        %v1664 = vld [vmem:[%s1433 + $0x49] sm:$0xff]
        %v1665 = vld [vmem:[%s1433 + $0x51] sm:$0xff]
        %v1666 = vld [vmem:[%s1433 + $0x61] sm:$0xff]
        %v1667 = vld [vmem:[%s1433 + $0x69] sm:$0xff]
        %v1668 = vld [vmem:[%s1433 + $0x79] sm:$0xff]
        %v1669 = vld [vmem:[%s1433 + $0x81] sm:$0xff]
        %v1670 = vld [vmem:[%s1433 + $0x91] sm:$0xff]
        %v1671 = vld [vmem:[%s1433 + $0x99] sm:$0xff]
        %v1672 = vld [vmem:[%s1433 + $0xa9] sm:$0xff]
        %v1673 = vld [vmem:[%s1433 + $0xb1] sm:$0xff]
        %v1674 = vld [vmem:[%s1433 + $0xc1] sm:$0xff]
        %v1675 = vld [vmem:[%s1433 + $0xc9] sm:$0xff]
        %v1676 = vld [vmem:[%s1433 + $0xd9] sm:$0xff]
        %v1677 = vld [vmem:[%s1433 + $0xe1] sm:$0xff]
        %v1678 = vld [vmem:[%s1433 + $0xf1] sm:$0xff]
        %v1679 = vld [vmem:[%s1433 + $0xf9] sm:$0xff]
        %v1680 = vld [vmem:[%s1433 + $0x109] sm:$0xff]
        %v1681 = vld [vmem:[%s1433 + $0x111] sm:$0xff]
        %v1682 = vld [vmem:[%s1433 + $0x121] sm:$0xff]
        %v1683 = vld [vmem:[%s1433 + $0x129] sm:$0xff]
        %v1684 = vld [vmem:[%s1433 + $0x139] sm:$0xff]
        %v1685 = vld [vmem:[%s1433 + $0x141] sm:$0xff]
        %v1686 = vld [vmem:[%s1433 + $0x151] sm:$0xff]
        %v1687 = vld [vmem:[%s1433 + $0x159] sm:$0xff]
        %v1688 = vld [vmem:[%s1433 + $0x169] sm:$0xff]
        %v1689 = vld [vmem:[%s1433 + $0x171] sm:$0xff]
        %v1690 = vpack.c.bf16 %v1658, %v1658
        %v1691 = vpack.c.bf16 %v1659, %v1659
        %v1692 = vpack.c.bf16 %v1660, %v1660
        %v1693 = vpack.c.bf16 %v1661, %v1661
        %v1694 = vpack.c.bf16 %v1662, %v1662
        %v1695 = vpack.c.bf16 %v1663, %v1663
        %v1696 = vpack.c.bf16 %v1664, %v1664
        %v1697 = vpack.c.bf16 %v1665, %v1665
        %v1698 = vpack.c.bf16 %v1666, %v1666
        %v1699 = vpack.c.bf16 %v1667, %v1667
        %v1700 = vpack.c.bf16 %v1668, %v1668
        %v1701 = vpack.c.bf16 %v1669, %v1669
        %v1702 = vpack.c.bf16 %v1670, %v1670
        %v1703 = vpack.c.bf16 %v1671, %v1671
        %v1704 = vpack.c.bf16 %v1672, %v1672
        %v1705 = vpack.c.bf16 %v1673, %v1673
        %v1706 = vpack.c.bf16 %v1674, %v1674
        %v1707 = vpack.c.bf16 %v1675, %v1675
        %v1708 = vpack.c.bf16 %v1676, %v1676
        %v1709 = vpack.c.bf16 %v1677, %v1677
        %v1710 = vpack.c.bf16 %v1678, %v1678
        %v1711 = vpack.c.bf16 %v1679, %v1679
        %v1712 = vpack.c.bf16 %v1680, %v1680
        %v1713 = vpack.c.bf16 %v1681, %v1681
        %v1714 = vpack.c.bf16 %v1682, %v1682
        %v1715 = vpack.c.bf16 %v1683, %v1683
        %v1716 = vpack.c.bf16 %v1684, %v1684
        %v1717 = vpack.c.bf16 %v1685, %v1685
        %v1718 = vpack.c.bf16 %v1686, %v1686
        %v1719 = vpack.c.bf16 %v1687, %v1687
        %v1720 = vpack.c.bf16 %v1688, %v1688
        %v1721 = vpack.c.bf16 %v1689, %v1689
        %1754 = vrot.lane.b32.xlu0 %v1690, 96
        %v1755 = vpop.permute.xlu0 %1754
        %1756 = vrot.lane.b32.xlu0 %v1691, 96
        %v1757 = vpop.permute.xlu0 %1756
        %1758 = vrot.lane.b32.xlu0 %v1692, 96
        %v1759 = vpop.permute.xlu0 %1758
        %1760 = vrot.lane.b32.xlu0 %v1693, 96
        %v1761 = vpop.permute.xlu0 %1760
        %1762 = vrot.lane.b32.xlu0 %v1694, 96
        %v1763 = vpop.permute.xlu0 %1762
        %1764 = vrot.lane.b32.xlu0 %v1695, 96
        %v1765 = vpop.permute.xlu0 %1764
        %1766 = vrot.lane.b32.xlu0 %v1696, 96
        %v1767 = vpop.permute.xlu0 %1766
        %1768 = vrot.lane.b32.xlu0 %v1697, 96
        %v1769 = vpop.permute.xlu0 %1768
        %1770 = vrot.lane.b32.xlu0 %v1698, 96
        %v1771 = vpop.permute.xlu0 %1770
        %1772 = vrot.lane.b32.xlu0 %v1699, 96
        %v1773 = vpop.permute.xlu0 %1772
        %1774 = vrot.lane.b32.xlu0 %v1700, 96
        %v1775 = vpop.permute.xlu0 %1774
        %1776 = vrot.lane.b32.xlu0 %v1701, 96
        %v1777 = vpop.permute.xlu0 %1776
        %1778 = vrot.lane.b32.xlu0 %v1702, 96
        %v1779 = vpop.permute.xlu0 %1778
        %1780 = vrot.lane.b32.xlu0 %v1703, 96
        %v1781 = vpop.permute.xlu0 %1780
        %1782 = vrot.lane.b32.xlu0 %v1704, 96
        %v1783 = vpop.permute.xlu0 %1782
        %1784 = vrot.lane.b32.xlu0 %v1705, 96
        %v1785 = vpop.permute.xlu0 %1784
        %1786 = vrot.lane.b32.xlu0 %v1706, 96
        %v1787 = vpop.permute.xlu0 %1786
        %1788 = vrot.lane.b32.xlu0 %v1707, 96
        %v1789 = vpop.permute.xlu0 %1788
        %1790 = vrot.lane.b32.xlu0 %v1708, 96
        %v1791 = vpop.permute.xlu0 %1790
        %1792 = vrot.lane.b32.xlu0 %v1709, 96
        %v1793 = vpop.permute.xlu0 %1792
        %1794 = vrot.lane.b32.xlu0 %v1710, 96
        %v1795 = vpop.permute.xlu0 %1794
        %1796 = vrot.lane.b32.xlu0 %v1711, 96
        %v1797 = vpop.permute.xlu0 %1796
        %1798 = vrot.lane.b32.xlu0 %v1712, 96
        %v1799 = vpop.permute.xlu0 %1798
        %1800 = vrot.lane.b32.xlu0 %v1713, 96
        %v1801 = vpop.permute.xlu0 %1800
        %1802 = vrot.lane.b32.xlu0 %v1714, 96
        %v1803 = vpop.permute.xlu0 %1802
        %1804 = vrot.lane.b32.xlu0 %v1715, 96
        %v1805 = vpop.permute.xlu0 %1804
        %1806 = vrot.lane.b32.xlu0 %v1716, 96
        %v1807 = vpop.permute.xlu0 %1806
        %1808 = vrot.lane.b32.xlu0 %v1717, 96
        %v1809 = vpop.permute.xlu0 %1808
        %1810 = vrot.lane.b32.xlu0 %v1718, 96
        %v1811 = vpop.permute.xlu0 %1810
        %1812 = vrot.lane.b32.xlu0 %v1719, 96
        %v1813 = vpop.permute.xlu0 %1812
        %1814 = vrot.lane.b32.xlu0 %v1720, 96
        %v1815 = vpop.permute.xlu0 %1814
        %1816 = vrot.lane.b32.xlu0 %v1721, 96
        %v1817 = vpop.permute.xlu0 %1816
        %1850 = vst.msk [vmem:[#allocation3 + $0x4] sm:$0xf] %vm1080, %v1755
        %1851 = vst.msk [vmem:[#allocation3 + $0x10] sm:$0xf] %vm1080, %v1757
        %1852 = vst.msk [vmem:[#allocation3 + $0x1c] sm:$0xf] %vm1080, %v1759
        %1853 = vst.msk [vmem:[#allocation3 + $0x28] sm:$0xf] %vm1080, %v1761
        %1854 = vst.msk [vmem:[#allocation3 + $0x34] sm:$0xf] %vm1080, %v1763
        %1855 = vst.msk [vmem:[#allocation3 + $0x40] sm:$0xf] %vm1080, %v1765
        %1856 = vst.msk [vmem:[#allocation3 + $0x4c] sm:$0xf] %vm1080, %v1767
        %1857 = vst.msk [vmem:[#allocation3 + $0x58] sm:$0xf] %vm1080, %v1769
        %1858 = vst.msk [vmem:[#allocation3 + $0x64] sm:$0xf] %vm1080, %v1771
        %1859 = vst.msk [vmem:[#allocation3 + $0x70] sm:$0xf] %vm1080, %v1773
        %1860 = vst.msk [vmem:[#allocation3 + $0x7c] sm:$0xf] %vm1080, %v1775
        %1861 = vst.msk [vmem:[#allocation3 + $0x88] sm:$0xf] %vm1080, %v1777
        %1862 = vst.msk [vmem:[#allocation3 + $0x94] sm:$0xf] %vm1080, %v1779
        %1863 = vst.msk [vmem:[#allocation3 + $0xa0] sm:$0xf] %vm1080, %v1781
        %1864 = vst.msk [vmem:[#allocation3 + $0xac] sm:$0xf] %vm1080, %v1783
        %1865 = vst.msk [vmem:[#allocation3 + $0xb8] sm:$0xf] %vm1080, %v1785
        %1866 = vst.msk [vmem:[#allocation3 + $0xc4] sm:$0xf] %vm1080, %v1787
        %1867 = vst.msk [vmem:[#allocation3 + $0xd0] sm:$0xf] %vm1080, %v1789
        %1868 = vst.msk [vmem:[#allocation3 + $0xdc] sm:$0xf] %vm1080, %v1791
        %1869 = vst.msk [vmem:[#allocation3 + $0xe8] sm:$0xf] %vm1080, %v1793
        %1870 = vst.msk [vmem:[#allocation3 + $0xf4] sm:$0xf] %vm1080, %v1795
        %1871 = vst.msk [vmem:[#allocation3 + $0x100] sm:$0xf] %vm1080, %v1797
        %1872 = vst.msk [vmem:[#allocation3 + $0x10c] sm:$0xf] %vm1080, %v1799
        %1873 = vst.msk [vmem:[#allocation3 + $0x118] sm:$0xf] %vm1080, %v1801
        %1874 = vst.msk [vmem:[#allocation3 + $0x124] sm:$0xf] %vm1080, %v1803
        %1875 = vst.msk [vmem:[#allocation3 + $0x130] sm:$0xf] %vm1080, %v1805
        %1876 = vst.msk [vmem:[#allocation3 + $0x13c] sm:$0xf] %vm1080, %v1807
        %1877 = vst.msk [vmem:[#allocation3 + $0x148] sm:$0xf] %vm1080, %v1809
        %1878 = vst.msk [vmem:[#allocation3 + $0x154] sm:$0xf] %vm1080, %v1811
        %1879 = vst.msk [vmem:[#allocation3 + $0x160] sm:$0xf] %vm1080, %v1813
        %1880 = vst.msk [vmem:[#allocation3 + $0x16c] sm:$0xf] %vm1080, %v1815
        %1881 = vst.msk [vmem:[#allocation3 + $0x178] sm:$0xf] %vm1080, %v1817
        %v1882 = vld [vmem:[%s1433 + $0x2] sm:$0xff]
        %v1883 = vld [vmem:[%s1433 + $0xa] sm:$0xff]
        %v1884 = vld [vmem:[%s1433 + $0x1a] sm:$0xff]
        %v1885 = vld [vmem:[%s1433 + $0x22] sm:$0xff]
        %v1886 = vld [vmem:[%s1433 + $0x32] sm:$0xff]
        %v1887 = vld [vmem:[%s1433 + $0x3a] sm:$0xff]
        %v1888 = vld [vmem:[%s1433 + $0x4a] sm:$0xff]
        %v1889 = vld [vmem:[%s1433 + $0x52] sm:$0xff]
        %v1890 = vld [vmem:[%s1433 + $0x62] sm:$0xff]
        %v1891 = vld [vmem:[%s1433 + $0x6a] sm:$0xff]
        %v1892 = vld [vmem:[%s1433 + $0x7a] sm:$0xff]
        %v1893 = vld [vmem:[%s1433 + $0x82] sm:$0xff]
        %v1894 = vld [vmem:[%s1433 + $0x92] sm:$0xff]
        %v1895 = vld [vmem:[%s1433 + $0x9a] sm:$0xff]
        %v1896 = vld [vmem:[%s1433 + $0xaa] sm:$0xff]
        %v1897 = vld [vmem:[%s1433 + $0xb2] sm:$0xff]
        %v1898 = vld [vmem:[%s1433 + $0xc2] sm:$0xff]
        %v1899 = vld [vmem:[%s1433 + $0xca] sm:$0xff]
        %v1900 = vld [vmem:[%s1433 + $0xda] sm:$0xff]
        %v1901 = vld [vmem:[%s1433 + $0xe2] sm:$0xff]
        %v1902 = vld [vmem:[%s1433 + $0xf2] sm:$0xff]
        %v1903 = vld [vmem:[%s1433 + $0xfa] sm:$0xff]
        %v1904 = vld [vmem:[%s1433 + $0x10a] sm:$0xff]
        %v1905 = vld [vmem:[%s1433 + $0x112] sm:$0xff]
        %v1906 = vld [vmem:[%s1433 + $0x122] sm:$0xff]
        %v1907 = vld [vmem:[%s1433 + $0x12a] sm:$0xff]
        %v1908 = vld [vmem:[%s1433 + $0x13a] sm:$0xff]
        %v1909 = vld [vmem:[%s1433 + $0x142] sm:$0xff]
        %v1910 = vld [vmem:[%s1433 + $0x152] sm:$0xff]
        %v1911 = vld [vmem:[%s1433 + $0x15a] sm:$0xff]
        %v1912 = vld [vmem:[%s1433 + $0x16a] sm:$0xff]
        %v1913 = vld [vmem:[%s1433 + $0x172] sm:$0xff]
        %v1914 = vpack.c.bf16 %v1882, %v1882
        %v1915 = vpack.c.bf16 %v1883, %v1883
        %v1916 = vpack.c.bf16 %v1884, %v1884
        %v1917 = vpack.c.bf16 %v1885, %v1885
        %v1918 = vpack.c.bf16 %v1886, %v1886
        %v1919 = vpack.c.bf16 %v1887, %v1887
        %v1920 = vpack.c.bf16 %v1888, %v1888
        %v1921 = vpack.c.bf16 %v1889, %v1889
        %v1922 = vpack.c.bf16 %v1890, %v1890
        %v1923 = vpack.c.bf16 %v1891, %v1891
        %v1924 = vpack.c.bf16 %v1892, %v1892
        %v1925 = vpack.c.bf16 %v1893, %v1893
        %v1926 = vpack.c.bf16 %v1894, %v1894
        %v1927 = vpack.c.bf16 %v1895, %v1895
        %v1928 = vpack.c.bf16 %v1896, %v1896
        %v1929 = vpack.c.bf16 %v1897, %v1897
        %v1930 = vpack.c.bf16 %v1898, %v1898
        %v1931 = vpack.c.bf16 %v1899, %v1899
        %v1932 = vpack.c.bf16 %v1900, %v1900
        %v1933 = vpack.c.bf16 %v1901, %v1901
        %v1934 = vpack.c.bf16 %v1902, %v1902
        %v1935 = vpack.c.bf16 %v1903, %v1903
        %v1936 = vpack.c.bf16 %v1904, %v1904
        %v1937 = vpack.c.bf16 %v1905, %v1905
        %v1938 = vpack.c.bf16 %v1906, %v1906
        %v1939 = vpack.c.bf16 %v1907, %v1907
        %v1940 = vpack.c.bf16 %v1908, %v1908
        %v1941 = vpack.c.bf16 %v1909, %v1909
        %v1942 = vpack.c.bf16 %v1910, %v1910
        %v1943 = vpack.c.bf16 %v1911, %v1911
        %v1944 = vpack.c.bf16 %v1912, %v1912
        %v1945 = vpack.c.bf16 %v1913, %v1913
        %1946 = vst.msk [vmem:[#allocation3 + $0x8] sm:$0xf] %vm405, %v1914
        %1947 = vst.msk [vmem:[#allocation3 + $0x14] sm:$0xf] %vm405, %v1915
        %1948 = vst.msk [vmem:[#allocation3 + $0x20] sm:$0xf] %vm405, %v1916
        %1949 = vst.msk [vmem:[#allocation3 + $0x2c] sm:$0xf] %vm405, %v1917
        %1950 = vst.msk [vmem:[#allocation3 + $0x38] sm:$0xf] %vm405, %v1918
        %1951 = vst.msk [vmem:[#allocation3 + $0x44] sm:$0xf] %vm405, %v1919
        %1952 = vst.msk [vmem:[#allocation3 + $0x50] sm:$0xf] %vm405, %v1920
        %1953 = vst.msk [vmem:[#allocation3 + $0x5c] sm:$0xf] %vm405, %v1921
        %1954 = vst.msk [vmem:[#allocation3 + $0x68] sm:$0xf] %vm405, %v1922
        %1955 = vst.msk [vmem:[#allocation3 + $0x74] sm:$0xf] %vm405, %v1923
        %1956 = vst.msk [vmem:[#allocation3 + $0x80] sm:$0xf] %vm405, %v1924
        %1957 = vst.msk [vmem:[#allocation3 + $0x8c] sm:$0xf] %vm405, %v1925
        %1958 = vst.msk [vmem:[#allocation3 + $0x98] sm:$0xf] %vm405, %v1926
        %1959 = vst.msk [vmem:[#allocation3 + $0xa4] sm:$0xf] %vm405, %v1927
        %1960 = vst.msk [vmem:[#allocation3 + $0xb0] sm:$0xf] %vm405, %v1928
        %1961 = vst.msk [vmem:[#allocation3 + $0xbc] sm:$0xf] %vm405, %v1929
        %1962 = vst.msk [vmem:[#allocation3 + $0xc8] sm:$0xf] %vm405, %v1930
        %1963 = vst.msk [vmem:[#allocation3 + $0xd4] sm:$0xf] %vm405, %v1931
        %1964 = vst.msk [vmem:[#allocation3 + $0xe0] sm:$0xf] %vm405, %v1932
        %1965 = vst.msk [vmem:[#allocation3 + $0xec] sm:$0xf] %vm405, %v1933
        %1966 = vst.msk [vmem:[#allocation3 + $0xf8] sm:$0xf] %vm405, %v1934
        %1967 = vst.msk [vmem:[#allocation3 + $0x104] sm:$0xf] %vm405, %v1935
        %1968 = vst.msk [vmem:[#allocation3 + $0x110] sm:$0xf] %vm405, %v1936
        %1969 = vst.msk [vmem:[#allocation3 + $0x11c] sm:$0xf] %vm405, %v1937
        %1970 = vst.msk [vmem:[#allocation3 + $0x128] sm:$0xf] %vm405, %v1938
        %1971 = vst.msk [vmem:[#allocation3 + $0x134] sm:$0xf] %vm405, %v1939
        %1972 = vst.msk [vmem:[#allocation3 + $0x140] sm:$0xf] %vm405, %v1940
        %1973 = vst.msk [vmem:[#allocation3 + $0x14c] sm:$0xf] %vm405, %v1941
        %1974 = vst.msk [vmem:[#allocation3 + $0x158] sm:$0xf] %vm405, %v1942
        %1975 = vst.msk [vmem:[#allocation3 + $0x164] sm:$0xf] %vm405, %v1943
        %1976 = vst.msk [vmem:[#allocation3 + $0x170] sm:$0xf] %vm405, %v1944
        %1977 = vst.msk [vmem:[#allocation3 + $0x17c] sm:$0xf] %vm405, %v1945
        %v1978 = vld [vmem:[#allocation3] sm:$0xff]
        %v1979 = vld [vmem:[#allocation3 + $0x8] sm:$0xf]
        %v1980 = vld [vmem:[#allocation3 + $0xc] sm:$0xff]
        %v1981 = vld [vmem:[#allocation3 + $0x14] sm:$0xf]
        %v1982 = vld [vmem:[#allocation3 + $0x18] sm:$0xff]
        %v1983 = vld [vmem:[#allocation3 + $0x20] sm:$0xf]
        %v1984 = vld [vmem:[#allocation3 + $0x24] sm:$0xff]
        %v1985 = vld [vmem:[#allocation3 + $0x2c] sm:$0xf]
        %v1986 = vld [vmem:[#allocation3 + $0x30] sm:$0xff]
        %v1987 = vld [vmem:[#allocation3 + $0x38] sm:$0xf]
        %v1988 = vld [vmem:[#allocation3 + $0x3c] sm:$0xff]
        %v1989 = vld [vmem:[#allocation3 + $0x44] sm:$0xf]
        %v1990 = vld [vmem:[#allocation3 + $0x48] sm:$0xff]
        %v1991 = vld [vmem:[#allocation3 + $0x50] sm:$0xf]
        %v1992 = vld [vmem:[#allocation3 + $0x54] sm:$0xff]
        %v1993 = vld [vmem:[#allocation3 + $0x5c] sm:$0xf]
        %v1994 = vld [vmem:[#allocation3 + $0x60] sm:$0xff]
        %v1995 = vld [vmem:[#allocation3 + $0x68] sm:$0xf]
        %v1996 = vld [vmem:[#allocation3 + $0x6c] sm:$0xff]
        %v1997 = vld [vmem:[#allocation3 + $0x74] sm:$0xf]
        %v1998 = vld [vmem:[#allocation3 + $0x78] sm:$0xff]
        %v1999 = vld [vmem:[#allocation3 + $0x80] sm:$0xf]
        %v2000 = vld [vmem:[#allocation3 + $0x84] sm:$0xff]
        %v2001 = vld [vmem:[#allocation3 + $0x8c] sm:$0xf]
        %v2002 = vld [vmem:[#allocation3 + $0x90] sm:$0xff]
        %v2003 = vld [vmem:[#allocation3 + $0x98] sm:$0xf]
        %v2004 = vld [vmem:[#allocation3 + $0x9c] sm:$0xff]
        %v2005 = vld [vmem:[#allocation3 + $0xa4] sm:$0xf]
        %v2006 = vld [vmem:[#allocation3 + $0xa8] sm:$0xff]
        %v2007 = vld [vmem:[#allocation3 + $0xb0] sm:$0xf]
        %v2008 = vld [vmem:[#allocation3 + $0xb4] sm:$0xff]
        %v2009 = vld [vmem:[#allocation3 + $0xbc] sm:$0xf]
        %v2010 = vld [vmem:[#allocation3 + $0xc0] sm:$0xff]
        %v2011 = vld [vmem:[#allocation3 + $0xc8] sm:$0xf]
        %v2012 = vld [vmem:[#allocation3 + $0xcc] sm:$0xff]
        %v2013 = vld [vmem:[#allocation3 + $0xd4] sm:$0xf]
        %v2014 = vld [vmem:[#allocation3 + $0xd8] sm:$0xff]
        %v2015 = vld [vmem:[#allocation3 + $0xe0] sm:$0xf]
        %v2016 = vld [vmem:[#allocation3 + $0xe4] sm:$0xff]
        %v2017 = vld [vmem:[#allocation3 + $0xec] sm:$0xf]
        %v2018 = vld [vmem:[#allocation3 + $0xf0] sm:$0xff]
        %v2019 = vld [vmem:[#allocation3 + $0xf8] sm:$0xf]
        %v2020 = vld [vmem:[#allocation3 + $0xfc] sm:$0xff]
        %v2021 = vld [vmem:[#allocation3 + $0x104] sm:$0xf]
        %v2022 = vld [vmem:[#allocation3 + $0x108] sm:$0xff]
        %v2023 = vld [vmem:[#allocation3 + $0x110] sm:$0xf]
        %v2024 = vld [vmem:[#allocation3 + $0x114] sm:$0xff]
        %v2025 = vld [vmem:[#allocation3 + $0x11c] sm:$0xf]
        %v2026 = vld [vmem:[#allocation3 + $0x120] sm:$0xff]
        %v2027 = vld [vmem:[#allocation3 + $0x128] sm:$0xf]
        %v2028 = vld [vmem:[#allocation3 + $0x12c] sm:$0xff]
        %v2029 = vld [vmem:[#allocation3 + $0x134] sm:$0xf]
        %v2030 = vld [vmem:[#allocation3 + $0x138] sm:$0xff]
        %v2031 = vld [vmem:[#allocation3 + $0x140] sm:$0xf]
        %v2032 = vld [vmem:[#allocation3 + $0x144] sm:$0xff]
        %v2033 = vld [vmem:[#allocation3 + $0x14c] sm:$0xf]
        %v2034 = vld [vmem:[#allocation3 + $0x150] sm:$0xff]
        %v2035 = vld [vmem:[#allocation3 + $0x158] sm:$0xf]
        %v2036 = vld [vmem:[#allocation3 + $0x15c] sm:$0xff]
        %v2037 = vld [vmem:[#allocation3 + $0x164] sm:$0xf]
        %v2038 = vld [vmem:[#allocation3 + $0x168] sm:$0xff]
        %v2039 = vld [vmem:[#allocation3 + $0x170] sm:$0xf]
        %v2040 = vld [vmem:[#allocation3 + $0x174] sm:$0xff]
        %v2041 = vld [vmem:[#allocation3 + $0x17c] sm:$0xf]
        %v2106 = vunpack.c.l.b16 %v1978
        %v2107 = vunpack.c.h.b16 %v1978
        %v2108 = vunpack.c.l.b16 %v1979
        %v2109 = vunpack.c.l.b16 %v1980
        %v2110 = vunpack.c.h.b16 %v1980
        %v2111 = vunpack.c.l.b16 %v1981
        %v2112 = vunpack.c.l.b16 %v1982
        %v2113 = vunpack.c.h.b16 %v1982
        %v2114 = vunpack.c.l.b16 %v1983
        %v2115 = vunpack.c.l.b16 %v1984
        %v2116 = vunpack.c.h.b16 %v1984
        %v2117 = vunpack.c.l.b16 %v1985
        %v2118 = vunpack.c.l.b16 %v1986
        %v2119 = vunpack.c.h.b16 %v1986
        %v2120 = vunpack.c.l.b16 %v1987
        %v2121 = vunpack.c.l.b16 %v1988
        %v2122 = vunpack.c.h.b16 %v1988
        %v2123 = vunpack.c.l.b16 %v1989
        %v2124 = vunpack.c.l.b16 %v1990
        %v2125 = vunpack.c.h.b16 %v1990
        %v2126 = vunpack.c.l.b16 %v1991
        %v2127 = vunpack.c.l.b16 %v1992
        %v2128 = vunpack.c.h.b16 %v1992
        %v2129 = vunpack.c.l.b16 %v1993
        %v2130 = vunpack.c.l.b16 %v1994
        %v2131 = vunpack.c.h.b16 %v1994
        %v2132 = vunpack.c.l.b16 %v1995
        %v2133 = vunpack.c.l.b16 %v1996
        %v2134 = vunpack.c.h.b16 %v1996
        %v2135 = vunpack.c.l.b16 %v1997
        %v2136 = vunpack.c.l.b16 %v1998
        %v2137 = vunpack.c.h.b16 %v1998
        %v2138 = vunpack.c.l.b16 %v1999
        %v2139 = vunpack.c.l.b16 %v2000
        %v2140 = vunpack.c.h.b16 %v2000
        %v2141 = vunpack.c.l.b16 %v2001
        %v2142 = vunpack.c.l.b16 %v2002
        %v2143 = vunpack.c.h.b16 %v2002
        %v2144 = vunpack.c.l.b16 %v2003
        %v2145 = vunpack.c.l.b16 %v2004
        %v2146 = vunpack.c.h.b16 %v2004
        %v2147 = vunpack.c.l.b16 %v2005
        %v2148 = vunpack.c.l.b16 %v2006
        %v2149 = vunpack.c.h.b16 %v2006
        %v2150 = vunpack.c.l.b16 %v2007
        %v2151 = vunpack.c.l.b16 %v2008
        %v2152 = vunpack.c.h.b16 %v2008
        %v2153 = vunpack.c.l.b16 %v2009
        %v2154 = vunpack.c.l.b16 %v2010
        %v2155 = vunpack.c.h.b16 %v2010
        %v2156 = vunpack.c.l.b16 %v2011
        %v2157 = vunpack.c.l.b16 %v2012
        %v2158 = vunpack.c.h.b16 %v2012
        %v2159 = vunpack.c.l.b16 %v2013
        %v2160 = vunpack.c.l.b16 %v2014
        %v2161 = vunpack.c.h.b16 %v2014
        %v2162 = vunpack.c.l.b16 %v2015
        %v2163 = vunpack.c.l.b16 %v2016
        %v2164 = vunpack.c.h.b16 %v2016
        %v2165 = vunpack.c.l.b16 %v2017
        %v2166 = vunpack.c.l.b16 %v2018
        %v2167 = vunpack.c.h.b16 %v2018
        %v2168 = vunpack.c.l.b16 %v2019
        %v2169 = vunpack.c.l.b16 %v2020
        %v2170 = vunpack.c.h.b16 %v2020
        %v2171 = vunpack.c.l.b16 %v2021
        %v2172 = vunpack.c.l.b16 %v2022
        %v2173 = vunpack.c.h.b16 %v2022
        %v2174 = vunpack.c.l.b16 %v2023
        %v2175 = vunpack.c.l.b16 %v2024
        %v2176 = vunpack.c.h.b16 %v2024
        %v2177 = vunpack.c.l.b16 %v2025
        %v2178 = vunpack.c.l.b16 %v2026
        %v2179 = vunpack.c.h.b16 %v2026
        %v2180 = vunpack.c.l.b16 %v2027
        %v2181 = vunpack.c.l.b16 %v2028
        %v2182 = vunpack.c.h.b16 %v2028
        %v2183 = vunpack.c.l.b16 %v2029
        %v2184 = vunpack.c.l.b16 %v2030
        %v2185 = vunpack.c.h.b16 %v2030
        %v2186 = vunpack.c.l.b16 %v2031
        %v2187 = vunpack.c.l.b16 %v2032
        %v2188 = vunpack.c.h.b16 %v2032
        %v2189 = vunpack.c.l.b16 %v2033
        %v2190 = vunpack.c.l.b16 %v2034
        %v2191 = vunpack.c.h.b16 %v2034
        %v2192 = vunpack.c.l.b16 %v2035
        %v2193 = vunpack.c.l.b16 %v2036
        %v2194 = vunpack.c.h.b16 %v2036
        %v2195 = vunpack.c.l.b16 %v2037
        %v2196 = vunpack.c.l.b16 %v2038
        %v2197 = vunpack.c.h.b16 %v2038
        %v2198 = vunpack.c.l.b16 %v2039
        %v2199 = vunpack.c.l.b16 %v2040
        %v2200 = vunpack.c.h.b16 %v2040
        %v2201 = vunpack.c.l.b16 %v2041
        %v2202 = vpack.c.b16 %v2109, %v2106
        %v2203 = vpack.c.b16 %v2110, %v2107
        %v2204 = vpack.c.b16 %v2111, %v2108
        %v2205 = vpack.c.b16 %v2115, %v2112
        %v2206 = vpack.c.b16 %v2116, %v2113
        %v2207 = vpack.c.b16 %v2117, %v2114
        %v2208 = vpack.c.b16 %v2121, %v2118
        %v2209 = vpack.c.b16 %v2122, %v2119
        %v2210 = vpack.c.b16 %v2123, %v2120
        %v2211 = vpack.c.b16 %v2127, %v2124
        %v2212 = vpack.c.b16 %v2128, %v2125
        %v2213 = vpack.c.b16 %v2129, %v2126
        %v2214 = vpack.c.b16 %v2133, %v2130
        %v2215 = vpack.c.b16 %v2134, %v2131
        %v2216 = vpack.c.b16 %v2135, %v2132
        %v2217 = vpack.c.b16 %v2139, %v2136
        %v2218 = vpack.c.b16 %v2140, %v2137
        %v2219 = vpack.c.b16 %v2141, %v2138
        %v2220 = vpack.c.b16 %v2145, %v2142
        %v2221 = vpack.c.b16 %v2146, %v2143
        %v2222 = vpack.c.b16 %v2147, %v2144
        %v2223 = vpack.c.b16 %v2151, %v2148
        %v2224 = vpack.c.b16 %v2152, %v2149
        %v2225 = vpack.c.b16 %v2153, %v2150
        %v2226 = vpack.c.b16 %v2157, %v2154
        %v2227 = vpack.c.b16 %v2158, %v2155
        %v2228 = vpack.c.b16 %v2159, %v2156
        %v2229 = vpack.c.b16 %v2163, %v2160
        %v2230 = vpack.c.b16 %v2164, %v2161
        %v2231 = vpack.c.b16 %v2165, %v2162
        %v2232 = vpack.c.b16 %v2169, %v2166
        %v2233 = vpack.c.b16 %v2170, %v2167
        %v2234 = vpack.c.b16 %v2171, %v2168
        %v2235 = vpack.c.b16 %v2175, %v2172
        %v2236 = vpack.c.b16 %v2176, %v2173
        %v2237 = vpack.c.b16 %v2177, %v2174
        %v2238 = vpack.c.b16 %v2181, %v2178
        %v2239 = vpack.c.b16 %v2182, %v2179
        %v2240 = vpack.c.b16 %v2183, %v2180
        %v2241 = vpack.c.b16 %v2187, %v2184
        %v2242 = vpack.c.b16 %v2188, %v2185
        %v2243 = vpack.c.b16 %v2189, %v2186
        %v2244 = vpack.c.b16 %v2193, %v2190
        %v2245 = vpack.c.b16 %v2194, %v2191
        %v2246 = vpack.c.b16 %v2195, %v2192
        %v2247 = vpack.c.b16 %v2199, %v2196
        %v2248 = vpack.c.b16 %v2200, %v2197
        %v2249 = vpack.c.b16 %v2201, %v2198
        %v2318 = vunpack.c.l.b16 %v305
        %v2319 = vunpack.c.l.b16 %v306
        %v2320 = vunpack.c.l.b16 %v307
        %v2321 = vunpack.c.l.b16 %v308
        %v2322 = vunpack.c.l.b16 %v309
        %v2323 = vunpack.c.l.b16 %v310
        %v2324 = vunpack.c.l.b16 %v311
        %v2325 = vunpack.c.l.b16 %v312
        %v2326 = vunpack.c.l.b16 %v313
        %v2327 = vunpack.c.l.b16 %v314
        %v2328 = vunpack.c.l.b16 %v315
        %v2329 = vunpack.c.l.b16 %v316
        %v2330 = vunpack.c.l.b16 %v317
        %v2331 = vunpack.c.l.b16 %v318
        %v2332 = vunpack.c.l.b16 %v319
        %v2333 = vunpack.c.l.b16 %v320
        %v2334 = vunpack.c.l.b16 %v321
        %v2335 = vunpack.c.l.b16 %v322
        %v2336 = vunpack.c.l.b16 %v323
        %v2337 = vunpack.c.l.b16 %v324
        %v2338 = vunpack.c.l.b16 %v325
        %v2339 = vunpack.c.l.b16 %v326
        %v2340 = vunpack.c.l.b16 %v327
        %v2341 = vunpack.c.l.b16 %v328
        %v2342 = vunpack.c.l.b16 %v329
        %v2343 = vunpack.c.l.b16 %v330
        %v2344 = vunpack.c.l.b16 %v331
        %v2345 = vunpack.c.l.b16 %v332
        %v2346 = vunpack.c.l.b16 %v333
        %v2347 = vunpack.c.l.b16 %v334
        %v2348 = vunpack.c.l.b16 %v335
        %v2349 = vunpack.c.l.b16 %v336
        %v2350 = vunpack.c.l.b16 %v337
        %v2351 = vunpack.c.l.b16 %v338
        %v2352 = vunpack.c.l.b16 %v339
        %v2353 = vunpack.c.l.b16 %v340
        %v2354 = vpack.c.b16 %v2319, %v2318
        %v2355 = vpack.c.b16 %v2321, %v2320
        %v2356 = vpack.c.b16 %v2323, %v2322
        %v2357 = vpack.c.b16 %v2325, %v2324
        %v2358 = vpack.c.b16 %v2327, %v2326
        %v2359 = vpack.c.b16 %v2329, %v2328
        %v2360 = vpack.c.b16 %v2331, %v2330
        %v2361 = vpack.c.b16 %v2333, %v2332
        %v2362 = vpack.c.b16 %v2335, %v2334
        %v2363 = vpack.c.b16 %v2337, %v2336
        %v2364 = vpack.c.b16 %v2339, %v2338
        %v2365 = vpack.c.b16 %v2341, %v2340
        %v2366 = vpack.c.b16 %v2343, %v2342
        %v2367 = vpack.c.b16 %v2345, %v2344
        %v2368 = vpack.c.b16 %v2347, %v2346
        %v2369 = vpack.c.b16 %v2349, %v2348
        %v2370 = vpack.c.b16 %v2351, %v2350
        %v2371 = vpack.c.b16 %v2353, %v2352
        %v2391 = vsel %vm226, %v2204, 0
        %v2394 = vsel %vm226, %v2207, 0
        %v2397 = vsel %vm226, %v2210, 0
        %v2400 = vsel %vm226, %v2213, 0
        %v2403 = vsel %vm226, %v2216, 0
        %v2406 = vsel %vm226, %v2219, 0
        %v2409 = vsel %vm226, %v2222, 0
        %v2412 = vsel %vm226, %v2225, 0
        %v2415 = vsel %vm226, %v2228, 0
        %v2418 = vsel %vm226, %v2231, 0
        %v2421 = vsel %vm226, %v2234, 0
        %v2424 = vsel %vm226, %v2237, 0
        %v2427 = vsel %vm226, %v2240, 0
        %v2430 = vsel %vm226, %v2243, 0
        %v2433 = vsel %vm226, %v2246, 0
        %v2436 = vsel %vm226, %v2249, 0
        %2438 = vmatpush.bf16.msra.mxu0 %v2361
        %2439 = vmatpush.bf16.msra.mxu0 %v2360
        %2440 = vmatpush.bf16.msra.mxu0 %v2359
        %2441 = vmatpush.bf16.msra.mxu0 %v2358
        %2442 = vmatpush.bf16.msra.mxu0 %v2357
        %2443 = vmatpush.bf16.msra.mxu0 %v2356
        %2444 = vmatpush.bf16.msra.mxu0 %v2355
        %2445 = vmatpush.bf16.msra.mxu0 %v2354
        %2446 = vmatmul.bf16.gmra.mxu0 %v2202
        %v2447 = vpop.f32.mrf.mxu0
        %v2448 = vadd.f32 0.0, %v2447
        %v2449 = vpop.f32.mrf.mxu0
        %v2450 = vadd.f32 0.0, %v2449
        %2451 = vmatmul.bf16.gmra.mxu0 %v2205
        %v2452 = vpop.f32.mrf.mxu0
        %v2453 = vadd.f32 0.0, %v2452
        %v2454 = vpop.f32.mrf.mxu0
        %v2455 = vadd.f32 0.0, %v2454
        %2456 = vmatmul.bf16.gmra.mxu0 %v2208
        %v2457 = vpop.f32.mrf.mxu0
        %v2458 = vadd.f32 0.0, %v2457
        %v2459 = vpop.f32.mrf.mxu0
        %v2460 = vadd.f32 0.0, %v2459
        %2461 = vmatmul.bf16.gmra.mxu0 %v2211
        %v2462 = vpop.f32.mrf.mxu0
        %v2463 = vadd.f32 0.0, %v2462
        %v2464 = vpop.f32.mrf.mxu0
        %v2465 = vadd.f32 0.0, %v2464
        %2466 = vmatmul.bf16.gmra.mxu0 %v2214
        %v2467 = vpop.f32.mrf.mxu0
        %v2468 = vadd.f32 0.0, %v2467
        %v2469 = vpop.f32.mrf.mxu0
        %v2470 = vadd.f32 0.0, %v2469
        %2471 = vmatmul.bf16.gmra.mxu0 %v2217
        %v2472 = vpop.f32.mrf.mxu0
        %v2473 = vadd.f32 0.0, %v2472
        %v2474 = vpop.f32.mrf.mxu0
        %v2475 = vadd.f32 0.0, %v2474
        %2476 = vmatmul.bf16.gmra.mxu0 %v2220
        %v2477 = vpop.f32.mrf.mxu0
        %v2478 = vadd.f32 0.0, %v2477
        %v2479 = vpop.f32.mrf.mxu0
        %v2480 = vadd.f32 0.0, %v2479
        %2481 = vmatmul.bf16.gmra.mxu0 %v2223
        %v2482 = vpop.f32.mrf.mxu0
        %v2483 = vadd.f32 0.0, %v2482
        %v2484 = vpop.f32.mrf.mxu0
        %v2485 = vadd.f32 0.0, %v2484
        %2486 = vmatmul.bf16.gmra.mxu0 %v2226
        %v2487 = vpop.f32.mrf.mxu0
        %v2488 = vadd.f32 0.0, %v2487
        %v2489 = vpop.f32.mrf.mxu0
        %v2490 = vadd.f32 0.0, %v2489
        %2491 = vmatmul.bf16.gmra.mxu0 %v2229
        %v2492 = vpop.f32.mrf.mxu0
        %v2493 = vadd.f32 0.0, %v2492
        %v2494 = vpop.f32.mrf.mxu0
        %v2495 = vadd.f32 0.0, %v2494
        %2496 = vmatmul.bf16.gmra.mxu0 %v2232
        %v2497 = vpop.f32.mrf.mxu0
        %v2498 = vadd.f32 0.0, %v2497
        %v2499 = vpop.f32.mrf.mxu0
        %v2500 = vadd.f32 0.0, %v2499
        %2501 = vmatmul.bf16.gmra.mxu0 %v2235
        %v2502 = vpop.f32.mrf.mxu0
        %v2503 = vadd.f32 0.0, %v2502
        %v2504 = vpop.f32.mrf.mxu0
        %v2505 = vadd.f32 0.0, %v2504
        %2506 = vmatmul.bf16.gmra.mxu0 %v2238
        %v2507 = vpop.f32.mrf.mxu0
        %v2508 = vadd.f32 0.0, %v2507
        %v2509 = vpop.f32.mrf.mxu0
        %v2510 = vadd.f32 0.0, %v2509
        %2511 = vmatmul.bf16.gmra.mxu0 %v2241
        %v2512 = vpop.f32.mrf.mxu0
        %v2513 = vadd.f32 0.0, %v2512
        %v2514 = vpop.f32.mrf.mxu0
        %v2515 = vadd.f32 0.0, %v2514
        %2516 = vmatmul.bf16.gmra.mxu0 %v2244
        %v2517 = vpop.f32.mrf.mxu0
        %v2518 = vadd.f32 0.0, %v2517
        %v2519 = vpop.f32.mrf.mxu0
        %v2520 = vadd.f32 0.0, %v2519
        %2521 = vmatmul.bf16.gmra.mxu0 %v2247
        %v2522 = vpop.f32.mrf.mxu0
        %v2523 = vadd.f32 0.0, %v2522
        %v2524 = vpop.f32.mrf.mxu0
        %v2525 = vadd.f32 0.0, %v2524
        %2526 = vdwg.mxu0
        %2527 = vmatpush.bf16.msra.mxu0 %v2369
        %2528 = vmatpush.bf16.msra.mxu0 %v2368
        %2529 = vmatpush.bf16.msra.mxu0 %v2367
        %2530 = vmatpush.bf16.msra.mxu0 %v2366
        %2531 = vmatpush.bf16.msra.mxu0 %v2365
        %2532 = vmatpush.bf16.msra.mxu0 %v2364
        %2533 = vmatpush.bf16.msra.mxu0 %v2363
        %2534 = vmatpush.bf16.msra.mxu0 %v2362
        %2535 = vmatmul.bf16.gmra.mxu0 %v2203
        %v2536 = vpop.f32.mrf.mxu0
        %v2537 = vadd.f32 %v2448, %v2536
        %v2538 = vpop.f32.mrf.mxu0
        %v2539 = vadd.f32 %v2450, %v2538
        %2540 = vmatmul.bf16.gmra.mxu0 %v2206
        %v2541 = vpop.f32.mrf.mxu0
        %v2542 = vadd.f32 %v2453, %v2541
        %v2543 = vpop.f32.mrf.mxu0
        %v2544 = vadd.f32 %v2455, %v2543
        %2545 = vmatmul.bf16.gmra.mxu0 %v2209
        %v2546 = vpop.f32.mrf.mxu0
        %v2547 = vadd.f32 %v2458, %v2546
        %v2548 = vpop.f32.mrf.mxu0
        %v2549 = vadd.f32 %v2460, %v2548
        %2550 = vmatmul.bf16.gmra.mxu0 %v2212
        %v2551 = vpop.f32.mrf.mxu0
        %v2552 = vadd.f32 %v2463, %v2551
        %v2553 = vpop.f32.mrf.mxu0
        %v2554 = vadd.f32 %v2465, %v2553
        %2555 = vmatmul.bf16.gmra.mxu0 %v2215
        %v2556 = vpop.f32.mrf.mxu0
        %v2557 = vadd.f32 %v2468, %v2556
        %v2558 = vpop.f32.mrf.mxu0
        %v2559 = vadd.f32 %v2470, %v2558
        %2560 = vmatmul.bf16.gmra.mxu0 %v2218
        %v2561 = vpop.f32.mrf.mxu0
        %v2562 = vadd.f32 %v2473, %v2561
        %v2563 = vpop.f32.mrf.mxu0
        %v2564 = vadd.f32 %v2475, %v2563
        %2565 = vmatmul.bf16.gmra.mxu0 %v2221
        %v2566 = vpop.f32.mrf.mxu0
        %v2567 = vadd.f32 %v2478, %v2566
        %v2568 = vpop.f32.mrf.mxu0
        %v2569 = vadd.f32 %v2480, %v2568
        %2570 = vmatmul.bf16.gmra.mxu0 %v2224
        %v2571 = vpop.f32.mrf.mxu0
        %v2572 = vadd.f32 %v2483, %v2571
        %v2573 = vpop.f32.mrf.mxu0
        %v2574 = vadd.f32 %v2485, %v2573
        %2575 = vmatmul.bf16.gmra.mxu0 %v2227
        %v2576 = vpop.f32.mrf.mxu0
        %v2577 = vadd.f32 %v2488, %v2576
        %v2578 = vpop.f32.mrf.mxu0
        %v2579 = vadd.f32 %v2490, %v2578
        %2580 = vmatmul.bf16.gmra.mxu0 %v2230
        %v2581 = vpop.f32.mrf.mxu0
        %v2582 = vadd.f32 %v2493, %v2581
        %v2583 = vpop.f32.mrf.mxu0
        %v2584 = vadd.f32 %v2495, %v2583
        %2585 = vmatmul.bf16.gmra.mxu0 %v2233
        %v2586 = vpop.f32.mrf.mxu0
        %v2587 = vadd.f32 %v2498, %v2586
        %v2588 = vpop.f32.mrf.mxu0
        %v2589 = vadd.f32 %v2500, %v2588
        %2590 = vmatmul.bf16.gmra.mxu0 %v2236
        %v2591 = vpop.f32.mrf.mxu0
        %v2592 = vadd.f32 %v2503, %v2591
        %v2593 = vpop.f32.mrf.mxu0
        %v2594 = vadd.f32 %v2505, %v2593
        %2595 = vmatmul.bf16.gmra.mxu0 %v2239
        %v2596 = vpop.f32.mrf.mxu0
        %v2597 = vadd.f32 %v2508, %v2596
        %v2598 = vpop.f32.mrf.mxu0
        %v2599 = vadd.f32 %v2510, %v2598
        %2600 = vmatmul.bf16.gmra.mxu0 %v2242
        %v2601 = vpop.f32.mrf.mxu0
        %v2602 = vadd.f32 %v2513, %v2601
        %v2603 = vpop.f32.mrf.mxu0
        %v2604 = vadd.f32 %v2515, %v2603
        %2605 = vmatmul.bf16.gmra.mxu0 %v2245
        %v2606 = vpop.f32.mrf.mxu0
        %v2607 = vadd.f32 %v2518, %v2606
        %v2608 = vpop.f32.mrf.mxu0
        %v2609 = vadd.f32 %v2520, %v2608
        %2610 = vmatmul.bf16.gmra.mxu0 %v2248
        %v2611 = vpop.f32.mrf.mxu0
        %v2612 = vadd.f32 %v2523, %v2611
        %v2613 = vpop.f32.mrf.mxu0
        %v2614 = vadd.f32 %v2525, %v2613
        %2615 = vdwg.mxu0
        %2616 = vmatpush.bf16.msra.mxu0 0
        %2617 = vmatpush.bf16.msra.mxu0 0
        %2618 = vmatpush.bf16.msra.mxu0 0
        %2619 = vmatpush.bf16.msra.mxu0 0
        %2620 = vmatpush.bf16.msra.mxu0 0
        %2621 = vmatpush.bf16.msra.mxu0 0
        %2622 = vmatpush.bf16.msra.mxu0 %v2371
        %2623 = vmatpush.bf16.msra.mxu0 %v2370
        %2624 = vmatmul.bf16.gmra.mxu0 %v2391
        %v2625 = vpop.f32.mrf.mxu0
        %v2626 = vadd.f32 %v2537, %v2625
        %v2627 = vpop.f32.mrf.mxu0
        %v2628 = vadd.f32 %v2539, %v2627
        %2629 = vmatmul.bf16.gmra.mxu0 %v2394
        %v2630 = vpop.f32.mrf.mxu0
        %v2631 = vadd.f32 %v2542, %v2630
        %v2632 = vpop.f32.mrf.mxu0
        %v2633 = vadd.f32 %v2544, %v2632
        %2634 = vmatmul.bf16.gmra.mxu0 %v2397
        %v2635 = vpop.f32.mrf.mxu0
        %v2636 = vadd.f32 %v2547, %v2635
        %v2637 = vpop.f32.mrf.mxu0
        %v2638 = vadd.f32 %v2549, %v2637
        %2639 = vmatmul.bf16.gmra.mxu0 %v2400
        %v2640 = vpop.f32.mrf.mxu0
        %v2641 = vadd.f32 %v2552, %v2640
        %v2642 = vpop.f32.mrf.mxu0
        %v2643 = vadd.f32 %v2554, %v2642
        %2644 = vmatmul.bf16.gmra.mxu0 %v2403
        %v2645 = vpop.f32.mrf.mxu0
        %v2646 = vadd.f32 %v2557, %v2645
        %v2647 = vpop.f32.mrf.mxu0
        %v2648 = vadd.f32 %v2559, %v2647
        %2649 = vmatmul.bf16.gmra.mxu0 %v2406
        %v2650 = vpop.f32.mrf.mxu0
        %v2651 = vadd.f32 %v2562, %v2650
        %v2652 = vpop.f32.mrf.mxu0
        %v2653 = vadd.f32 %v2564, %v2652
        %2654 = vmatmul.bf16.gmra.mxu0 %v2409
        %v2655 = vpop.f32.mrf.mxu0
        %v2656 = vadd.f32 %v2567, %v2655
        %v2657 = vpop.f32.mrf.mxu0
        %v2658 = vadd.f32 %v2569, %v2657
        %2659 = vmatmul.bf16.gmra.mxu0 %v2412
        %v2660 = vpop.f32.mrf.mxu0
        %v2661 = vadd.f32 %v2572, %v2660
        %v2662 = vpop.f32.mrf.mxu0
        %v2663 = vadd.f32 %v2574, %v2662
        %2664 = vmatmul.bf16.gmra.mxu0 %v2415
        %v2665 = vpop.f32.mrf.mxu0
        %v2666 = vadd.f32 %v2577, %v2665
        %v2667 = vpop.f32.mrf.mxu0
        %v2668 = vadd.f32 %v2579, %v2667
        %2669 = vmatmul.bf16.gmra.mxu0 %v2418
        %v2670 = vpop.f32.mrf.mxu0
        %v2671 = vadd.f32 %v2582, %v2670
        %v2672 = vpop.f32.mrf.mxu0
        %v2673 = vadd.f32 %v2584, %v2672
        %2674 = vmatmul.bf16.gmra.mxu0 %v2421
        %v2675 = vpop.f32.mrf.mxu0
        %v2676 = vadd.f32 %v2587, %v2675
        %v2677 = vpop.f32.mrf.mxu0
        %v2678 = vadd.f32 %v2589, %v2677
        %2679 = vmatmul.bf16.gmra.mxu0 %v2424
        %v2680 = vpop.f32.mrf.mxu0
        %v2681 = vadd.f32 %v2592, %v2680
        %v2682 = vpop.f32.mrf.mxu0
        %v2683 = vadd.f32 %v2594, %v2682
        %2684 = vmatmul.bf16.gmra.mxu0 %v2427
        %v2685 = vpop.f32.mrf.mxu0
        %v2686 = vadd.f32 %v2597, %v2685
        %v2687 = vpop.f32.mrf.mxu0
        %v2688 = vadd.f32 %v2599, %v2687
        %2689 = vmatmul.bf16.gmra.mxu0 %v2430
        %v2690 = vpop.f32.mrf.mxu0
        %v2691 = vadd.f32 %v2602, %v2690
        %v2692 = vpop.f32.mrf.mxu0
        %v2693 = vadd.f32 %v2604, %v2692
        %2694 = vmatmul.bf16.gmra.mxu0 %v2433
        %v2695 = vpop.f32.mrf.mxu0
        %v2696 = vadd.f32 %v2607, %v2695
        %v2697 = vpop.f32.mrf.mxu0
        %v2698 = vadd.f32 %v2609, %v2697
        %2699 = vmatmul.bf16.gmra.mxu0 %v2436
        %v2700 = vpop.f32.mrf.mxu0
        %v2701 = vadd.f32 %v2612, %v2700
        %v2702 = vpop.f32.mrf.mxu0
        %v2703 = vadd.f32 %v2614, %v2702
        %2704 = vdwg.mxu0
        %v2705 = vmax.f32 %v2626, 0.0
        %v2706 = vmax.f32 %v2628, 0.0
        %v2707 = vmax.f32 %v2631, 0.0
        %v2708 = vmax.f32 %v2633, 0.0
        %v2709 = vmax.f32 %v2636, 0.0
        %v2710 = vmax.f32 %v2638, 0.0
        %v2711 = vmax.f32 %v2641, 0.0
        %v2712 = vmax.f32 %v2643, 0.0
        %v2713 = vmax.f32 %v2646, 0.0
        %v2714 = vmax.f32 %v2648, 0.0
        %v2715 = vmax.f32 %v2651, 0.0
        %v2716 = vmax.f32 %v2653, 0.0
        %v2717 = vmax.f32 %v2656, 0.0
        %v2718 = vmax.f32 %v2658, 0.0
        %v2719 = vmax.f32 %v2661, 0.0
        %v2720 = vmax.f32 %v2663, 0.0
        %v2721 = vmax.f32 %v2666, 0.0
        %v2722 = vmax.f32 %v2668, 0.0
        %v2723 = vmax.f32 %v2671, 0.0
        %v2724 = vmax.f32 %v2673, 0.0
        %v2725 = vmax.f32 %v2676, 0.0
        %v2726 = vmax.f32 %v2678, 0.0
        %v2727 = vmax.f32 %v2681, 0.0
        %v2728 = vmax.f32 %v2683, 0.0
        %v2729 = vmax.f32 %v2686, 0.0
        %v2730 = vmax.f32 %v2688, 0.0
        %v2731 = vmax.f32 %v2691, 0.0
        %v2732 = vmax.f32 %v2693, 0.0
        %v2733 = vmax.f32 %v2696, 0.0
        %v2734 = vmax.f32 %v2698, 0.0
        %v2735 = vmax.f32 %v2701, 0.0
        %v2736 = vmax.f32 %v2703, 0.0
        %2737 = vst.msk [vmem:[%s272 + $0x1] sm:$0xff] %vm226, %v2705
        %2738 = vst.msk [vmem:[%s272 + $0x9] sm:$0xff] %vm226, %v2706
        %2739 = vst.msk [vmem:[%s272 + $0x19] sm:$0xff] %vm226, %v2707
        %2740 = vst.msk [vmem:[%s272 + $0x21] sm:$0xff] %vm226, %v2708
        %2741 = vst.msk [vmem:[%s272 + $0x31] sm:$0xff] %vm226, %v2709
        %2742 = vst.msk [vmem:[%s272 + $0x39] sm:$0xff] %vm226, %v2710
        %2743 = vst.msk [vmem:[%s272 + $0x49] sm:$0xff] %vm226, %v2711
        %2744 = vst.msk [vmem:[%s272 + $0x51] sm:$0xff] %vm226, %v2712
        %2745 = vst.msk [vmem:[%s272 + $0x61] sm:$0xff] %vm226, %v2713
        %2746 = vst.msk [vmem:[%s272 + $0x69] sm:$0xff] %vm226, %v2714
        %2747 = vst.msk [vmem:[%s272 + $0x79] sm:$0xff] %vm226, %v2715
        %2748 = vst.msk [vmem:[%s272 + $0x81] sm:$0xff] %vm226, %v2716
        %2749 = vst.msk [vmem:[%s272 + $0x91] sm:$0xff] %vm226, %v2717
        %2750 = vst.msk [vmem:[%s272 + $0x99] sm:$0xff] %vm226, %v2718
        %2751 = vst.msk [vmem:[%s272 + $0xa9] sm:$0xff] %vm226, %v2719
        %2752 = vst.msk [vmem:[%s272 + $0xb1] sm:$0xff] %vm226, %v2720
        %2753 = vst.msk [vmem:[%s272 + $0xc1] sm:$0xff] %vm226, %v2721
        %2754 = vst.msk [vmem:[%s272 + $0xc9] sm:$0xff] %vm226, %v2722
        %2755 = vst.msk [vmem:[%s272 + $0xd9] sm:$0xff] %vm226, %v2723
        %2756 = vst.msk [vmem:[%s272 + $0xe1] sm:$0xff] %vm226, %v2724
        %2757 = vst.msk [vmem:[%s272 + $0xf1] sm:$0xff] %vm226, %v2725
        %2758 = vst.msk [vmem:[%s272 + $0xf9] sm:$0xff] %vm226, %v2726
        %2759 = vst.msk [vmem:[%s272 + $0x109] sm:$0xff] %vm226, %v2727
        %2760 = vst.msk [vmem:[%s272 + $0x111] sm:$0xff] %vm226, %v2728
        %2761 = vst.msk [vmem:[%s272 + $0x121] sm:$0xff] %vm226, %v2729
        %2762 = vst.msk [vmem:[%s272 + $0x129] sm:$0xff] %vm226, %v2730
        %2763 = vst.msk [vmem:[%s272 + $0x139] sm:$0xff] %vm226, %v2731
        %2764 = vst.msk [vmem:[%s272 + $0x141] sm:$0xff] %vm226, %v2732
        %2765 = vst.msk [vmem:[%s272 + $0x151] sm:$0xff] %vm226, %v2733
        %2766 = vst.msk [vmem:[%s272 + $0x159] sm:$0xff] %vm226, %v2734
        %2767 = vst.msk [vmem:[%s272 + $0x169] sm:$0xff] %vm226, %v2735
        %2768 = vst.msk [vmem:[%s272 + $0x171] sm:$0xff] %vm226, %v2736
        %v2769 = vld [vmem:[%s2] sm:$0xf]
        %v2770 = vld [vmem:[%s2 + $0x4] sm:$0xf]
        %v2771 = vld [vmem:[%s2 + $0x8] sm:$0xf]
        %v2772 = vld [vmem:[%s2 + $0xc] sm:$0xf]
        %v2773 = vld [vmem:[%s2 + $0x10] sm:$0xf]
        %v2774 = vld [vmem:[%s2 + $0x14] sm:$0xf]
        %v2775 = vld [vmem:[%s2 + $0x18] sm:$0xf]
        %v2776 = vld [vmem:[%s2 + $0x1c] sm:$0xf]
        %v2777 = vld [vmem:[%s2 + $0x20] sm:$0xf]
        %v2778 = vld [vmem:[%s2 + $0x24] sm:$0xf]
        %v2779 = vld [vmem:[%s2 + $0x28] sm:$0xf]
        %v2780 = vld [vmem:[%s2 + $0x2c] sm:$0xf]
        %v2781 = vld [vmem:[%s2 + $0x30] sm:$0xf]
        %v2782 = vld [vmem:[%s2 + $0x34] sm:$0xf]
        %v2783 = vld [vmem:[%s2 + $0x38] sm:$0xf]
        %v2784 = vld [vmem:[%s2 + $0x3c] sm:$0xf]
        %v2785 = vld [vmem:[%s2 + $0x40] sm:$0xf]
        %v2786 = vld [vmem:[%s2 + $0x44] sm:$0xf]
        %v2787 = vld [vmem:[%s2 + $0x48] sm:$0xf]
        %v2788 = vld [vmem:[%s2 + $0x4c] sm:$0xf]
        %v2789 = vld [vmem:[%s2 + $0x50] sm:$0xf]
        %v2790 = vld [vmem:[%s2 + $0x54] sm:$0xf]
        %v2791 = vld [vmem:[%s2 + $0x58] sm:$0xf]
        %v2792 = vld [vmem:[%s2 + $0x5c] sm:$0xf]
        %v2793 = vld [vmem:[%s2 + $0x60] sm:$0xf]
        %v2794 = vld [vmem:[%s2 + $0x64] sm:$0xf]
        %v2795 = vld [vmem:[%s2 + $0x68] sm:$0xf]
        %v2796 = vld [vmem:[%s2 + $0x6c] sm:$0xf]
        %v2797 = vld [vmem:[%s2 + $0x70] sm:$0xf]
        %v2798 = vld [vmem:[%s2 + $0x74] sm:$0xf]
        %v2799 = vld [vmem:[%s2 + $0x78] sm:$0xf]
        %v2800 = vld [vmem:[%s2 + $0x7c] sm:$0xf]
        %v2801 = vld [vmem:[%s2 + $0x80] sm:$0xf]
        %v2802 = vld [vmem:[%s2 + $0x84] sm:$0xf]
        %v2803 = vld [vmem:[%s2 + $0x88] sm:$0xf]
        %v2804 = vld [vmem:[%s2 + $0x8c] sm:$0xf]
        %v2805 = vld [vmem:[#allocation2] sm:$0xff]
        %v2806 = vld [vmem:[#allocation2 + $0x8] sm:$0xff]
        %v2807 = vld [vmem:[#allocation2 + $0x18] sm:$0xff]
        %v2808 = vld [vmem:[#allocation2 + $0x20] sm:$0xff]
        %v2809 = vld [vmem:[#allocation2 + $0x30] sm:$0xff]
        %v2810 = vld [vmem:[#allocation2 + $0x38] sm:$0xff]
        %v2811 = vld [vmem:[#allocation2 + $0x48] sm:$0xff]
        %v2812 = vld [vmem:[#allocation2 + $0x50] sm:$0xff]
        %v2813 = vld [vmem:[#allocation2 + $0x60] sm:$0xff]
        %v2814 = vld [vmem:[#allocation2 + $0x68] sm:$0xff]
        %v2815 = vld [vmem:[#allocation2 + $0x78] sm:$0xff]
        %v2816 = vld [vmem:[#allocation2 + $0x80] sm:$0xff]
        %v2817 = vld [vmem:[#allocation2 + $0x90] sm:$0xff]
        %v2818 = vld [vmem:[#allocation2 + $0x98] sm:$0xff]
        %v2819 = vld [vmem:[#allocation2 + $0xa8] sm:$0xff]
        %v2820 = vld [vmem:[#allocation2 + $0xb0] sm:$0xff]
        %v2821 = vld [vmem:[#allocation2 + $0xc0] sm:$0xff]
        %v2822 = vld [vmem:[#allocation2 + $0xc8] sm:$0xff]
        %v2823 = vld [vmem:[#allocation2 + $0xd8] sm:$0xff]
        %v2824 = vld [vmem:[#allocation2 + $0xe0] sm:$0xff]
        %v2825 = vld [vmem:[#allocation2 + $0xf0] sm:$0xff]
        %v2826 = vld [vmem:[#allocation2 + $0xf8] sm:$0xff]
        %v2827 = vld [vmem:[#allocation2 + $0x108] sm:$0xff]
        %v2828 = vld [vmem:[#allocation2 + $0x110] sm:$0xff]
        %v2829 = vld [vmem:[#allocation2 + $0x120] sm:$0xff]
        %v2830 = vld [vmem:[#allocation2 + $0x128] sm:$0xff]
        %v2831 = vld [vmem:[#allocation2 + $0x138] sm:$0xff]
        %v2832 = vld [vmem:[#allocation2 + $0x140] sm:$0xff]
        %v2833 = vld [vmem:[#allocation2 + $0x150] sm:$0xff]
        %v2834 = vld [vmem:[#allocation2 + $0x158] sm:$0xff]
        %v2835 = vld [vmem:[#allocation2 + $0x168] sm:$0xff]
        %v2836 = vld [vmem:[#allocation2 + $0x170] sm:$0xff]
        %v2837 = vpack.c.bf16 %v2805, %v2805
        %v2838 = vpack.c.bf16 %v2806, %v2806
        %v2839 = vpack.c.bf16 %v2807, %v2807
        %v2840 = vpack.c.bf16 %v2808, %v2808
        %v2841 = vpack.c.bf16 %v2809, %v2809
        %v2842 = vpack.c.bf16 %v2810, %v2810
        %v2843 = vpack.c.bf16 %v2811, %v2811
        %v2844 = vpack.c.bf16 %v2812, %v2812
        %v2845 = vpack.c.bf16 %v2813, %v2813
        %v2846 = vpack.c.bf16 %v2814, %v2814
        %v2847 = vpack.c.bf16 %v2815, %v2815
        %v2848 = vpack.c.bf16 %v2816, %v2816
        %v2849 = vpack.c.bf16 %v2817, %v2817
        %v2850 = vpack.c.bf16 %v2818, %v2818
        %v2851 = vpack.c.bf16 %v2819, %v2819
        %v2852 = vpack.c.bf16 %v2820, %v2820
        %v2853 = vpack.c.bf16 %v2821, %v2821
        %v2854 = vpack.c.bf16 %v2822, %v2822
        %v2855 = vpack.c.bf16 %v2823, %v2823
        %v2856 = vpack.c.bf16 %v2824, %v2824
        %v2857 = vpack.c.bf16 %v2825, %v2825
        %v2858 = vpack.c.bf16 %v2826, %v2826
        %v2859 = vpack.c.bf16 %v2827, %v2827
        %v2860 = vpack.c.bf16 %v2828, %v2828
        %v2861 = vpack.c.bf16 %v2829, %v2829
        %v2862 = vpack.c.bf16 %v2830, %v2830
        %v2863 = vpack.c.bf16 %v2831, %v2831
        %v2864 = vpack.c.bf16 %v2832, %v2832
        %v2865 = vpack.c.bf16 %v2833, %v2833
        %v2866 = vpack.c.bf16 %v2834, %v2834
        %v2867 = vpack.c.bf16 %v2835, %v2835
        %v2868 = vpack.c.bf16 %v2836, %v2836
        %2869 = vst.msk [vmem:[#allocation3] sm:$0xf] %vm405, %v2837
        %2870 = vst.msk [vmem:[#allocation3 + $0xc] sm:$0xf] %vm405, %v2838
        %2871 = vst.msk [vmem:[#allocation3 + $0x18] sm:$0xf] %vm405, %v2839
        %2872 = vst.msk [vmem:[#allocation3 + $0x24] sm:$0xf] %vm405, %v2840
        %2873 = vst.msk [vmem:[#allocation3 + $0x30] sm:$0xf] %vm405, %v2841
        %2874 = vst.msk [vmem:[#allocation3 + $0x3c] sm:$0xf] %vm405, %v2842
        %2875 = vst.msk [vmem:[#allocation3 + $0x48] sm:$0xf] %vm405, %v2843
        %2876 = vst.msk [vmem:[#allocation3 + $0x54] sm:$0xf] %vm405, %v2844
        %2877 = vst.msk [vmem:[#allocation3 + $0x60] sm:$0xf] %vm405, %v2845
        %2878 = vst.msk [vmem:[#allocation3 + $0x6c] sm:$0xf] %vm405, %v2846
        %2879 = vst.msk [vmem:[#allocation3 + $0x78] sm:$0xf] %vm405, %v2847
        %2880 = vst.msk [vmem:[#allocation3 + $0x84] sm:$0xf] %vm405, %v2848
        %2881 = vst.msk [vmem:[#allocation3 + $0x90] sm:$0xf] %vm405, %v2849
        %2882 = vst.msk [vmem:[#allocation3 + $0x9c] sm:$0xf] %vm405, %v2850
        %2883 = vst.msk [vmem:[#allocation3 + $0xa8] sm:$0xf] %vm405, %v2851
        %2884 = vst.msk [vmem:[#allocation3 + $0xb4] sm:$0xf] %vm405, %v2852
        %2885 = vst.msk [vmem:[#allocation3 + $0xc0] sm:$0xf] %vm405, %v2853
        %2886 = vst.msk [vmem:[#allocation3 + $0xcc] sm:$0xf] %vm405, %v2854
        %2887 = vst.msk [vmem:[#allocation3 + $0xd8] sm:$0xf] %vm405, %v2855
        %2888 = vst.msk [vmem:[#allocation3 + $0xe4] sm:$0xf] %vm405, %v2856
        %2889 = vst.msk [vmem:[#allocation3 + $0xf0] sm:$0xf] %vm405, %v2857
        %2890 = vst.msk [vmem:[#allocation3 + $0xfc] sm:$0xf] %vm405, %v2858
        %2891 = vst.msk [vmem:[#allocation3 + $0x108] sm:$0xf] %vm405, %v2859
        %2892 = vst.msk [vmem:[#allocation3 + $0x114] sm:$0xf] %vm405, %v2860
        %2893 = vst.msk [vmem:[#allocation3 + $0x120] sm:$0xf] %vm405, %v2861
        %2894 = vst.msk [vmem:[#allocation3 + $0x12c] sm:$0xf] %vm405, %v2862
        %2895 = vst.msk [vmem:[#allocation3 + $0x138] sm:$0xf] %vm405, %v2863
        %2896 = vst.msk [vmem:[#allocation3 + $0x144] sm:$0xf] %vm405, %v2864
        %2897 = vst.msk [vmem:[#allocation3 + $0x150] sm:$0xf] %vm405, %v2865
        %2898 = vst.msk [vmem:[#allocation3 + $0x15c] sm:$0xf] %vm405, %v2866
        %2899 = vst.msk [vmem:[#allocation3 + $0x168] sm:$0xf] %vm405, %v2867
        %2900 = vst.msk [vmem:[#allocation3 + $0x174] sm:$0xf] %vm405, %v2868
        %v2901 = vld [vmem:[#allocation2 + $0x1] sm:$0xff]
        %v2902 = vld [vmem:[#allocation2 + $0x9] sm:$0xff]
        %v2903 = vld [vmem:[#allocation2 + $0x19] sm:$0xff]
        %v2904 = vld [vmem:[#allocation2 + $0x21] sm:$0xff]
        %v2905 = vld [vmem:[#allocation2 + $0x31] sm:$0xff]
        %v2906 = vld [vmem:[#allocation2 + $0x39] sm:$0xff]
        %v2907 = vld [vmem:[#allocation2 + $0x49] sm:$0xff]
        %v2908 = vld [vmem:[#allocation2 + $0x51] sm:$0xff]
        %v2909 = vld [vmem:[#allocation2 + $0x61] sm:$0xff]
        %v2910 = vld [vmem:[#allocation2 + $0x69] sm:$0xff]
        %v2911 = vld [vmem:[#allocation2 + $0x79] sm:$0xff]
        %v2912 = vld [vmem:[#allocation2 + $0x81] sm:$0xff]
        %v2913 = vld [vmem:[#allocation2 + $0x91] sm:$0xff]
        %v2914 = vld [vmem:[#allocation2 + $0x99] sm:$0xff]
        %v2915 = vld [vmem:[#allocation2 + $0xa9] sm:$0xff]
        %v2916 = vld [vmem:[#allocation2 + $0xb1] sm:$0xff]
        %v2917 = vld [vmem:[#allocation2 + $0xc1] sm:$0xff]
        %v2918 = vld [vmem:[#allocation2 + $0xc9] sm:$0xff]
        %v2919 = vld [vmem:[#allocation2 + $0xd9] sm:$0xff]
        %v2920 = vld [vmem:[#allocation2 + $0xe1] sm:$0xff]
        %v2921 = vld [vmem:[#allocation2 + $0xf1] sm:$0xff]
        %v2922 = vld [vmem:[#allocation2 + $0xf9] sm:$0xff]
        %v2923 = vld [vmem:[#allocation2 + $0x109] sm:$0xff]
        %v2924 = vld [vmem:[#allocation2 + $0x111] sm:$0xff]
        %v2925 = vld [vmem:[#allocation2 + $0x121] sm:$0xff]
        %v2926 = vld [vmem:[#allocation2 + $0x129] sm:$0xff]
        %v2927 = vld [vmem:[#allocation2 + $0x139] sm:$0xff]
        %v2928 = vld [vmem:[#allocation2 + $0x141] sm:$0xff]
        %v2929 = vld [vmem:[#allocation2 + $0x151] sm:$0xff]
        %v2930 = vld [vmem:[#allocation2 + $0x159] sm:$0xff]
        %v2931 = vld [vmem:[#allocation2 + $0x169] sm:$0xff]
        %v2932 = vld [vmem:[#allocation2 + $0x171] sm:$0xff]
        %v2933 = vpack.c.bf16 %v2901, %v2901
        %v2934 = vpack.c.bf16 %v2902, %v2902
        %v2935 = vpack.c.bf16 %v2903, %v2903
        %v2936 = vpack.c.bf16 %v2904, %v2904
        %v2937 = vpack.c.bf16 %v2905, %v2905
        %v2938 = vpack.c.bf16 %v2906, %v2906
        %v2939 = vpack.c.bf16 %v2907, %v2907
        %v2940 = vpack.c.bf16 %v2908, %v2908
        %v2941 = vpack.c.bf16 %v2909, %v2909
        %v2942 = vpack.c.bf16 %v2910, %v2910
        %v2943 = vpack.c.bf16 %v2911, %v2911
        %v2944 = vpack.c.bf16 %v2912, %v2912
        %v2945 = vpack.c.bf16 %v2913, %v2913
        %v2946 = vpack.c.bf16 %v2914, %v2914
        %v2947 = vpack.c.bf16 %v2915, %v2915
        %v2948 = vpack.c.bf16 %v2916, %v2916
        %v2949 = vpack.c.bf16 %v2917, %v2917
        %v2950 = vpack.c.bf16 %v2918, %v2918
        %v2951 = vpack.c.bf16 %v2919, %v2919
        %v2952 = vpack.c.bf16 %v2920, %v2920
        %v2953 = vpack.c.bf16 %v2921, %v2921
        %v2954 = vpack.c.bf16 %v2922, %v2922
        %v2955 = vpack.c.bf16 %v2923, %v2923
        %v2956 = vpack.c.bf16 %v2924, %v2924
        %v2957 = vpack.c.bf16 %v2925, %v2925
        %v2958 = vpack.c.bf16 %v2926, %v2926
        %v2959 = vpack.c.bf16 %v2927, %v2927
        %v2960 = vpack.c.bf16 %v2928, %v2928
        %v2961 = vpack.c.bf16 %v2929, %v2929
        %v2962 = vpack.c.bf16 %v2930, %v2930
        %v2963 = vpack.c.bf16 %v2931, %v2931
        %v2964 = vpack.c.bf16 %v2932, %v2932
        %2997 = vrot.lane.b32.xlu0 %v2933, 32
        %v2998 = vpop.permute.xlu0 %2997
        %2999 = vrot.lane.b32.xlu0 %v2934, 32
        %v3000 = vpop.permute.xlu0 %2999
        %3001 = vrot.lane.b32.xlu0 %v2935, 32
        %v3002 = vpop.permute.xlu0 %3001
        %3003 = vrot.lane.b32.xlu0 %v2936, 32
        %v3004 = vpop.permute.xlu0 %3003
        %3005 = vrot.lane.b32.xlu0 %v2937, 32
        %v3006 = vpop.permute.xlu0 %3005
        %3007 = vrot.lane.b32.xlu0 %v2938, 32
        %v3008 = vpop.permute.xlu0 %3007
        %3009 = vrot.lane.b32.xlu0 %v2939, 32
        %v3010 = vpop.permute.xlu0 %3009
        %3011 = vrot.lane.b32.xlu0 %v2940, 32
        %v3012 = vpop.permute.xlu0 %3011
        %3013 = vrot.lane.b32.xlu0 %v2941, 32
        %v3014 = vpop.permute.xlu0 %3013
        %3015 = vrot.lane.b32.xlu0 %v2942, 32
        %v3016 = vpop.permute.xlu0 %3015
        %3017 = vrot.lane.b32.xlu0 %v2943, 32
        %v3018 = vpop.permute.xlu0 %3017
        %3019 = vrot.lane.b32.xlu0 %v2944, 32
        %v3020 = vpop.permute.xlu0 %3019
        %3021 = vrot.lane.b32.xlu0 %v2945, 32
        %v3022 = vpop.permute.xlu0 %3021
        %3023 = vrot.lane.b32.xlu0 %v2946, 32
        %v3024 = vpop.permute.xlu0 %3023
        %3025 = vrot.lane.b32.xlu0 %v2947, 32
        %v3026 = vpop.permute.xlu0 %3025
        %3027 = vrot.lane.b32.xlu0 %v2948, 32
        %v3028 = vpop.permute.xlu0 %3027
        %3029 = vrot.lane.b32.xlu0 %v2949, 32
        %v3030 = vpop.permute.xlu0 %3029
        %3031 = vrot.lane.b32.xlu0 %v2950, 32
        %v3032 = vpop.permute.xlu0 %3031
        %3033 = vrot.lane.b32.xlu0 %v2951, 32
        %v3034 = vpop.permute.xlu0 %3033
        %3035 = vrot.lane.b32.xlu0 %v2952, 32
        %v3036 = vpop.permute.xlu0 %3035
        %3037 = vrot.lane.b32.xlu0 %v2953, 32
        %v3038 = vpop.permute.xlu0 %3037
        %3039 = vrot.lane.b32.xlu0 %v2954, 32
        %v3040 = vpop.permute.xlu0 %3039
        %3041 = vrot.lane.b32.xlu0 %v2955, 32
        %v3042 = vpop.permute.xlu0 %3041
        %3043 = vrot.lane.b32.xlu0 %v2956, 32
        %v3044 = vpop.permute.xlu0 %3043
        %3045 = vrot.lane.b32.xlu0 %v2957, 32
        %v3046 = vpop.permute.xlu0 %3045
        %3047 = vrot.lane.b32.xlu0 %v2958, 32
        %v3048 = vpop.permute.xlu0 %3047
        %3049 = vrot.lane.b32.xlu0 %v2959, 32
        %v3050 = vpop.permute.xlu0 %3049
        %3051 = vrot.lane.b32.xlu0 %v2960, 32
        %v3052 = vpop.permute.xlu0 %3051
        %3053 = vrot.lane.b32.xlu0 %v2961, 32
        %v3054 = vpop.permute.xlu0 %3053
        %3055 = vrot.lane.b32.xlu0 %v2962, 32
        %v3056 = vpop.permute.xlu0 %3055
        %3057 = vrot.lane.b32.xlu0 %v2963, 32
        %v3058 = vpop.permute.xlu0 %3057
        %3059 = vrot.lane.b32.xlu0 %v2964, 32
        %v3060 = vpop.permute.xlu0 %3059
        %3093 = vst.msk [vmem:[#allocation3] sm:$0xf] %vm630, %v2998
        %3094 = vst.msk [vmem:[#allocation3 + $0xc] sm:$0xf] %vm630, %v3000
        %3095 = vst.msk [vmem:[#allocation3 + $0x18] sm:$0xf] %vm630, %v3002
        %3096 = vst.msk [vmem:[#allocation3 + $0x24] sm:$0xf] %vm630, %v3004
        %3097 = vst.msk [vmem:[#allocation3 + $0x30] sm:$0xf] %vm630, %v3006
        %3098 = vst.msk [vmem:[#allocation3 + $0x3c] sm:$0xf] %vm630, %v3008
        %3099 = vst.msk [vmem:[#allocation3 + $0x48] sm:$0xf] %vm630, %v3010
        %3100 = vst.msk [vmem:[#allocation3 + $0x54] sm:$0xf] %vm630, %v3012
        %3101 = vst.msk [vmem:[#allocation3 + $0x60] sm:$0xf] %vm630, %v3014
        %3102 = vst.msk [vmem:[#allocation3 + $0x6c] sm:$0xf] %vm630, %v3016
        %3103 = vst.msk [vmem:[#allocation3 + $0x78] sm:$0xf] %vm630, %v3018
        %3104 = vst.msk [vmem:[#allocation3 + $0x84] sm:$0xf] %vm630, %v3020
        %3105 = vst.msk [vmem:[#allocation3 + $0x90] sm:$0xf] %vm630, %v3022
        %3106 = vst.msk [vmem:[#allocation3 + $0x9c] sm:$0xf] %vm630, %v3024
        %3107 = vst.msk [vmem:[#allocation3 + $0xa8] sm:$0xf] %vm630, %v3026
        %3108 = vst.msk [vmem:[#allocation3 + $0xb4] sm:$0xf] %vm630, %v3028
        %3109 = vst.msk [vmem:[#allocation3 + $0xc0] sm:$0xf] %vm630, %v3030
        %3110 = vst.msk [vmem:[#allocation3 + $0xcc] sm:$0xf] %vm630, %v3032
        %3111 = vst.msk [vmem:[#allocation3 + $0xd8] sm:$0xf] %vm630, %v3034
        %3112 = vst.msk [vmem:[#allocation3 + $0xe4] sm:$0xf] %vm630, %v3036
        %3113 = vst.msk [vmem:[#allocation3 + $0xf0] sm:$0xf] %vm630, %v3038
        %3114 = vst.msk [vmem:[#allocation3 + $0xfc] sm:$0xf] %vm630, %v3040
        %3115 = vst.msk [vmem:[#allocation3 + $0x108] sm:$0xf] %vm630, %v3042
        %3116 = vst.msk [vmem:[#allocation3 + $0x114] sm:$0xf] %vm630, %v3044
        %3117 = vst.msk [vmem:[#allocation3 + $0x120] sm:$0xf] %vm630, %v3046
        %3118 = vst.msk [vmem:[#allocation3 + $0x12c] sm:$0xf] %vm630, %v3048
        %3119 = vst.msk [vmem:[#allocation3 + $0x138] sm:$0xf] %vm630, %v3050
        %3120 = vst.msk [vmem:[#allocation3 + $0x144] sm:$0xf] %vm630, %v3052
        %3121 = vst.msk [vmem:[#allocation3 + $0x150] sm:$0xf] %vm630, %v3054
        %3122 = vst.msk [vmem:[#allocation3 + $0x15c] sm:$0xf] %vm630, %v3056
        %3123 = vst.msk [vmem:[#allocation3 + $0x168] sm:$0xf] %vm630, %v3058
        %3124 = vst.msk [vmem:[#allocation3 + $0x174] sm:$0xf] %vm630, %v3060
        %v3125 = vld [vmem:[#allocation2 + $0x2] sm:$0xff]
        %v3126 = vld [vmem:[#allocation2 + $0xa] sm:$0xff]
        %v3127 = vld [vmem:[#allocation2 + $0x1a] sm:$0xff]
        %v3128 = vld [vmem:[#allocation2 + $0x22] sm:$0xff]
        %v3129 = vld [vmem:[#allocation2 + $0x32] sm:$0xff]
        %v3130 = vld [vmem:[#allocation2 + $0x3a] sm:$0xff]
        %v3131 = vld [vmem:[#allocation2 + $0x4a] sm:$0xff]
        %v3132 = vld [vmem:[#allocation2 + $0x52] sm:$0xff]
        %v3133 = vld [vmem:[#allocation2 + $0x62] sm:$0xff]
        %v3134 = vld [vmem:[#allocation2 + $0x6a] sm:$0xff]
        %v3135 = vld [vmem:[#allocation2 + $0x7a] sm:$0xff]
        %v3136 = vld [vmem:[#allocation2 + $0x82] sm:$0xff]
        %v3137 = vld [vmem:[#allocation2 + $0x92] sm:$0xff]
        %v3138 = vld [vmem:[#allocation2 + $0x9a] sm:$0xff]
        %v3139 = vld [vmem:[#allocation2 + $0xaa] sm:$0xff]
        %v3140 = vld [vmem:[#allocation2 + $0xb2] sm:$0xff]
        %v3141 = vld [vmem:[#allocation2 + $0xc2] sm:$0xff]
        %v3142 = vld [vmem:[#allocation2 + $0xca] sm:$0xff]
        %v3143 = vld [vmem:[#allocation2 + $0xda] sm:$0xff]
        %v3144 = vld [vmem:[#allocation2 + $0xe2] sm:$0xff]
        %v3145 = vld [vmem:[#allocation2 + $0xf2] sm:$0xff]
        %v3146 = vld [vmem:[#allocation2 + $0xfa] sm:$0xff]
        %v3147 = vld [vmem:[#allocation2 + $0x10a] sm:$0xff]
        %v3148 = vld [vmem:[#allocation2 + $0x112] sm:$0xff]
        %v3149 = vld [vmem:[#allocation2 + $0x122] sm:$0xff]
        %v3150 = vld [vmem:[#allocation2 + $0x12a] sm:$0xff]
        %v3151 = vld [vmem:[#allocation2 + $0x13a] sm:$0xff]
        %v3152 = vld [vmem:[#allocation2 + $0x142] sm:$0xff]
        %v3153 = vld [vmem:[#allocation2 + $0x152] sm:$0xff]
        %v3154 = vld [vmem:[#allocation2 + $0x15a] sm:$0xff]
        %v3155 = vld [vmem:[#allocation2 + $0x16a] sm:$0xff]
        %v3156 = vld [vmem:[#allocation2 + $0x172] sm:$0xff]
        %v3157 = vpack.c.bf16 %v3125, %v3125
        %v3158 = vpack.c.bf16 %v3126, %v3126
        %v3159 = vpack.c.bf16 %v3127, %v3127
        %v3160 = vpack.c.bf16 %v3128, %v3128
        %v3161 = vpack.c.bf16 %v3129, %v3129
        %v3162 = vpack.c.bf16 %v3130, %v3130
        %v3163 = vpack.c.bf16 %v3131, %v3131
        %v3164 = vpack.c.bf16 %v3132, %v3132
        %v3165 = vpack.c.bf16 %v3133, %v3133
        %v3166 = vpack.c.bf16 %v3134, %v3134
        %v3167 = vpack.c.bf16 %v3135, %v3135
        %v3168 = vpack.c.bf16 %v3136, %v3136
        %v3169 = vpack.c.bf16 %v3137, %v3137
        %v3170 = vpack.c.bf16 %v3138, %v3138
        %v3171 = vpack.c.bf16 %v3139, %v3139
        %v3172 = vpack.c.bf16 %v3140, %v3140
        %v3173 = vpack.c.bf16 %v3141, %v3141
        %v3174 = vpack.c.bf16 %v3142, %v3142
        %v3175 = vpack.c.bf16 %v3143, %v3143
        %v3176 = vpack.c.bf16 %v3144, %v3144
        %v3177 = vpack.c.bf16 %v3145, %v3145
        %v3178 = vpack.c.bf16 %v3146, %v3146
        %v3179 = vpack.c.bf16 %v3147, %v3147
        %v3180 = vpack.c.bf16 %v3148, %v3148
        %v3181 = vpack.c.bf16 %v3149, %v3149
        %v3182 = vpack.c.bf16 %v3150, %v3150
        %v3183 = vpack.c.bf16 %v3151, %v3151
        %v3184 = vpack.c.bf16 %v3152, %v3152
        %v3185 = vpack.c.bf16 %v3153, %v3153
        %v3186 = vpack.c.bf16 %v3154, %v3154
        %v3187 = vpack.c.bf16 %v3155, %v3155
        %v3188 = vpack.c.bf16 %v3156, %v3156
        %3221 = vrot.lane.b32.xlu0 %v3157, 64
        %v3222 = vpop.permute.xlu0 %3221
        %3223 = vrot.lane.b32.xlu0 %v3158, 64
        %v3224 = vpop.permute.xlu0 %3223
        %3225 = vrot.lane.b32.xlu0 %v3159, 64
        %v3226 = vpop.permute.xlu0 %3225
        %3227 = vrot.lane.b32.xlu0 %v3160, 64
        %v3228 = vpop.permute.xlu0 %3227
        %3229 = vrot.lane.b32.xlu0 %v3161, 64
        %v3230 = vpop.permute.xlu0 %3229
        %3231 = vrot.lane.b32.xlu0 %v3162, 64
        %v3232 = vpop.permute.xlu0 %3231
        %3233 = vrot.lane.b32.xlu0 %v3163, 64
        %v3234 = vpop.permute.xlu0 %3233
        %3235 = vrot.lane.b32.xlu0 %v3164, 64
        %v3236 = vpop.permute.xlu0 %3235
        %3237 = vrot.lane.b32.xlu0 %v3165, 64
        %v3238 = vpop.permute.xlu0 %3237
        %3239 = vrot.lane.b32.xlu0 %v3166, 64
        %v3240 = vpop.permute.xlu0 %3239
        %3241 = vrot.lane.b32.xlu0 %v3167, 64
        %v3242 = vpop.permute.xlu0 %3241
        %3243 = vrot.lane.b32.xlu0 %v3168, 64
        %v3244 = vpop.permute.xlu0 %3243
        %3245 = vrot.lane.b32.xlu0 %v3169, 64
        %v3246 = vpop.permute.xlu0 %3245
        %3247 = vrot.lane.b32.xlu0 %v3170, 64
        %v3248 = vpop.permute.xlu0 %3247
        %3249 = vrot.lane.b32.xlu0 %v3171, 64
        %v3250 = vpop.permute.xlu0 %3249
        %3251 = vrot.lane.b32.xlu0 %v3172, 64
        %v3252 = vpop.permute.xlu0 %3251
        %3253 = vrot.lane.b32.xlu0 %v3173, 64
        %v3254 = vpop.permute.xlu0 %3253
        %3255 = vrot.lane.b32.xlu0 %v3174, 64
        %v3256 = vpop.permute.xlu0 %3255
        %3257 = vrot.lane.b32.xlu0 %v3175, 64
        %v3258 = vpop.permute.xlu0 %3257
        %3259 = vrot.lane.b32.xlu0 %v3176, 64
        %v3260 = vpop.permute.xlu0 %3259
        %3261 = vrot.lane.b32.xlu0 %v3177, 64
        %v3262 = vpop.permute.xlu0 %3261
        %3263 = vrot.lane.b32.xlu0 %v3178, 64
        %v3264 = vpop.permute.xlu0 %3263
        %3265 = vrot.lane.b32.xlu0 %v3179, 64
        %v3266 = vpop.permute.xlu0 %3265
        %3267 = vrot.lane.b32.xlu0 %v3180, 64
        %v3268 = vpop.permute.xlu0 %3267
        %3269 = vrot.lane.b32.xlu0 %v3181, 64
        %v3270 = vpop.permute.xlu0 %3269
        %3271 = vrot.lane.b32.xlu0 %v3182, 64
        %v3272 = vpop.permute.xlu0 %3271
        %3273 = vrot.lane.b32.xlu0 %v3183, 64
        %v3274 = vpop.permute.xlu0 %3273
        %3275 = vrot.lane.b32.xlu0 %v3184, 64
        %v3276 = vpop.permute.xlu0 %3275
        %3277 = vrot.lane.b32.xlu0 %v3185, 64
        %v3278 = vpop.permute.xlu0 %3277
        %3279 = vrot.lane.b32.xlu0 %v3186, 64
        %v3280 = vpop.permute.xlu0 %3279
        %3281 = vrot.lane.b32.xlu0 %v3187, 64
        %v3282 = vpop.permute.xlu0 %3281
        %3283 = vrot.lane.b32.xlu0 %v3188, 64
        %v3284 = vpop.permute.xlu0 %3283
        %3317 = vst.msk [vmem:[#allocation3] sm:$0xf] %vm855, %v3222
        %3318 = vst.msk [vmem:[#allocation3 + $0xc] sm:$0xf] %vm855, %v3224
        %3319 = vst.msk [vmem:[#allocation3 + $0x18] sm:$0xf] %vm855, %v3226
        %3320 = vst.msk [vmem:[#allocation3 + $0x24] sm:$0xf] %vm855, %v3228
        %3321 = vst.msk [vmem:[#allocation3 + $0x30] sm:$0xf] %vm855, %v3230
        %3322 = vst.msk [vmem:[#allocation3 + $0x3c] sm:$0xf] %vm855, %v3232
        %3323 = vst.msk [vmem:[#allocation3 + $0x48] sm:$0xf] %vm855, %v3234
        %3324 = vst.msk [vmem:[#allocation3 + $0x54] sm:$0xf] %vm855, %v3236
        %3325 = vst.msk [vmem:[#allocation3 + $0x60] sm:$0xf] %vm855, %v3238
        %3326 = vst.msk [vmem:[#allocation3 + $0x6c] sm:$0xf] %vm855, %v3240
        %3327 = vst.msk [vmem:[#allocation3 + $0x78] sm:$0xf] %vm855, %v3242
        %3328 = vst.msk [vmem:[#allocation3 + $0x84] sm:$0xf] %vm855, %v3244
        %3329 = vst.msk [vmem:[#allocation3 + $0x90] sm:$0xf] %vm855, %v3246
        %3330 = vst.msk [vmem:[#allocation3 + $0x9c] sm:$0xf] %vm855, %v3248
        %3331 = vst.msk [vmem:[#allocation3 + $0xa8] sm:$0xf] %vm855, %v3250
        %3332 = vst.msk [vmem:[#allocation3 + $0xb4] sm:$0xf] %vm855, %v3252
        %3333 = vst.msk [vmem:[#allocation3 + $0xc0] sm:$0xf] %vm855, %v3254
        %3334 = vst.msk [vmem:[#allocation3 + $0xcc] sm:$0xf] %vm855, %v3256
        %3335 = vst.msk [vmem:[#allocation3 + $0xd8] sm:$0xf] %vm855, %v3258
        %3336 = vst.msk [vmem:[#allocation3 + $0xe4] sm:$0xf] %vm855, %v3260
        %3337 = vst.msk [vmem:[#allocation3 + $0xf0] sm:$0xf] %vm855, %v3262
        %3338 = vst.msk [vmem:[#allocation3 + $0xfc] sm:$0xf] %vm855, %v3264
        %3339 = vst.msk [vmem:[#allocation3 + $0x108] sm:$0xf] %vm855, %v3266
        %3340 = vst.msk [vmem:[#allocation3 + $0x114] sm:$0xf] %vm855, %v3268
        %3341 = vst.msk [vmem:[#allocation3 + $0x120] sm:$0xf] %vm855, %v3270
        %3342 = vst.msk [vmem:[#allocation3 + $0x12c] sm:$0xf] %vm855, %v3272
        %3343 = vst.msk [vmem:[#allocation3 + $0x138] sm:$0xf] %vm855, %v3274
        %3344 = vst.msk [vmem:[#allocation3 + $0x144] sm:$0xf] %vm855, %v3276
        %3345 = vst.msk [vmem:[#allocation3 + $0x150] sm:$0xf] %vm855, %v3278
        %3346 = vst.msk [vmem:[#allocation3 + $0x15c] sm:$0xf] %vm855, %v3280
        %3347 = vst.msk [vmem:[#allocation3 + $0x168] sm:$0xf] %vm855, %v3282
        %3348 = vst.msk [vmem:[#allocation3 + $0x174] sm:$0xf] %vm855, %v3284
        %v3349 = vld [vmem:[%s272] sm:$0xff]
        %v3350 = vld [vmem:[%s272 + $0x8] sm:$0xff]
        %v3351 = vld [vmem:[%s272 + $0x18] sm:$0xff]
        %v3352 = vld [vmem:[%s272 + $0x20] sm:$0xff]
        %v3353 = vld [vmem:[%s272 + $0x30] sm:$0xff]
        %v3354 = vld [vmem:[%s272 + $0x38] sm:$0xff]
        %v3355 = vld [vmem:[%s272 + $0x48] sm:$0xff]
        %v3356 = vld [vmem:[%s272 + $0x50] sm:$0xff]
        %v3357 = vld [vmem:[%s272 + $0x60] sm:$0xff]
        %v3358 = vld [vmem:[%s272 + $0x68] sm:$0xff]
        %v3359 = vld [vmem:[%s272 + $0x78] sm:$0xff]
        %v3360 = vld [vmem:[%s272 + $0x80] sm:$0xff]
        %v3361 = vld [vmem:[%s272 + $0x90] sm:$0xff]
        %v3362 = vld [vmem:[%s272 + $0x98] sm:$0xff]
        %v3363 = vld [vmem:[%s272 + $0xa8] sm:$0xff]
        %v3364 = vld [vmem:[%s272 + $0xb0] sm:$0xff]
        %v3365 = vld [vmem:[%s272 + $0xc0] sm:$0xff]
        %v3366 = vld [vmem:[%s272 + $0xc8] sm:$0xff]
        %v3367 = vld [vmem:[%s272 + $0xd8] sm:$0xff]
        %v3368 = vld [vmem:[%s272 + $0xe0] sm:$0xff]
        %v3369 = vld [vmem:[%s272 + $0xf0] sm:$0xff]
        %v3370 = vld [vmem:[%s272 + $0xf8] sm:$0xff]
        %v3371 = vld [vmem:[%s272 + $0x108] sm:$0xff]
        %v3372 = vld [vmem:[%s272 + $0x110] sm:$0xff]
        %v3373 = vld [vmem:[%s272 + $0x120] sm:$0xff]
        %v3374 = vld [vmem:[%s272 + $0x128] sm:$0xff]
        %v3375 = vld [vmem:[%s272 + $0x138] sm:$0xff]
        %v3376 = vld [vmem:[%s272 + $0x140] sm:$0xff]
        %v3377 = vld [vmem:[%s272 + $0x150] sm:$0xff]
        %v3378 = vld [vmem:[%s272 + $0x158] sm:$0xff]
        %v3379 = vld [vmem:[%s272 + $0x168] sm:$0xff]
        %v3380 = vld [vmem:[%s272 + $0x170] sm:$0xff]
        %v3381 = vpack.c.bf16 %v3349, %v3349
        %v3382 = vpack.c.bf16 %v3350, %v3350
        %v3383 = vpack.c.bf16 %v3351, %v3351
        %v3384 = vpack.c.bf16 %v3352, %v3352
        %v3385 = vpack.c.bf16 %v3353, %v3353
        %v3386 = vpack.c.bf16 %v3354, %v3354
        %v3387 = vpack.c.bf16 %v3355, %v3355
        %v3388 = vpack.c.bf16 %v3356, %v3356
        %v3389 = vpack.c.bf16 %v3357, %v3357
        %v3390 = vpack.c.bf16 %v3358, %v3358
        %v3391 = vpack.c.bf16 %v3359, %v3359
        %v3392 = vpack.c.bf16 %v3360, %v3360
        %v3393 = vpack.c.bf16 %v3361, %v3361
        %v3394 = vpack.c.bf16 %v3362, %v3362
        %v3395 = vpack.c.bf16 %v3363, %v3363
        %v3396 = vpack.c.bf16 %v3364, %v3364
        %v3397 = vpack.c.bf16 %v3365, %v3365
        %v3398 = vpack.c.bf16 %v3366, %v3366
        %v3399 = vpack.c.bf16 %v3367, %v3367
        %v3400 = vpack.c.bf16 %v3368, %v3368
        %v3401 = vpack.c.bf16 %v3369, %v3369
        %v3402 = vpack.c.bf16 %v3370, %v3370
        %v3403 = vpack.c.bf16 %v3371, %v3371
        %v3404 = vpack.c.bf16 %v3372, %v3372
        %v3405 = vpack.c.bf16 %v3373, %v3373
        %v3406 = vpack.c.bf16 %v3374, %v3374
        %v3407 = vpack.c.bf16 %v3375, %v3375
        %v3408 = vpack.c.bf16 %v3376, %v3376
        %v3409 = vpack.c.bf16 %v3377, %v3377
        %v3410 = vpack.c.bf16 %v3378, %v3378
        %v3411 = vpack.c.bf16 %v3379, %v3379
        %v3412 = vpack.c.bf16 %v3380, %v3380
        %3445 = vrot.lane.b32.xlu0 %v3381, 96
        %v3446 = vpop.permute.xlu0 %3445
        %3447 = vrot.lane.b32.xlu0 %v3382, 96
        %v3448 = vpop.permute.xlu0 %3447
        %3449 = vrot.lane.b32.xlu0 %v3383, 96
        %v3450 = vpop.permute.xlu0 %3449
        %3451 = vrot.lane.b32.xlu0 %v3384, 96
        %v3452 = vpop.permute.xlu0 %3451
        %3453 = vrot.lane.b32.xlu0 %v3385, 96
        %v3454 = vpop.permute.xlu0 %3453
        %3455 = vrot.lane.b32.xlu0 %v3386, 96
        %v3456 = vpop.permute.xlu0 %3455
        %3457 = vrot.lane.b32.xlu0 %v3387, 96
        %v3458 = vpop.permute.xlu0 %3457
        %3459 = vrot.lane.b32.xlu0 %v3388, 96
        %v3460 = vpop.permute.xlu0 %3459
        %3461 = vrot.lane.b32.xlu0 %v3389, 96
        %v3462 = vpop.permute.xlu0 %3461
        %3463 = vrot.lane.b32.xlu0 %v3390, 96
        %v3464 = vpop.permute.xlu0 %3463
        %3465 = vrot.lane.b32.xlu0 %v3391, 96
        %v3466 = vpop.permute.xlu0 %3465
        %3467 = vrot.lane.b32.xlu0 %v3392, 96
        %v3468 = vpop.permute.xlu0 %3467
        %3469 = vrot.lane.b32.xlu0 %v3393, 96
        %v3470 = vpop.permute.xlu0 %3469
        %3471 = vrot.lane.b32.xlu0 %v3394, 96
        %v3472 = vpop.permute.xlu0 %3471
        %3473 = vrot.lane.b32.xlu0 %v3395, 96
        %v3474 = vpop.permute.xlu0 %3473
        %3475 = vrot.lane.b32.xlu0 %v3396, 96
        %v3476 = vpop.permute.xlu0 %3475
        %3477 = vrot.lane.b32.xlu0 %v3397, 96
        %v3478 = vpop.permute.xlu0 %3477
        %3479 = vrot.lane.b32.xlu0 %v3398, 96
        %v3480 = vpop.permute.xlu0 %3479
        %3481 = vrot.lane.b32.xlu0 %v3399, 96
        %v3482 = vpop.permute.xlu0 %3481
        %3483 = vrot.lane.b32.xlu0 %v3400, 96
        %v3484 = vpop.permute.xlu0 %3483
        %3485 = vrot.lane.b32.xlu0 %v3401, 96
        %v3486 = vpop.permute.xlu0 %3485
        %3487 = vrot.lane.b32.xlu0 %v3402, 96
        %v3488 = vpop.permute.xlu0 %3487
        %3489 = vrot.lane.b32.xlu0 %v3403, 96
        %v3490 = vpop.permute.xlu0 %3489
        %3491 = vrot.lane.b32.xlu0 %v3404, 96
        %v3492 = vpop.permute.xlu0 %3491
        %3493 = vrot.lane.b32.xlu0 %v3405, 96
        %v3494 = vpop.permute.xlu0 %3493
        %3495 = vrot.lane.b32.xlu0 %v3406, 96
        %v3496 = vpop.permute.xlu0 %3495
        %3497 = vrot.lane.b32.xlu0 %v3407, 96
        %v3498 = vpop.permute.xlu0 %3497
        %3499 = vrot.lane.b32.xlu0 %v3408, 96
        %v3500 = vpop.permute.xlu0 %3499
        %3501 = vrot.lane.b32.xlu0 %v3409, 96
        %v3502 = vpop.permute.xlu0 %3501
        %3503 = vrot.lane.b32.xlu0 %v3410, 96
        %v3504 = vpop.permute.xlu0 %3503
        %3505 = vrot.lane.b32.xlu0 %v3411, 96
        %v3506 = vpop.permute.xlu0 %3505
        %3507 = vrot.lane.b32.xlu0 %v3412, 96
        %v3508 = vpop.permute.xlu0 %3507
        %3541 = vst.msk [vmem:[#allocation3] sm:$0xf] %vm1080, %v3446
        %3542 = vst.msk [vmem:[#allocation3 + $0xc] sm:$0xf] %vm1080, %v3448
        %3543 = vst.msk [vmem:[#allocation3 + $0x18] sm:$0xf] %vm1080, %v3450
        %3544 = vst.msk [vmem:[#allocation3 + $0x24] sm:$0xf] %vm1080, %v3452
        %3545 = vst.msk [vmem:[#allocation3 + $0x30] sm:$0xf] %vm1080, %v3454
        %3546 = vst.msk [vmem:[#allocation3 + $0x3c] sm:$0xf] %vm1080, %v3456
        %3547 = vst.msk [vmem:[#allocation3 + $0x48] sm:$0xf] %vm1080, %v3458
        %3548 = vst.msk [vmem:[#allocation3 + $0x54] sm:$0xf] %vm1080, %v3460
        %3549 = vst.msk [vmem:[#allocation3 + $0x60] sm:$0xf] %vm1080, %v3462
        %3550 = vst.msk [vmem:[#allocation3 + $0x6c] sm:$0xf] %vm1080, %v3464
        %3551 = vst.msk [vmem:[#allocation3 + $0x78] sm:$0xf] %vm1080, %v3466
        %3552 = vst.msk [vmem:[#allocation3 + $0x84] sm:$0xf] %vm1080, %v3468
        %3553 = vst.msk [vmem:[#allocation3 + $0x90] sm:$0xf] %vm1080, %v3470
        %3554 = vst.msk [vmem:[#allocation3 + $0x9c] sm:$0xf] %vm1080, %v3472
        %3555 = vst.msk [vmem:[#allocation3 + $0xa8] sm:$0xf] %vm1080, %v3474
        %3556 = vst.msk [vmem:[#allocation3 + $0xb4] sm:$0xf] %vm1080, %v3476
        %3557 = vst.msk [vmem:[#allocation3 + $0xc0] sm:$0xf] %vm1080, %v3478
        %3558 = vst.msk [vmem:[#allocation3 + $0xcc] sm:$0xf] %vm1080, %v3480
        %3559 = vst.msk [vmem:[#allocation3 + $0xd8] sm:$0xf] %vm1080, %v3482
        %3560 = vst.msk [vmem:[#allocation3 + $0xe4] sm:$0xf] %vm1080, %v3484
        %3561 = vst.msk [vmem:[#allocation3 + $0xf0] sm:$0xf] %vm1080, %v3486
        %3562 = vst.msk [vmem:[#allocation3 + $0xfc] sm:$0xf] %vm1080, %v3488
        %3563 = vst.msk [vmem:[#allocation3 + $0x108] sm:$0xf] %vm1080, %v3490
        %3564 = vst.msk [vmem:[#allocation3 + $0x114] sm:$0xf] %vm1080, %v3492
        %3565 = vst.msk [vmem:[#allocation3 + $0x120] sm:$0xf] %vm1080, %v3494
        %3566 = vst.msk [vmem:[#allocation3 + $0x12c] sm:$0xf] %vm1080, %v3496
        %3567 = vst.msk [vmem:[#allocation3 + $0x138] sm:$0xf] %vm1080, %v3498
        %3568 = vst.msk [vmem:[#allocation3 + $0x144] sm:$0xf] %vm1080, %v3500
        %3569 = vst.msk [vmem:[#allocation3 + $0x150] sm:$0xf] %vm1080, %v3502
        %3570 = vst.msk [vmem:[#allocation3 + $0x15c] sm:$0xf] %vm1080, %v3504
        %3571 = vst.msk [vmem:[#allocation3 + $0x168] sm:$0xf] %vm1080, %v3506
        %3572 = vst.msk [vmem:[#allocation3 + $0x174] sm:$0xf] %vm1080, %v3508
        %v3573 = vld [vmem:[%s272 + $0x1] sm:$0xff]
        %v3574 = vld [vmem:[%s272 + $0x9] sm:$0xff]
        %v3575 = vld [vmem:[%s272 + $0x19] sm:$0xff]
        %v3576 = vld [vmem:[%s272 + $0x21] sm:$0xff]
        %v3577 = vld [vmem:[%s272 + $0x31] sm:$0xff]
        %v3578 = vld [vmem:[%s272 + $0x39] sm:$0xff]
        %v3579 = vld [vmem:[%s272 + $0x49] sm:$0xff]
        %v3580 = vld [vmem:[%s272 + $0x51] sm:$0xff]
        %v3581 = vld [vmem:[%s272 + $0x61] sm:$0xff]
        %v3582 = vld [vmem:[%s272 + $0x69] sm:$0xff]
        %v3583 = vld [vmem:[%s272 + $0x79] sm:$0xff]
        %v3584 = vld [vmem:[%s272 + $0x81] sm:$0xff]
        %v3585 = vld [vmem:[%s272 + $0x91] sm:$0xff]
        %v3586 = vld [vmem:[%s272 + $0x99] sm:$0xff]
        %v3587 = vld [vmem:[%s272 + $0xa9] sm:$0xff]
        %v3588 = vld [vmem:[%s272 + $0xb1] sm:$0xff]
        %v3589 = vld [vmem:[%s272 + $0xc1] sm:$0xff]
        %v3590 = vld [vmem:[%s272 + $0xc9] sm:$0xff]
        %v3591 = vld [vmem:[%s272 + $0xd9] sm:$0xff]
        %v3592 = vld [vmem:[%s272 + $0xe1] sm:$0xff]
        %v3593 = vld [vmem:[%s272 + $0xf1] sm:$0xff]
        %v3594 = vld [vmem:[%s272 + $0xf9] sm:$0xff]
        %v3595 = vld [vmem:[%s272 + $0x109] sm:$0xff]
        %v3596 = vld [vmem:[%s272 + $0x111] sm:$0xff]
        %v3597 = vld [vmem:[%s272 + $0x121] sm:$0xff]
        %v3598 = vld [vmem:[%s272 + $0x129] sm:$0xff]
        %v3599 = vld [vmem:[%s272 + $0x139] sm:$0xff]
        %v3600 = vld [vmem:[%s272 + $0x141] sm:$0xff]
        %v3601 = vld [vmem:[%s272 + $0x151] sm:$0xff]
        %v3602 = vld [vmem:[%s272 + $0x159] sm:$0xff]
        %v3603 = vld [vmem:[%s272 + $0x169] sm:$0xff]
        %v3604 = vld [vmem:[%s272 + $0x171] sm:$0xff]
        %v3605 = vpack.c.bf16 %v3573, %v3573
        %v3606 = vpack.c.bf16 %v3574, %v3574
        %v3607 = vpack.c.bf16 %v3575, %v3575
        %v3608 = vpack.c.bf16 %v3576, %v3576
        %v3609 = vpack.c.bf16 %v3577, %v3577
        %v3610 = vpack.c.bf16 %v3578, %v3578
        %v3611 = vpack.c.bf16 %v3579, %v3579
        %v3612 = vpack.c.bf16 %v3580, %v3580
        %v3613 = vpack.c.bf16 %v3581, %v3581
        %v3614 = vpack.c.bf16 %v3582, %v3582
        %v3615 = vpack.c.bf16 %v3583, %v3583
        %v3616 = vpack.c.bf16 %v3584, %v3584
        %v3617 = vpack.c.bf16 %v3585, %v3585
        %v3618 = vpack.c.bf16 %v3586, %v3586
        %v3619 = vpack.c.bf16 %v3587, %v3587
        %v3620 = vpack.c.bf16 %v3588, %v3588
        %v3621 = vpack.c.bf16 %v3589, %v3589
        %v3622 = vpack.c.bf16 %v3590, %v3590
        %v3623 = vpack.c.bf16 %v3591, %v3591
        %v3624 = vpack.c.bf16 %v3592, %v3592
        %v3625 = vpack.c.bf16 %v3593, %v3593
        %v3626 = vpack.c.bf16 %v3594, %v3594
        %v3627 = vpack.c.bf16 %v3595, %v3595
        %v3628 = vpack.c.bf16 %v3596, %v3596
        %v3629 = vpack.c.bf16 %v3597, %v3597
        %v3630 = vpack.c.bf16 %v3598, %v3598
        %v3631 = vpack.c.bf16 %v3599, %v3599
        %v3632 = vpack.c.bf16 %v3600, %v3600
        %v3633 = vpack.c.bf16 %v3601, %v3601
        %v3634 = vpack.c.bf16 %v3602, %v3602
        %v3635 = vpack.c.bf16 %v3603, %v3603
        %v3636 = vpack.c.bf16 %v3604, %v3604
        %3637 = vst.msk [vmem:[#allocation3 + $0x4] sm:$0xf] %vm405, %v3605
        %3638 = vst.msk [vmem:[#allocation3 + $0x10] sm:$0xf] %vm405, %v3606
        %3639 = vst.msk [vmem:[#allocation3 + $0x1c] sm:$0xf] %vm405, %v3607
        %3640 = vst.msk [vmem:[#allocation3 + $0x28] sm:$0xf] %vm405, %v3608
        %3641 = vst.msk [vmem:[#allocation3 + $0x34] sm:$0xf] %vm405, %v3609
        %3642 = vst.msk [vmem:[#allocation3 + $0x40] sm:$0xf] %vm405, %v3610
        %3643 = vst.msk [vmem:[#allocation3 + $0x4c] sm:$0xf] %vm405, %v3611
        %3644 = vst.msk [vmem:[#allocation3 + $0x58] sm:$0xf] %vm405, %v3612
        %3645 = vst.msk [vmem:[#allocation3 + $0x64] sm:$0xf] %vm405, %v3613
        %3646 = vst.msk [vmem:[#allocation3 + $0x70] sm:$0xf] %vm405, %v3614
        %3647 = vst.msk [vmem:[#allocation3 + $0x7c] sm:$0xf] %vm405, %v3615
        %3648 = vst.msk [vmem:[#allocation3 + $0x88] sm:$0xf] %vm405, %v3616
        %3649 = vst.msk [vmem:[#allocation3 + $0x94] sm:$0xf] %vm405, %v3617
        %3650 = vst.msk [vmem:[#allocation3 + $0xa0] sm:$0xf] %vm405, %v3618
        %3651 = vst.msk [vmem:[#allocation3 + $0xac] sm:$0xf] %vm405, %v3619
        %3652 = vst.msk [vmem:[#allocation3 + $0xb8] sm:$0xf] %vm405, %v3620
        %3653 = vst.msk [vmem:[#allocation3 + $0xc4] sm:$0xf] %vm405, %v3621
        %3654 = vst.msk [vmem:[#allocation3 + $0xd0] sm:$0xf] %vm405, %v3622
        %3655 = vst.msk [vmem:[#allocation3 + $0xdc] sm:$0xf] %vm405, %v3623
        %3656 = vst.msk [vmem:[#allocation3 + $0xe8] sm:$0xf] %vm405, %v3624
        %3657 = vst.msk [vmem:[#allocation3 + $0xf4] sm:$0xf] %vm405, %v3625
        %3658 = vst.msk [vmem:[#allocation3 + $0x100] sm:$0xf] %vm405, %v3626
        %3659 = vst.msk [vmem:[#allocation3 + $0x10c] sm:$0xf] %vm405, %v3627
        %3660 = vst.msk [vmem:[#allocation3 + $0x118] sm:$0xf] %vm405, %v3628
        %3661 = vst.msk [vmem:[#allocation3 + $0x124] sm:$0xf] %vm405, %v3629
        %3662 = vst.msk [vmem:[#allocation3 + $0x130] sm:$0xf] %vm405, %v3630
        %3663 = vst.msk [vmem:[#allocation3 + $0x13c] sm:$0xf] %vm405, %v3631
        %3664 = vst.msk [vmem:[#allocation3 + $0x148] sm:$0xf] %vm405, %v3632
        %3665 = vst.msk [vmem:[#allocation3 + $0x154] sm:$0xf] %vm405, %v3633
        %3666 = vst.msk [vmem:[#allocation3 + $0x160] sm:$0xf] %vm405, %v3634
        %3667 = vst.msk [vmem:[#allocation3 + $0x16c] sm:$0xf] %vm405, %v3635
        %3668 = vst.msk [vmem:[#allocation3 + $0x178] sm:$0xf] %vm405, %v3636
        %v3669 = vld [vmem:[%s272 + $0x2] sm:$0xff]
        %v3670 = vld [vmem:[%s272 + $0xa] sm:$0xff]
        %v3671 = vld [vmem:[%s272 + $0x1a] sm:$0xff]
        %v3672 = vld [vmem:[%s272 + $0x22] sm:$0xff]
        %v3673 = vld [vmem:[%s272 + $0x32] sm:$0xff]
        %v3674 = vld [vmem:[%s272 + $0x3a] sm:$0xff]
        %v3675 = vld [vmem:[%s272 + $0x4a] sm:$0xff]
        %v3676 = vld [vmem:[%s272 + $0x52] sm:$0xff]
        %v3677 = vld [vmem:[%s272 + $0x62] sm:$0xff]
        %v3678 = vld [vmem:[%s272 + $0x6a] sm:$0xff]
        %v3679 = vld [vmem:[%s272 + $0x7a] sm:$0xff]
        %v3680 = vld [vmem:[%s272 + $0x82] sm:$0xff]
        %v3681 = vld [vmem:[%s272 + $0x92] sm:$0xff]
        %v3682 = vld [vmem:[%s272 + $0x9a] sm:$0xff]
        %v3683 = vld [vmem:[%s272 + $0xaa] sm:$0xff]
        %v3684 = vld [vmem:[%s272 + $0xb2] sm:$0xff]
        %v3685 = vld [vmem:[%s272 + $0xc2] sm:$0xff]
        %v3686 = vld [vmem:[%s272 + $0xca] sm:$0xff]
        %v3687 = vld [vmem:[%s272 + $0xda] sm:$0xff]
        %v3688 = vld [vmem:[%s272 + $0xe2] sm:$0xff]
        %v3689 = vld [vmem:[%s272 + $0xf2] sm:$0xff]
        %v3690 = vld [vmem:[%s272 + $0xfa] sm:$0xff]
        %v3691 = vld [vmem:[%s272 + $0x10a] sm:$0xff]
        %v3692 = vld [vmem:[%s272 + $0x112] sm:$0xff]
        %v3693 = vld [vmem:[%s272 + $0x122] sm:$0xff]
        %v3694 = vld [vmem:[%s272 + $0x12a] sm:$0xff]
        %v3695 = vld [vmem:[%s272 + $0x13a] sm:$0xff]
        %v3696 = vld [vmem:[%s272 + $0x142] sm:$0xff]
        %v3697 = vld [vmem:[%s272 + $0x152] sm:$0xff]
        %v3698 = vld [vmem:[%s272 + $0x15a] sm:$0xff]
        %v3699 = vld [vmem:[%s272 + $0x16a] sm:$0xff]
        %v3700 = vld [vmem:[%s272 + $0x172] sm:$0xff]
        %v3701 = vpack.c.bf16 %v3669, %v3669
        %v3702 = vpack.c.bf16 %v3670, %v3670
        %v3703 = vpack.c.bf16 %v3671, %v3671
        %v3704 = vpack.c.bf16 %v3672, %v3672
        %v3705 = vpack.c.bf16 %v3673, %v3673
        %v3706 = vpack.c.bf16 %v3674, %v3674
        %v3707 = vpack.c.bf16 %v3675, %v3675
        %v3708 = vpack.c.bf16 %v3676, %v3676
        %v3709 = vpack.c.bf16 %v3677, %v3677
        %v3710 = vpack.c.bf16 %v3678, %v3678
        %v3711 = vpack.c.bf16 %v3679, %v3679
        %v3712 = vpack.c.bf16 %v3680, %v3680
        %v3713 = vpack.c.bf16 %v3681, %v3681
        %v3714 = vpack.c.bf16 %v3682, %v3682
        %v3715 = vpack.c.bf16 %v3683, %v3683
        %v3716 = vpack.c.bf16 %v3684, %v3684
        %v3717 = vpack.c.bf16 %v3685, %v3685
        %v3718 = vpack.c.bf16 %v3686, %v3686
        %v3719 = vpack.c.bf16 %v3687, %v3687
        %v3720 = vpack.c.bf16 %v3688, %v3688
        %v3721 = vpack.c.bf16 %v3689, %v3689
        %v3722 = vpack.c.bf16 %v3690, %v3690
        %v3723 = vpack.c.bf16 %v3691, %v3691
        %v3724 = vpack.c.bf16 %v3692, %v3692
        %v3725 = vpack.c.bf16 %v3693, %v3693
        %v3726 = vpack.c.bf16 %v3694, %v3694
        %v3727 = vpack.c.bf16 %v3695, %v3695
        %v3728 = vpack.c.bf16 %v3696, %v3696
        %v3729 = vpack.c.bf16 %v3697, %v3697
        %v3730 = vpack.c.bf16 %v3698, %v3698
        %v3731 = vpack.c.bf16 %v3699, %v3699
        %v3732 = vpack.c.bf16 %v3700, %v3700
        %3765 = vrot.lane.b32.xlu0 %v3701, 32
        %v3766 = vpop.permute.xlu0 %3765
        %3767 = vrot.lane.b32.xlu0 %v3702, 32
        %v3768 = vpop.permute.xlu0 %3767
        %3769 = vrot.lane.b32.xlu0 %v3703, 32
        %v3770 = vpop.permute.xlu0 %3769
        %3771 = vrot.lane.b32.xlu0 %v3704, 32
        %v3772 = vpop.permute.xlu0 %3771
        %3773 = vrot.lane.b32.xlu0 %v3705, 32
        %v3774 = vpop.permute.xlu0 %3773
        %3775 = vrot.lane.b32.xlu0 %v3706, 32
        %v3776 = vpop.permute.xlu0 %3775
        %3777 = vrot.lane.b32.xlu0 %v3707, 32
        %v3778 = vpop.permute.xlu0 %3777
        %3779 = vrot.lane.b32.xlu0 %v3708, 32
        %v3780 = vpop.permute.xlu0 %3779
        %3781 = vrot.lane.b32.xlu0 %v3709, 32
        %v3782 = vpop.permute.xlu0 %3781
        %3783 = vrot.lane.b32.xlu0 %v3710, 32
        %v3784 = vpop.permute.xlu0 %3783
        %3785 = vrot.lane.b32.xlu0 %v3711, 32
        %v3786 = vpop.permute.xlu0 %3785
        %3787 = vrot.lane.b32.xlu0 %v3712, 32
        %v3788 = vpop.permute.xlu0 %3787
        %3789 = vrot.lane.b32.xlu0 %v3713, 32
        %v3790 = vpop.permute.xlu0 %3789
        %3791 = vrot.lane.b32.xlu0 %v3714, 32
        %v3792 = vpop.permute.xlu0 %3791
        %3793 = vrot.lane.b32.xlu0 %v3715, 32
        %v3794 = vpop.permute.xlu0 %3793
        %3795 = vrot.lane.b32.xlu0 %v3716, 32
        %v3796 = vpop.permute.xlu0 %3795
        %3797 = vrot.lane.b32.xlu0 %v3717, 32
        %v3798 = vpop.permute.xlu0 %3797
        %3799 = vrot.lane.b32.xlu0 %v3718, 32
        %v3800 = vpop.permute.xlu0 %3799
        %3801 = vrot.lane.b32.xlu0 %v3719, 32
        %v3802 = vpop.permute.xlu0 %3801
        %3803 = vrot.lane.b32.xlu0 %v3720, 32
        %v3804 = vpop.permute.xlu0 %3803
        %3805 = vrot.lane.b32.xlu0 %v3721, 32
        %v3806 = vpop.permute.xlu0 %3805
        %3807 = vrot.lane.b32.xlu0 %v3722, 32
        %v3808 = vpop.permute.xlu0 %3807
        %3809 = vrot.lane.b32.xlu0 %v3723, 32
        %v3810 = vpop.permute.xlu0 %3809
        %3811 = vrot.lane.b32.xlu0 %v3724, 32
        %v3812 = vpop.permute.xlu0 %3811
        %3813 = vrot.lane.b32.xlu0 %v3725, 32
        %v3814 = vpop.permute.xlu0 %3813
        %3815 = vrot.lane.b32.xlu0 %v3726, 32
        %v3816 = vpop.permute.xlu0 %3815
        %3817 = vrot.lane.b32.xlu0 %v3727, 32
        %v3818 = vpop.permute.xlu0 %3817
        %3819 = vrot.lane.b32.xlu0 %v3728, 32
        %v3820 = vpop.permute.xlu0 %3819
        %3821 = vrot.lane.b32.xlu0 %v3729, 32
        %v3822 = vpop.permute.xlu0 %3821
        %3823 = vrot.lane.b32.xlu0 %v3730, 32
        %v3824 = vpop.permute.xlu0 %3823
        %3825 = vrot.lane.b32.xlu0 %v3731, 32
        %v3826 = vpop.permute.xlu0 %3825
        %3827 = vrot.lane.b32.xlu0 %v3732, 32
        %v3828 = vpop.permute.xlu0 %3827
        %3861 = vst.msk [vmem:[#allocation3 + $0x4] sm:$0xf] %vm630, %v3766
        %3862 = vst.msk [vmem:[#allocation3 + $0x10] sm:$0xf] %vm630, %v3768
        %3863 = vst.msk [vmem:[#allocation3 + $0x1c] sm:$0xf] %vm630, %v3770
        %3864 = vst.msk [vmem:[#allocation3 + $0x28] sm:$0xf] %vm630, %v3772
        %3865 = vst.msk [vmem:[#allocation3 + $0x34] sm:$0xf] %vm630, %v3774
        %3866 = vst.msk [vmem:[#allocation3 + $0x40] sm:$0xf] %vm630, %v3776
        %3867 = vst.msk [vmem:[#allocation3 + $0x4c] sm:$0xf] %vm630, %v3778
        %3868 = vst.msk [vmem:[#allocation3 + $0x58] sm:$0xf] %vm630, %v3780
        %3869 = vst.msk [vmem:[#allocation3 + $0x64] sm:$0xf] %vm630, %v3782
        %3870 = vst.msk [vmem:[#allocation3 + $0x70] sm:$0xf] %vm630, %v3784
        %3871 = vst.msk [vmem:[#allocation3 + $0x7c] sm:$0xf] %vm630, %v3786
        %3872 = vst.msk [vmem:[#allocation3 + $0x88] sm:$0xf] %vm630, %v3788
        %3873 = vst.msk [vmem:[#allocation3 + $0x94] sm:$0xf] %vm630, %v3790
        %3874 = vst.msk [vmem:[#allocation3 + $0xa0] sm:$0xf] %vm630, %v3792
        %3875 = vst.msk [vmem:[#allocation3 + $0xac] sm:$0xf] %vm630, %v3794
        %3876 = vst.msk [vmem:[#allocation3 + $0xb8] sm:$0xf] %vm630, %v3796
        %3877 = vst.msk [vmem:[#allocation3 + $0xc4] sm:$0xf] %vm630, %v3798
        %3878 = vst.msk [vmem:[#allocation3 + $0xd0] sm:$0xf] %vm630, %v3800
        %3879 = vst.msk [vmem:[#allocation3 + $0xdc] sm:$0xf] %vm630, %v3802
        %3880 = vst.msk [vmem:[#allocation3 + $0xe8] sm:$0xf] %vm630, %v3804
        %3881 = vst.msk [vmem:[#allocation3 + $0xf4] sm:$0xf] %vm630, %v3806
        %3882 = vst.msk [vmem:[#allocation3 + $0x100] sm:$0xf] %vm630, %v3808
        %3883 = vst.msk [vmem:[#allocation3 + $0x10c] sm:$0xf] %vm630, %v3810
        %3884 = vst.msk [vmem:[#allocation3 + $0x118] sm:$0xf] %vm630, %v3812
        %3885 = vst.msk [vmem:[#allocation3 + $0x124] sm:$0xf] %vm630, %v3814
        %3886 = vst.msk [vmem:[#allocation3 + $0x130] sm:$0xf] %vm630, %v3816
        %3887 = vst.msk [vmem:[#allocation3 + $0x13c] sm:$0xf] %vm630, %v3818
        %3888 = vst.msk [vmem:[#allocation3 + $0x148] sm:$0xf] %vm630, %v3820
        %3889 = vst.msk [vmem:[#allocation3 + $0x154] sm:$0xf] %vm630, %v3822
        %3890 = vst.msk [vmem:[#allocation3 + $0x160] sm:$0xf] %vm630, %v3824
        %3891 = vst.msk [vmem:[#allocation3 + $0x16c] sm:$0xf] %vm630, %v3826
        %3892 = vst.msk [vmem:[#allocation3 + $0x178] sm:$0xf] %vm630, %v3828
        %v3893 = vld [vmem:[%s1433] sm:$0xff]
        %v3894 = vld [vmem:[%s1433 + $0x8] sm:$0xff]
        %v3895 = vld [vmem:[%s1433 + $0x18] sm:$0xff]
        %v3896 = vld [vmem:[%s1433 + $0x20] sm:$0xff]
        %v3897 = vld [vmem:[%s1433 + $0x30] sm:$0xff]
        %v3898 = vld [vmem:[%s1433 + $0x38] sm:$0xff]
        %v3899 = vld [vmem:[%s1433 + $0x48] sm:$0xff]
        %v3900 = vld [vmem:[%s1433 + $0x50] sm:$0xff]
        %v3901 = vld [vmem:[%s1433 + $0x60] sm:$0xff]
        %v3902 = vld [vmem:[%s1433 + $0x68] sm:$0xff]
        %v3903 = vld [vmem:[%s1433 + $0x78] sm:$0xff]
        %v3904 = vld [vmem:[%s1433 + $0x80] sm:$0xff]
        %v3905 = vld [vmem:[%s1433 + $0x90] sm:$0xff]
        %v3906 = vld [vmem:[%s1433 + $0x98] sm:$0xff]
        %v3907 = vld [vmem:[%s1433 + $0xa8] sm:$0xff]
        %v3908 = vld [vmem:[%s1433 + $0xb0] sm:$0xff]
        %v3909 = vld [vmem:[%s1433 + $0xc0] sm:$0xff]
        %v3910 = vld [vmem:[%s1433 + $0xc8] sm:$0xff]
        %v3911 = vld [vmem:[%s1433 + $0xd8] sm:$0xff]
        %v3912 = vld [vmem:[%s1433 + $0xe0] sm:$0xff]
        %v3913 = vld [vmem:[%s1433 + $0xf0] sm:$0xff]
        %v3914 = vld [vmem:[%s1433 + $0xf8] sm:$0xff]
        %v3915 = vld [vmem:[%s1433 + $0x108] sm:$0xff]
        %v3916 = vld [vmem:[%s1433 + $0x110] sm:$0xff]
        %v3917 = vld [vmem:[%s1433 + $0x120] sm:$0xff]
        %v3918 = vld [vmem:[%s1433 + $0x128] sm:$0xff]
        %v3919 = vld [vmem:[%s1433 + $0x138] sm:$0xff]
        %v3920 = vld [vmem:[%s1433 + $0x140] sm:$0xff]
        %v3921 = vld [vmem:[%s1433 + $0x150] sm:$0xff]
        %v3922 = vld [vmem:[%s1433 + $0x158] sm:$0xff]
        %v3923 = vld [vmem:[%s1433 + $0x168] sm:$0xff]
        %v3924 = vld [vmem:[%s1433 + $0x170] sm:$0xff]
        %v3925 = vpack.c.bf16 %v3893, %v3893
        %v3926 = vpack.c.bf16 %v3894, %v3894
        %v3927 = vpack.c.bf16 %v3895, %v3895
        %v3928 = vpack.c.bf16 %v3896, %v3896
        %v3929 = vpack.c.bf16 %v3897, %v3897
        %v3930 = vpack.c.bf16 %v3898, %v3898
        %v3931 = vpack.c.bf16 %v3899, %v3899
        %v3932 = vpack.c.bf16 %v3900, %v3900
        %v3933 = vpack.c.bf16 %v3901, %v3901
        %v3934 = vpack.c.bf16 %v3902, %v3902
        %v3935 = vpack.c.bf16 %v3903, %v3903
        %v3936 = vpack.c.bf16 %v3904, %v3904
        %v3937 = vpack.c.bf16 %v3905, %v3905
        %v3938 = vpack.c.bf16 %v3906, %v3906
        %v3939 = vpack.c.bf16 %v3907, %v3907
        %v3940 = vpack.c.bf16 %v3908, %v3908
        %v3941 = vpack.c.bf16 %v3909, %v3909
        %v3942 = vpack.c.bf16 %v3910, %v3910
        %v3943 = vpack.c.bf16 %v3911, %v3911
        %v3944 = vpack.c.bf16 %v3912, %v3912
        %v3945 = vpack.c.bf16 %v3913, %v3913
        %v3946 = vpack.c.bf16 %v3914, %v3914
        %v3947 = vpack.c.bf16 %v3915, %v3915
        %v3948 = vpack.c.bf16 %v3916, %v3916
        %v3949 = vpack.c.bf16 %v3917, %v3917
        %v3950 = vpack.c.bf16 %v3918, %v3918
        %v3951 = vpack.c.bf16 %v3919, %v3919
        %v3952 = vpack.c.bf16 %v3920, %v3920
        %v3953 = vpack.c.bf16 %v3921, %v3921
        %v3954 = vpack.c.bf16 %v3922, %v3922
        %v3955 = vpack.c.bf16 %v3923, %v3923
        %v3956 = vpack.c.bf16 %v3924, %v3924
        %3989 = vrot.lane.b32.xlu0 %v3925, 64
        %v3990 = vpop.permute.xlu0 %3989
        %3991 = vrot.lane.b32.xlu0 %v3926, 64
        %v3992 = vpop.permute.xlu0 %3991
        %3993 = vrot.lane.b32.xlu0 %v3927, 64
        %v3994 = vpop.permute.xlu0 %3993
        %3995 = vrot.lane.b32.xlu0 %v3928, 64
        %v3996 = vpop.permute.xlu0 %3995
        %3997 = vrot.lane.b32.xlu0 %v3929, 64
        %v3998 = vpop.permute.xlu0 %3997
        %3999 = vrot.lane.b32.xlu0 %v3930, 64
        %v4000 = vpop.permute.xlu0 %3999
        %4001 = vrot.lane.b32.xlu0 %v3931, 64
        %v4002 = vpop.permute.xlu0 %4001
        %4003 = vrot.lane.b32.xlu0 %v3932, 64
        %v4004 = vpop.permute.xlu0 %4003
        %4005 = vrot.lane.b32.xlu0 %v3933, 64
        %v4006 = vpop.permute.xlu0 %4005
        %4007 = vrot.lane.b32.xlu0 %v3934, 64
        %v4008 = vpop.permute.xlu0 %4007
        %4009 = vrot.lane.b32.xlu0 %v3935, 64
        %v4010 = vpop.permute.xlu0 %4009
        %4011 = vrot.lane.b32.xlu0 %v3936, 64
        %v4012 = vpop.permute.xlu0 %4011
        %4013 = vrot.lane.b32.xlu0 %v3937, 64
        %v4014 = vpop.permute.xlu0 %4013
        %4015 = vrot.lane.b32.xlu0 %v3938, 64
        %v4016 = vpop.permute.xlu0 %4015
        %4017 = vrot.lane.b32.xlu0 %v3939, 64
        %v4018 = vpop.permute.xlu0 %4017
        %4019 = vrot.lane.b32.xlu0 %v3940, 64
        %v4020 = vpop.permute.xlu0 %4019
        %4021 = vrot.lane.b32.xlu0 %v3941, 64
        %v4022 = vpop.permute.xlu0 %4021
        %4023 = vrot.lane.b32.xlu0 %v3942, 64
        %v4024 = vpop.permute.xlu0 %4023
        %4025 = vrot.lane.b32.xlu0 %v3943, 64
        %v4026 = vpop.permute.xlu0 %4025
        %4027 = vrot.lane.b32.xlu0 %v3944, 64
        %v4028 = vpop.permute.xlu0 %4027
        %4029 = vrot.lane.b32.xlu0 %v3945, 64
        %v4030 = vpop.permute.xlu0 %4029
        %4031 = vrot.lane.b32.xlu0 %v3946, 64
        %v4032 = vpop.permute.xlu0 %4031
        %4033 = vrot.lane.b32.xlu0 %v3947, 64
        %v4034 = vpop.permute.xlu0 %4033
        %4035 = vrot.lane.b32.xlu0 %v3948, 64
        %v4036 = vpop.permute.xlu0 %4035
        %4037 = vrot.lane.b32.xlu0 %v3949, 64
        %v4038 = vpop.permute.xlu0 %4037
        %4039 = vrot.lane.b32.xlu0 %v3950, 64
        %v4040 = vpop.permute.xlu0 %4039
        %4041 = vrot.lane.b32.xlu0 %v3951, 64
        %v4042 = vpop.permute.xlu0 %4041
        %4043 = vrot.lane.b32.xlu0 %v3952, 64
        %v4044 = vpop.permute.xlu0 %4043
        %4045 = vrot.lane.b32.xlu0 %v3953, 64
        %v4046 = vpop.permute.xlu0 %4045
        %4047 = vrot.lane.b32.xlu0 %v3954, 64
        %v4048 = vpop.permute.xlu0 %4047
        %4049 = vrot.lane.b32.xlu0 %v3955, 64
        %v4050 = vpop.permute.xlu0 %4049
        %4051 = vrot.lane.b32.xlu0 %v3956, 64
        %v4052 = vpop.permute.xlu0 %4051
        %4085 = vst.msk [vmem:[#allocation3 + $0x4] sm:$0xf] %vm855, %v3990
        %4086 = vst.msk [vmem:[#allocation3 + $0x10] sm:$0xf] %vm855, %v3992
        %4087 = vst.msk [vmem:[#allocation3 + $0x1c] sm:$0xf] %vm855, %v3994
        %4088 = vst.msk [vmem:[#allocation3 + $0x28] sm:$0xf] %vm855, %v3996
        %4089 = vst.msk [vmem:[#allocation3 + $0x34] sm:$0xf] %vm855, %v3998
        %4090 = vst.msk [vmem:[#allocation3 + $0x40] sm:$0xf] %vm855, %v4000
        %4091 = vst.msk [vmem:[#allocation3 + $0x4c] sm:$0xf] %vm855, %v4002
        %4092 = vst.msk [vmem:[#allocation3 + $0x58] sm:$0xf] %vm855, %v4004
        %4093 = vst.msk [vmem:[#allocation3 + $0x64] sm:$0xf] %vm855, %v4006
        %4094 = vst.msk [vmem:[#allocation3 + $0x70] sm:$0xf] %vm855, %v4008
        %4095 = vst.msk [vmem:[#allocation3 + $0x7c] sm:$0xf] %vm855, %v4010
        %4096 = vst.msk [vmem:[#allocation3 + $0x88] sm:$0xf] %vm855, %v4012
        %4097 = vst.msk [vmem:[#allocation3 + $0x94] sm:$0xf] %vm855, %v4014
        %4098 = vst.msk [vmem:[#allocation3 + $0xa0] sm:$0xf] %vm855, %v4016
        %4099 = vst.msk [vmem:[#allocation3 + $0xac] sm:$0xf] %vm855, %v4018
        %4100 = vst.msk [vmem:[#allocation3 + $0xb8] sm:$0xf] %vm855, %v4020
        %4101 = vst.msk [vmem:[#allocation3 + $0xc4] sm:$0xf] %vm855, %v4022
        %4102 = vst.msk [vmem:[#allocation3 + $0xd0] sm:$0xf] %vm855, %v4024
        %4103 = vst.msk [vmem:[#allocation3 + $0xdc] sm:$0xf] %vm855, %v4026
        %4104 = vst.msk [vmem:[#allocation3 + $0xe8] sm:$0xf] %vm855, %v4028
        %4105 = vst.msk [vmem:[#allocation3 + $0xf4] sm:$0xf] %vm855, %v4030
        %4106 = vst.msk [vmem:[#allocation3 + $0x100] sm:$0xf] %vm855, %v4032
        %4107 = vst.msk [vmem:[#allocation3 + $0x10c] sm:$0xf] %vm855, %v4034
        %4108 = vst.msk [vmem:[#allocation3 + $0x118] sm:$0xf] %vm855, %v4036
        %4109 = vst.msk [vmem:[#allocation3 + $0x124] sm:$0xf] %vm855, %v4038
        %4110 = vst.msk [vmem:[#allocation3 + $0x130] sm:$0xf] %vm855, %v4040
        %4111 = vst.msk [vmem:[#allocation3 + $0x13c] sm:$0xf] %vm855, %v4042
        %4112 = vst.msk [vmem:[#allocation3 + $0x148] sm:$0xf] %vm855, %v4044
        %4113 = vst.msk [vmem:[#allocation3 + $0x154] sm:$0xf] %vm855, %v4046
        %4114 = vst.msk [vmem:[#allocation3 + $0x160] sm:$0xf] %vm855, %v4048
        %4115 = vst.msk [vmem:[#allocation3 + $0x16c] sm:$0xf] %vm855, %v4050
        %4116 = vst.msk [vmem:[#allocation3 + $0x178] sm:$0xf] %vm855, %v4052
        %v4117 = vld [vmem:[%s1433 + $0x1] sm:$0xff]
        %v4118 = vld [vmem:[%s1433 + $0x9] sm:$0xff]
        %v4119 = vld [vmem:[%s1433 + $0x19] sm:$0xff]
        %v4120 = vld [vmem:[%s1433 + $0x21] sm:$0xff]
        %v4121 = vld [vmem:[%s1433 + $0x31] sm:$0xff]
        %v4122 = vld [vmem:[%s1433 + $0x39] sm:$0xff]
        %v4123 = vld [vmem:[%s1433 + $0x49] sm:$0xff]
        %v4124 = vld [vmem:[%s1433 + $0x51] sm:$0xff]
        %v4125 = vld [vmem:[%s1433 + $0x61] sm:$0xff]
        %v4126 = vld [vmem:[%s1433 + $0x69] sm:$0xff]
        %v4127 = vld [vmem:[%s1433 + $0x79] sm:$0xff]
        %v4128 = vld [vmem:[%s1433 + $0x81] sm:$0xff]
        %v4129 = vld [vmem:[%s1433 + $0x91] sm:$0xff]
        %v4130 = vld [vmem:[%s1433 + $0x99] sm:$0xff]
        %v4131 = vld [vmem:[%s1433 + $0xa9] sm:$0xff]
        %v4132 = vld [vmem:[%s1433 + $0xb1] sm:$0xff]
        %v4133 = vld [vmem:[%s1433 + $0xc1] sm:$0xff]
        %v4134 = vld [vmem:[%s1433 + $0xc9] sm:$0xff]
        %v4135 = vld [vmem:[%s1433 + $0xd9] sm:$0xff]
        %v4136 = vld [vmem:[%s1433 + $0xe1] sm:$0xff]
        %v4137 = vld [vmem:[%s1433 + $0xf1] sm:$0xff]
        %v4138 = vld [vmem:[%s1433 + $0xf9] sm:$0xff]
        %v4139 = vld [vmem:[%s1433 + $0x109] sm:$0xff]
        %v4140 = vld [vmem:[%s1433 + $0x111] sm:$0xff]
        %v4141 = vld [vmem:[%s1433 + $0x121] sm:$0xff]
        %v4142 = vld [vmem:[%s1433 + $0x129] sm:$0xff]
        %v4143 = vld [vmem:[%s1433 + $0x139] sm:$0xff]
        %v4144 = vld [vmem:[%s1433 + $0x141] sm:$0xff]
        %v4145 = vld [vmem:[%s1433 + $0x151] sm:$0xff]
        %v4146 = vld [vmem:[%s1433 + $0x159] sm:$0xff]
        %v4147 = vld [vmem:[%s1433 + $0x169] sm:$0xff]
        %v4148 = vld [vmem:[%s1433 + $0x171] sm:$0xff]
        %v4149 = vpack.c.bf16 %v4117, %v4117
        %v4150 = vpack.c.bf16 %v4118, %v4118
        %v4151 = vpack.c.bf16 %v4119, %v4119
        %v4152 = vpack.c.bf16 %v4120, %v4120
        %v4153 = vpack.c.bf16 %v4121, %v4121
        %v4154 = vpack.c.bf16 %v4122, %v4122
        %v4155 = vpack.c.bf16 %v4123, %v4123
        %v4156 = vpack.c.bf16 %v4124, %v4124
        %v4157 = vpack.c.bf16 %v4125, %v4125
        %v4158 = vpack.c.bf16 %v4126, %v4126
        %v4159 = vpack.c.bf16 %v4127, %v4127
        %v4160 = vpack.c.bf16 %v4128, %v4128
        %v4161 = vpack.c.bf16 %v4129, %v4129
        %v4162 = vpack.c.bf16 %v4130, %v4130
        %v4163 = vpack.c.bf16 %v4131, %v4131
        %v4164 = vpack.c.bf16 %v4132, %v4132
        %v4165 = vpack.c.bf16 %v4133, %v4133
        %v4166 = vpack.c.bf16 %v4134, %v4134
        %v4167 = vpack.c.bf16 %v4135, %v4135
        %v4168 = vpack.c.bf16 %v4136, %v4136
        %v4169 = vpack.c.bf16 %v4137, %v4137
        %v4170 = vpack.c.bf16 %v4138, %v4138
        %v4171 = vpack.c.bf16 %v4139, %v4139
        %v4172 = vpack.c.bf16 %v4140, %v4140
        %v4173 = vpack.c.bf16 %v4141, %v4141
        %v4174 = vpack.c.bf16 %v4142, %v4142
        %v4175 = vpack.c.bf16 %v4143, %v4143
        %v4176 = vpack.c.bf16 %v4144, %v4144
        %v4177 = vpack.c.bf16 %v4145, %v4145
        %v4178 = vpack.c.bf16 %v4146, %v4146
        %v4179 = vpack.c.bf16 %v4147, %v4147
        %v4180 = vpack.c.bf16 %v4148, %v4148
        %4213 = vrot.lane.b32.xlu0 %v4149, 96
        %v4214 = vpop.permute.xlu0 %4213
        %4215 = vrot.lane.b32.xlu0 %v4150, 96
        %v4216 = vpop.permute.xlu0 %4215
        %4217 = vrot.lane.b32.xlu0 %v4151, 96
        %v4218 = vpop.permute.xlu0 %4217
        %4219 = vrot.lane.b32.xlu0 %v4152, 96
        %v4220 = vpop.permute.xlu0 %4219
        %4221 = vrot.lane.b32.xlu0 %v4153, 96
        %v4222 = vpop.permute.xlu0 %4221
        %4223 = vrot.lane.b32.xlu0 %v4154, 96
        %v4224 = vpop.permute.xlu0 %4223
        %4225 = vrot.lane.b32.xlu0 %v4155, 96
        %v4226 = vpop.permute.xlu0 %4225
        %4227 = vrot.lane.b32.xlu0 %v4156, 96
        %v4228 = vpop.permute.xlu0 %4227
        %4229 = vrot.lane.b32.xlu0 %v4157, 96
        %v4230 = vpop.permute.xlu0 %4229
        %4231 = vrot.lane.b32.xlu0 %v4158, 96
        %v4232 = vpop.permute.xlu0 %4231
        %4233 = vrot.lane.b32.xlu0 %v4159, 96
        %v4234 = vpop.permute.xlu0 %4233
        %4235 = vrot.lane.b32.xlu0 %v4160, 96
        %v4236 = vpop.permute.xlu0 %4235
        %4237 = vrot.lane.b32.xlu0 %v4161, 96
        %v4238 = vpop.permute.xlu0 %4237
        %4239 = vrot.lane.b32.xlu0 %v4162, 96
        %v4240 = vpop.permute.xlu0 %4239
        %4241 = vrot.lane.b32.xlu0 %v4163, 96
        %v4242 = vpop.permute.xlu0 %4241
        %4243 = vrot.lane.b32.xlu0 %v4164, 96
        %v4244 = vpop.permute.xlu0 %4243
        %4245 = vrot.lane.b32.xlu0 %v4165, 96
        %v4246 = vpop.permute.xlu0 %4245
        %4247 = vrot.lane.b32.xlu0 %v4166, 96
        %v4248 = vpop.permute.xlu0 %4247
        %4249 = vrot.lane.b32.xlu0 %v4167, 96
        %v4250 = vpop.permute.xlu0 %4249
        %4251 = vrot.lane.b32.xlu0 %v4168, 96
        %v4252 = vpop.permute.xlu0 %4251
        %4253 = vrot.lane.b32.xlu0 %v4169, 96
        %v4254 = vpop.permute.xlu0 %4253
        %4255 = vrot.lane.b32.xlu0 %v4170, 96
        %v4256 = vpop.permute.xlu0 %4255
        %4257 = vrot.lane.b32.xlu0 %v4171, 96
        %v4258 = vpop.permute.xlu0 %4257
        %4259 = vrot.lane.b32.xlu0 %v4172, 96
        %v4260 = vpop.permute.xlu0 %4259
        %4261 = vrot.lane.b32.xlu0 %v4173, 96
        %v4262 = vpop.permute.xlu0 %4261
        %4263 = vrot.lane.b32.xlu0 %v4174, 96
        %v4264 = vpop.permute.xlu0 %4263
        %4265 = vrot.lane.b32.xlu0 %v4175, 96
        %v4266 = vpop.permute.xlu0 %4265
        %4267 = vrot.lane.b32.xlu0 %v4176, 96
        %v4268 = vpop.permute.xlu0 %4267
        %4269 = vrot.lane.b32.xlu0 %v4177, 96
        %v4270 = vpop.permute.xlu0 %4269
        %4271 = vrot.lane.b32.xlu0 %v4178, 96
        %v4272 = vpop.permute.xlu0 %4271
        %4273 = vrot.lane.b32.xlu0 %v4179, 96
        %v4274 = vpop.permute.xlu0 %4273
        %4275 = vrot.lane.b32.xlu0 %v4180, 96
        %v4276 = vpop.permute.xlu0 %4275
        %4309 = vst.msk [vmem:[#allocation3 + $0x4] sm:$0xf] %vm1080, %v4214
        %4310 = vst.msk [vmem:[#allocation3 + $0x10] sm:$0xf] %vm1080, %v4216
        %4311 = vst.msk [vmem:[#allocation3 + $0x1c] sm:$0xf] %vm1080, %v4218
        %4312 = vst.msk [vmem:[#allocation3 + $0x28] sm:$0xf] %vm1080, %v4220
        %4313 = vst.msk [vmem:[#allocation3 + $0x34] sm:$0xf] %vm1080, %v4222
        %4314 = vst.msk [vmem:[#allocation3 + $0x40] sm:$0xf] %vm1080, %v4224
        %4315 = vst.msk [vmem:[#allocation3 + $0x4c] sm:$0xf] %vm1080, %v4226
        %4316 = vst.msk [vmem:[#allocation3 + $0x58] sm:$0xf] %vm1080, %v4228
        %4317 = vst.msk [vmem:[#allocation3 + $0x64] sm:$0xf] %vm1080, %v4230
        %4318 = vst.msk [vmem:[#allocation3 + $0x70] sm:$0xf] %vm1080, %v4232
        %4319 = vst.msk [vmem:[#allocation3 + $0x7c] sm:$0xf] %vm1080, %v4234
        %4320 = vst.msk [vmem:[#allocation3 + $0x88] sm:$0xf] %vm1080, %v4236
        %4321 = vst.msk [vmem:[#allocation3 + $0x94] sm:$0xf] %vm1080, %v4238
        %4322 = vst.msk [vmem:[#allocation3 + $0xa0] sm:$0xf] %vm1080, %v4240
        %4323 = vst.msk [vmem:[#allocation3 + $0xac] sm:$0xf] %vm1080, %v4242
        %4324 = vst.msk [vmem:[#allocation3 + $0xb8] sm:$0xf] %vm1080, %v4244
        %4325 = vst.msk [vmem:[#allocation3 + $0xc4] sm:$0xf] %vm1080, %v4246
        %4326 = vst.msk [vmem:[#allocation3 + $0xd0] sm:$0xf] %vm1080, %v4248
        %4327 = vst.msk [vmem:[#allocation3 + $0xdc] sm:$0xf] %vm1080, %v4250
        %4328 = vst.msk [vmem:[#allocation3 + $0xe8] sm:$0xf] %vm1080, %v4252
        %4329 = vst.msk [vmem:[#allocation3 + $0xf4] sm:$0xf] %vm1080, %v4254
        %4330 = vst.msk [vmem:[#allocation3 + $0x100] sm:$0xf] %vm1080, %v4256
        %4331 = vst.msk [vmem:[#allocation3 + $0x10c] sm:$0xf] %vm1080, %v4258
        %4332 = vst.msk [vmem:[#allocation3 + $0x118] sm:$0xf] %vm1080, %v4260
        %4333 = vst.msk [vmem:[#allocation3 + $0x124] sm:$0xf] %vm1080, %v4262
        %4334 = vst.msk [vmem:[#allocation3 + $0x130] sm:$0xf] %vm1080, %v4264
        %4335 = vst.msk [vmem:[#allocation3 + $0x13c] sm:$0xf] %vm1080, %v4266
        %4336 = vst.msk [vmem:[#allocation3 + $0x148] sm:$0xf] %vm1080, %v4268
        %4337 = vst.msk [vmem:[#allocation3 + $0x154] sm:$0xf] %vm1080, %v4270
        %4338 = vst.msk [vmem:[#allocation3 + $0x160] sm:$0xf] %vm1080, %v4272
        %4339 = vst.msk [vmem:[#allocation3 + $0x16c] sm:$0xf] %vm1080, %v4274
        %4340 = vst.msk [vmem:[#allocation3 + $0x178] sm:$0xf] %vm1080, %v4276
        %v4341 = vld [vmem:[%s1433 + $0x2] sm:$0xff]
        %v4342 = vld [vmem:[%s1433 + $0xa] sm:$0xff]
        %v4343 = vld [vmem:[%s1433 + $0x1a] sm:$0xff]
        %v4344 = vld [vmem:[%s1433 + $0x22] sm:$0xff]
        %v4345 = vld [vmem:[%s1433 + $0x32] sm:$0xff]
        %v4346 = vld [vmem:[%s1433 + $0x3a] sm:$0xff]
        %v4347 = vld [vmem:[%s1433 + $0x4a] sm:$0xff]
        %v4348 = vld [vmem:[%s1433 + $0x52] sm:$0xff]
        %v4349 = vld [vmem:[%s1433 + $0x62] sm:$0xff]
        %v4350 = vld [vmem:[%s1433 + $0x6a] sm:$0xff]
        %v4351 = vld [vmem:[%s1433 + $0x7a] sm:$0xff]
        %v4352 = vld [vmem:[%s1433 + $0x82] sm:$0xff]
        %v4353 = vld [vmem:[%s1433 + $0x92] sm:$0xff]
        %v4354 = vld [vmem:[%s1433 + $0x9a] sm:$0xff]
        %v4355 = vld [vmem:[%s1433 + $0xaa] sm:$0xff]
        %v4356 = vld [vmem:[%s1433 + $0xb2] sm:$0xff]
        %v4357 = vld [vmem:[%s1433 + $0xc2] sm:$0xff]
        %v4358 = vld [vmem:[%s1433 + $0xca] sm:$0xff]
        %v4359 = vld [vmem:[%s1433 + $0xda] sm:$0xff]
        %v4360 = vld [vmem:[%s1433 + $0xe2] sm:$0xff]
        %v4361 = vld [vmem:[%s1433 + $0xf2] sm:$0xff]
        %v4362 = vld [vmem:[%s1433 + $0xfa] sm:$0xff]
        %v4363 = vld [vmem:[%s1433 + $0x10a] sm:$0xff]
        %v4364 = vld [vmem:[%s1433 + $0x112] sm:$0xff]
        %v4365 = vld [vmem:[%s1433 + $0x122] sm:$0xff]
        %v4366 = vld [vmem:[%s1433 + $0x12a] sm:$0xff]
        %v4367 = vld [vmem:[%s1433 + $0x13a] sm:$0xff]
        %v4368 = vld [vmem:[%s1433 + $0x142] sm:$0xff]
        %v4369 = vld [vmem:[%s1433 + $0x152] sm:$0xff]
        %v4370 = vld [vmem:[%s1433 + $0x15a] sm:$0xff]
        %v4371 = vld [vmem:[%s1433 + $0x16a] sm:$0xff]
        %v4372 = vld [vmem:[%s1433 + $0x172] sm:$0xff]
        %v4373 = vpack.c.bf16 %v4341, %v4341
        %v4374 = vpack.c.bf16 %v4342, %v4342
        %v4375 = vpack.c.bf16 %v4343, %v4343
        %v4376 = vpack.c.bf16 %v4344, %v4344
        %v4377 = vpack.c.bf16 %v4345, %v4345
        %v4378 = vpack.c.bf16 %v4346, %v4346
        %v4379 = vpack.c.bf16 %v4347, %v4347
        %v4380 = vpack.c.bf16 %v4348, %v4348
        %v4381 = vpack.c.bf16 %v4349, %v4349
        %v4382 = vpack.c.bf16 %v4350, %v4350
        %v4383 = vpack.c.bf16 %v4351, %v4351
        %v4384 = vpack.c.bf16 %v4352, %v4352
        %v4385 = vpack.c.bf16 %v4353, %v4353
        %v4386 = vpack.c.bf16 %v4354, %v4354
        %v4387 = vpack.c.bf16 %v4355, %v4355
        %v4388 = vpack.c.bf16 %v4356, %v4356
        %v4389 = vpack.c.bf16 %v4357, %v4357
        %v4390 = vpack.c.bf16 %v4358, %v4358
        %v4391 = vpack.c.bf16 %v4359, %v4359
        %v4392 = vpack.c.bf16 %v4360, %v4360
        %v4393 = vpack.c.bf16 %v4361, %v4361
        %v4394 = vpack.c.bf16 %v4362, %v4362
        %v4395 = vpack.c.bf16 %v4363, %v4363
        %v4396 = vpack.c.bf16 %v4364, %v4364
        %v4397 = vpack.c.bf16 %v4365, %v4365
        %v4398 = vpack.c.bf16 %v4366, %v4366
        %v4399 = vpack.c.bf16 %v4367, %v4367
        %v4400 = vpack.c.bf16 %v4368, %v4368
        %v4401 = vpack.c.bf16 %v4369, %v4369
        %v4402 = vpack.c.bf16 %v4370, %v4370
        %v4403 = vpack.c.bf16 %v4371, %v4371
        %v4404 = vpack.c.bf16 %v4372, %v4372
        %4405 = vst.msk [vmem:[#allocation3 + $0x8] sm:$0xf] %vm405, %v4373
        %4406 = vst.msk [vmem:[#allocation3 + $0x14] sm:$0xf] %vm405, %v4374
        %4407 = vst.msk [vmem:[#allocation3 + $0x20] sm:$0xf] %vm405, %v4375
        %4408 = vst.msk [vmem:[#allocation3 + $0x2c] sm:$0xf] %vm405, %v4376
        %4409 = vst.msk [vmem:[#allocation3 + $0x38] sm:$0xf] %vm405, %v4377
        %4410 = vst.msk [vmem:[#allocation3 + $0x44] sm:$0xf] %vm405, %v4378
        %4411 = vst.msk [vmem:[#allocation3 + $0x50] sm:$0xf] %vm405, %v4379
        %4412 = vst.msk [vmem:[#allocation3 + $0x5c] sm:$0xf] %vm405, %v4380
        %4413 = vst.msk [vmem:[#allocation3 + $0x68] sm:$0xf] %vm405, %v4381
        %4414 = vst.msk [vmem:[#allocation3 + $0x74] sm:$0xf] %vm405, %v4382
        %4415 = vst.msk [vmem:[#allocation3 + $0x80] sm:$0xf] %vm405, %v4383
        %4416 = vst.msk [vmem:[#allocation3 + $0x8c] sm:$0xf] %vm405, %v4384
        %4417 = vst.msk [vmem:[#allocation3 + $0x98] sm:$0xf] %vm405, %v4385
        %4418 = vst.msk [vmem:[#allocation3 + $0xa4] sm:$0xf] %vm405, %v4386
        %4419 = vst.msk [vmem:[#allocation3 + $0xb0] sm:$0xf] %vm405, %v4387
        %4420 = vst.msk [vmem:[#allocation3 + $0xbc] sm:$0xf] %vm405, %v4388
        %4421 = vst.msk [vmem:[#allocation3 + $0xc8] sm:$0xf] %vm405, %v4389
        %4422 = vst.msk [vmem:[#allocation3 + $0xd4] sm:$0xf] %vm405, %v4390
        %4423 = vst.msk [vmem:[#allocation3 + $0xe0] sm:$0xf] %vm405, %v4391
        %4424 = vst.msk [vmem:[#allocation3 + $0xec] sm:$0xf] %vm405, %v4392
        %4425 = vst.msk [vmem:[#allocation3 + $0xf8] sm:$0xf] %vm405, %v4393
        %4426 = vst.msk [vmem:[#allocation3 + $0x104] sm:$0xf] %vm405, %v4394
        %4427 = vst.msk [vmem:[#allocation3 + $0x110] sm:$0xf] %vm405, %v4395
        %4428 = vst.msk [vmem:[#allocation3 + $0x11c] sm:$0xf] %vm405, %v4396
        %4429 = vst.msk [vmem:[#allocation3 + $0x128] sm:$0xf] %vm405, %v4397
        %4430 = vst.msk [vmem:[#allocation3 + $0x134] sm:$0xf] %vm405, %v4398
        %4431 = vst.msk [vmem:[#allocation3 + $0x140] sm:$0xf] %vm405, %v4399
        %4432 = vst.msk [vmem:[#allocation3 + $0x14c] sm:$0xf] %vm405, %v4400
        %4433 = vst.msk [vmem:[#allocation3 + $0x158] sm:$0xf] %vm405, %v4401
        %4434 = vst.msk [vmem:[#allocation3 + $0x164] sm:$0xf] %vm405, %v4402
        %4435 = vst.msk [vmem:[#allocation3 + $0x170] sm:$0xf] %vm405, %v4403
        %4436 = vst.msk [vmem:[#allocation3 + $0x17c] sm:$0xf] %vm405, %v4404
        %v4437 = vld [vmem:[#allocation3] sm:$0xff]
        %v4438 = vld [vmem:[#allocation3 + $0x8] sm:$0xf]
        %v4439 = vld [vmem:[#allocation3 + $0xc] sm:$0xff]
        %v4440 = vld [vmem:[#allocation3 + $0x14] sm:$0xf]
        %v4441 = vld [vmem:[#allocation3 + $0x18] sm:$0xff]
        %v4442 = vld [vmem:[#allocation3 + $0x20] sm:$0xf]
        %v4443 = vld [vmem:[#allocation3 + $0x24] sm:$0xff]
        %v4444 = vld [vmem:[#allocation3 + $0x2c] sm:$0xf]
        %v4445 = vld [vmem:[#allocation3 + $0x30] sm:$0xff]
        %v4446 = vld [vmem:[#allocation3 + $0x38] sm:$0xf]
        %v4447 = vld [vmem:[#allocation3 + $0x3c] sm:$0xff]
        %v4448 = vld [vmem:[#allocation3 + $0x44] sm:$0xf]
        %v4449 = vld [vmem:[#allocation3 + $0x48] sm:$0xff]
        %v4450 = vld [vmem:[#allocation3 + $0x50] sm:$0xf]
        %v4451 = vld [vmem:[#allocation3 + $0x54] sm:$0xff]
        %v4452 = vld [vmem:[#allocation3 + $0x5c] sm:$0xf]
        %v4453 = vld [vmem:[#allocation3 + $0x60] sm:$0xff]
        %v4454 = vld [vmem:[#allocation3 + $0x68] sm:$0xf]
        %v4455 = vld [vmem:[#allocation3 + $0x6c] sm:$0xff]
        %v4456 = vld [vmem:[#allocation3 + $0x74] sm:$0xf]
        %v4457 = vld [vmem:[#allocation3 + $0x78] sm:$0xff]
        %v4458 = vld [vmem:[#allocation3 + $0x80] sm:$0xf]
        %v4459 = vld [vmem:[#allocation3 + $0x84] sm:$0xff]
        %v4460 = vld [vmem:[#allocation3 + $0x8c] sm:$0xf]
        %v4461 = vld [vmem:[#allocation3 + $0x90] sm:$0xff]
        %v4462 = vld [vmem:[#allocation3 + $0x98] sm:$0xf]
        %v4463 = vld [vmem:[#allocation3 + $0x9c] sm:$0xff]
        %v4464 = vld [vmem:[#allocation3 + $0xa4] sm:$0xf]
        %v4465 = vld [vmem:[#allocation3 + $0xa8] sm:$0xff]
        %v4466 = vld [vmem:[#allocation3 + $0xb0] sm:$0xf]
        %v4467 = vld [vmem:[#allocation3 + $0xb4] sm:$0xff]
        %v4468 = vld [vmem:[#allocation3 + $0xbc] sm:$0xf]
        %v4469 = vld [vmem:[#allocation3 + $0xc0] sm:$0xff]
        %v4470 = vld [vmem:[#allocation3 + $0xc8] sm:$0xf]
        %v4471 = vld [vmem:[#allocation3 + $0xcc] sm:$0xff]
        %v4472 = vld [vmem:[#allocation3 + $0xd4] sm:$0xf]
        %v4473 = vld [vmem:[#allocation3 + $0xd8] sm:$0xff]
        %v4474 = vld [vmem:[#allocation3 + $0xe0] sm:$0xf]
        %v4475 = vld [vmem:[#allocation3 + $0xe4] sm:$0xff]
        %v4476 = vld [vmem:[#allocation3 + $0xec] sm:$0xf]
        %v4477 = vld [vmem:[#allocation3 + $0xf0] sm:$0xff]
        %v4478 = vld [vmem:[#allocation3 + $0xf8] sm:$0xf]
        %v4479 = vld [vmem:[#allocation3 + $0xfc] sm:$0xff]
        %v4480 = vld [vmem:[#allocation3 + $0x104] sm:$0xf]
        %v4481 = vld [vmem:[#allocation3 + $0x108] sm:$0xff]
        %v4482 = vld [vmem:[#allocation3 + $0x110] sm:$0xf]
        %v4483 = vld [vmem:[#allocation3 + $0x114] sm:$0xff]
        %v4484 = vld [vmem:[#allocation3 + $0x11c] sm:$0xf]
        %v4485 = vld [vmem:[#allocation3 + $0x120] sm:$0xff]
        %v4486 = vld [vmem:[#allocation3 + $0x128] sm:$0xf]
        %v4487 = vld [vmem:[#allocation3 + $0x12c] sm:$0xff]
        %v4488 = vld [vmem:[#allocation3 + $0x134] sm:$0xf]
        %v4489 = vld [vmem:[#allocation3 + $0x138] sm:$0xff]
        %v4490 = vld [vmem:[#allocation3 + $0x140] sm:$0xf]
        %v4491 = vld [vmem:[#allocation3 + $0x144] sm:$0xff]
        %v4492 = vld [vmem:[#allocation3 + $0x14c] sm:$0xf]
        %v4493 = vld [vmem:[#allocation3 + $0x150] sm:$0xff]
        %v4494 = vld [vmem:[#allocation3 + $0x158] sm:$0xf]
        %v4495 = vld [vmem:[#allocation3 + $0x15c] sm:$0xff]
        %v4496 = vld [vmem:[#allocation3 + $0x164] sm:$0xf]
        %v4497 = vld [vmem:[#allocation3 + $0x168] sm:$0xff]
        %v4498 = vld [vmem:[#allocation3 + $0x170] sm:$0xf]
        %v4499 = vld [vmem:[#allocation3 + $0x174] sm:$0xff]
        %v4500 = vld [vmem:[#allocation3 + $0x17c] sm:$0xf]
        %v4565 = vunpack.c.l.b16 %v4437
        %v4566 = vunpack.c.h.b16 %v4437
        %v4567 = vunpack.c.l.b16 %v4438
        %v4568 = vunpack.c.l.b16 %v4439
        %v4569 = vunpack.c.h.b16 %v4439
        %v4570 = vunpack.c.l.b16 %v4440
        %v4571 = vunpack.c.l.b16 %v4441
        %v4572 = vunpack.c.h.b16 %v4441
        %v4573 = vunpack.c.l.b16 %v4442
        %v4574 = vunpack.c.l.b16 %v4443
        %v4575 = vunpack.c.h.b16 %v4443
        %v4576 = vunpack.c.l.b16 %v4444
        %v4577 = vunpack.c.l.b16 %v4445
        %v4578 = vunpack.c.h.b16 %v4445
        %v4579 = vunpack.c.l.b16 %v4446
        %v4580 = vunpack.c.l.b16 %v4447
        %v4581 = vunpack.c.h.b16 %v4447
        %v4582 = vunpack.c.l.b16 %v4448
        %v4583 = vunpack.c.l.b16 %v4449
        %v4584 = vunpack.c.h.b16 %v4449
        %v4585 = vunpack.c.l.b16 %v4450
        %v4586 = vunpack.c.l.b16 %v4451
        %v4587 = vunpack.c.h.b16 %v4451
        %v4588 = vunpack.c.l.b16 %v4452
        %v4589 = vunpack.c.l.b16 %v4453
        %v4590 = vunpack.c.h.b16 %v4453
        %v4591 = vunpack.c.l.b16 %v4454
        %v4592 = vunpack.c.l.b16 %v4455
        %v4593 = vunpack.c.h.b16 %v4455
        %v4594 = vunpack.c.l.b16 %v4456
        %v4595 = vunpack.c.l.b16 %v4457
        %v4596 = vunpack.c.h.b16 %v4457
        %v4597 = vunpack.c.l.b16 %v4458
        %v4598 = vunpack.c.l.b16 %v4459
        %v4599 = vunpack.c.h.b16 %v4459
        %v4600 = vunpack.c.l.b16 %v4460
        %v4601 = vunpack.c.l.b16 %v4461
        %v4602 = vunpack.c.h.b16 %v4461
        %v4603 = vunpack.c.l.b16 %v4462
        %v4604 = vunpack.c.l.b16 %v4463
        %v4605 = vunpack.c.h.b16 %v4463
        %v4606 = vunpack.c.l.b16 %v4464
        %v4607 = vunpack.c.l.b16 %v4465
        %v4608 = vunpack.c.h.b16 %v4465
        %v4609 = vunpack.c.l.b16 %v4466
        %v4610 = vunpack.c.l.b16 %v4467
        %v4611 = vunpack.c.h.b16 %v4467
        %v4612 = vunpack.c.l.b16 %v4468
        %v4613 = vunpack.c.l.b16 %v4469
        %v4614 = vunpack.c.h.b16 %v4469
        %v4615 = vunpack.c.l.b16 %v4470
        %v4616 = vunpack.c.l.b16 %v4471
        %v4617 = vunpack.c.h.b16 %v4471
        %v4618 = vunpack.c.l.b16 %v4472
        %v4619 = vunpack.c.l.b16 %v4473
        %v4620 = vunpack.c.h.b16 %v4473
        %v4621 = vunpack.c.l.b16 %v4474
        %v4622 = vunpack.c.l.b16 %v4475
        %v4623 = vunpack.c.h.b16 %v4475
        %v4624 = vunpack.c.l.b16 %v4476
        %v4625 = vunpack.c.l.b16 %v4477
        %v4626 = vunpack.c.h.b16 %v4477
        %v4627 = vunpack.c.l.b16 %v4478
        %v4628 = vunpack.c.l.b16 %v4479
        %v4629 = vunpack.c.h.b16 %v4479
        %v4630 = vunpack.c.l.b16 %v4480
        %v4631 = vunpack.c.l.b16 %v4481
        %v4632 = vunpack.c.h.b16 %v4481
        %v4633 = vunpack.c.l.b16 %v4482
        %v4634 = vunpack.c.l.b16 %v4483
        %v4635 = vunpack.c.h.b16 %v4483
        %v4636 = vunpack.c.l.b16 %v4484
        %v4637 = vunpack.c.l.b16 %v4485
        %v4638 = vunpack.c.h.b16 %v4485
        %v4639 = vunpack.c.l.b16 %v4486
        %v4640 = vunpack.c.l.b16 %v4487
        %v4641 = vunpack.c.h.b16 %v4487
        %v4642 = vunpack.c.l.b16 %v4488
        %v4643 = vunpack.c.l.b16 %v4489
        %v4644 = vunpack.c.h.b16 %v4489
        %v4645 = vunpack.c.l.b16 %v4490
        %v4646 = vunpack.c.l.b16 %v4491
        %v4647 = vunpack.c.h.b16 %v4491
        %v4648 = vunpack.c.l.b16 %v4492
        %v4649 = vunpack.c.l.b16 %v4493
        %v4650 = vunpack.c.h.b16 %v4493
        %v4651 = vunpack.c.l.b16 %v4494
        %v4652 = vunpack.c.l.b16 %v4495
        %v4653 = vunpack.c.h.b16 %v4495
        %v4654 = vunpack.c.l.b16 %v4496
        %v4655 = vunpack.c.l.b16 %v4497
        %v4656 = vunpack.c.h.b16 %v4497
        %v4657 = vunpack.c.l.b16 %v4498
        %v4658 = vunpack.c.l.b16 %v4499
        %v4659 = vunpack.c.h.b16 %v4499
        %v4660 = vunpack.c.l.b16 %v4500
        %v4661 = vpack.c.b16 %v4568, %v4565
        %v4662 = vpack.c.b16 %v4569, %v4566
        %v4663 = vpack.c.b16 %v4570, %v4567
        %v4664 = vpack.c.b16 %v4574, %v4571
        %v4665 = vpack.c.b16 %v4575, %v4572
        %v4666 = vpack.c.b16 %v4576, %v4573
        %v4667 = vpack.c.b16 %v4580, %v4577
        %v4668 = vpack.c.b16 %v4581, %v4578
        %v4669 = vpack.c.b16 %v4582, %v4579
        %v4670 = vpack.c.b16 %v4586, %v4583
        %v4671 = vpack.c.b16 %v4587, %v4584
        %v4672 = vpack.c.b16 %v4588, %v4585
        %v4673 = vpack.c.b16 %v4592, %v4589
        %v4674 = vpack.c.b16 %v4593, %v4590
        %v4675 = vpack.c.b16 %v4594, %v4591
        %v4676 = vpack.c.b16 %v4598, %v4595
        %v4677 = vpack.c.b16 %v4599, %v4596
        %v4678 = vpack.c.b16 %v4600, %v4597
        %v4679 = vpack.c.b16 %v4604, %v4601
        %v4680 = vpack.c.b16 %v4605, %v4602
        %v4681 = vpack.c.b16 %v4606, %v4603
        %v4682 = vpack.c.b16 %v4610, %v4607
        %v4683 = vpack.c.b16 %v4611, %v4608
        %v4684 = vpack.c.b16 %v4612, %v4609
        %v4685 = vpack.c.b16 %v4616, %v4613
        %v4686 = vpack.c.b16 %v4617, %v4614
        %v4687 = vpack.c.b16 %v4618, %v4615
        %v4688 = vpack.c.b16 %v4622, %v4619
        %v4689 = vpack.c.b16 %v4623, %v4620
        %v4690 = vpack.c.b16 %v4624, %v4621
        %v4691 = vpack.c.b16 %v4628, %v4625
        %v4692 = vpack.c.b16 %v4629, %v4626
        %v4693 = vpack.c.b16 %v4630, %v4627
        %v4694 = vpack.c.b16 %v4634, %v4631
        %v4695 = vpack.c.b16 %v4635, %v4632
        %v4696 = vpack.c.b16 %v4636, %v4633
        %v4697 = vpack.c.b16 %v4640, %v4637
        %v4698 = vpack.c.b16 %v4641, %v4638
        %v4699 = vpack.c.b16 %v4642, %v4639
        %v4700 = vpack.c.b16 %v4646, %v4643
        %v4701 = vpack.c.b16 %v4647, %v4644
        %v4702 = vpack.c.b16 %v4648, %v4645
        %v4703 = vpack.c.b16 %v4652, %v4649
        %v4704 = vpack.c.b16 %v4653, %v4650
        %v4705 = vpack.c.b16 %v4654, %v4651
        %v4706 = vpack.c.b16 %v4658, %v4655
        %v4707 = vpack.c.b16 %v4659, %v4656
        %v4708 = vpack.c.b16 %v4660, %v4657
        %v4777 = vunpack.c.l.b16 %v2769
        %v4778 = vunpack.c.l.b16 %v2770
        %v4779 = vunpack.c.l.b16 %v2771
        %v4780 = vunpack.c.l.b16 %v2772
        %v4781 = vunpack.c.l.b16 %v2773
        %v4782 = vunpack.c.l.b16 %v2774
        %v4783 = vunpack.c.l.b16 %v2775
        %v4784 = vunpack.c.l.b16 %v2776
        %v4785 = vunpack.c.l.b16 %v2777
        %v4786 = vunpack.c.l.b16 %v2778
        %v4787 = vunpack.c.l.b16 %v2779
        %v4788 = vunpack.c.l.b16 %v2780
        %v4789 = vunpack.c.l.b16 %v2781
        %v4790 = vunpack.c.l.b16 %v2782
        %v4791 = vunpack.c.l.b16 %v2783
        %v4792 = vunpack.c.l.b16 %v2784
        %v4793 = vunpack.c.l.b16 %v2785
        %v4794 = vunpack.c.l.b16 %v2786
        %v4795 = vunpack.c.l.b16 %v2787
        %v4796 = vunpack.c.l.b16 %v2788
        %v4797 = vunpack.c.l.b16 %v2789
        %v4798 = vunpack.c.l.b16 %v2790
        %v4799 = vunpack.c.l.b16 %v2791
        %v4800 = vunpack.c.l.b16 %v2792
        %v4801 = vunpack.c.l.b16 %v2793
        %v4802 = vunpack.c.l.b16 %v2794
        %v4803 = vunpack.c.l.b16 %v2795
        %v4804 = vunpack.c.l.b16 %v2796
        %v4805 = vunpack.c.l.b16 %v2797
        %v4806 = vunpack.c.l.b16 %v2798
        %v4807 = vunpack.c.l.b16 %v2799
        %v4808 = vunpack.c.l.b16 %v2800
        %v4809 = vunpack.c.l.b16 %v2801
        %v4810 = vunpack.c.l.b16 %v2802
        %v4811 = vunpack.c.l.b16 %v2803
        %v4812 = vunpack.c.l.b16 %v2804
        %v4813 = vpack.c.b16 %v4778, %v4777
        %v4814 = vpack.c.b16 %v4780, %v4779
        %v4815 = vpack.c.b16 %v4782, %v4781
        %v4816 = vpack.c.b16 %v4784, %v4783
        %v4817 = vpack.c.b16 %v4786, %v4785
        %v4818 = vpack.c.b16 %v4788, %v4787
        %v4819 = vpack.c.b16 %v4790, %v4789
        %v4820 = vpack.c.b16 %v4792, %v4791
        %v4821 = vpack.c.b16 %v4794, %v4793
        %v4822 = vpack.c.b16 %v4796, %v4795
        %v4823 = vpack.c.b16 %v4798, %v4797
        %v4824 = vpack.c.b16 %v4800, %v4799
        %v4825 = vpack.c.b16 %v4802, %v4801
        %v4826 = vpack.c.b16 %v4804, %v4803
        %v4827 = vpack.c.b16 %v4806, %v4805
        %v4828 = vpack.c.b16 %v4808, %v4807
        %v4829 = vpack.c.b16 %v4810, %v4809
        %v4830 = vpack.c.b16 %v4812, %v4811
        %v4850 = vsel %vm226, %v4663, 0
        %v4853 = vsel %vm226, %v4666, 0
        %v4856 = vsel %vm226, %v4669, 0
        %v4859 = vsel %vm226, %v4672, 0
        %v4862 = vsel %vm226, %v4675, 0
        %v4865 = vsel %vm226, %v4678, 0
        %v4868 = vsel %vm226, %v4681, 0
        %v4871 = vsel %vm226, %v4684, 0
        %v4874 = vsel %vm226, %v4687, 0
        %v4877 = vsel %vm226, %v4690, 0
        %v4880 = vsel %vm226, %v4693, 0
        %v4883 = vsel %vm226, %v4696, 0
        %v4886 = vsel %vm226, %v4699, 0
        %v4889 = vsel %vm226, %v4702, 0
        %v4892 = vsel %vm226, %v4705, 0
        %v4895 = vsel %vm226, %v4708, 0
        %4897 = vmatpush.bf16.msra.mxu0 %v4820
        %4898 = vmatpush.bf16.msra.mxu0 %v4819
        %4899 = vmatpush.bf16.msra.mxu0 %v4818
        %4900 = vmatpush.bf16.msra.mxu0 %v4817
        %4901 = vmatpush.bf16.msra.mxu0 %v4816
        %4902 = vmatpush.bf16.msra.mxu0 %v4815
        %4903 = vmatpush.bf16.msra.mxu0 %v4814
        %4904 = vmatpush.bf16.msra.mxu0 %v4813
        %4905 = vmatmul.bf16.gmra.mxu0 %v4661
        %v4906 = vpop.f32.mrf.mxu0
        %v4907 = vadd.f32 %v194, %v4906
        %v4908 = vpop.f32.mrf.mxu0
        %v4909 = vadd.f32 %v195, %v4908
        %4910 = vmatmul.bf16.gmra.mxu0 %v4664
        %v4911 = vpop.f32.mrf.mxu0
        %v4912 = vadd.f32 %v196, %v4911
        %v4913 = vpop.f32.mrf.mxu0
        %v4914 = vadd.f32 %v197, %v4913
        %4915 = vmatmul.bf16.gmra.mxu0 %v4667
        %v4916 = vpop.f32.mrf.mxu0
        %v4917 = vadd.f32 %v198, %v4916
        %v4918 = vpop.f32.mrf.mxu0
        %v4919 = vadd.f32 %v199, %v4918
        %4920 = vmatmul.bf16.gmra.mxu0 %v4670
        %v4921 = vpop.f32.mrf.mxu0
        %v4922 = vadd.f32 %v200, %v4921
        %v4923 = vpop.f32.mrf.mxu0
        %v4924 = vadd.f32 %v201, %v4923
        %4925 = vmatmul.bf16.gmra.mxu0 %v4673
        %v4926 = vpop.f32.mrf.mxu0
        %v4927 = vadd.f32 %v202, %v4926
        %v4928 = vpop.f32.mrf.mxu0
        %v4929 = vadd.f32 %v203, %v4928
        %4930 = vmatmul.bf16.gmra.mxu0 %v4676
        %v4931 = vpop.f32.mrf.mxu0
        %v4932 = vadd.f32 %v204, %v4931
        %v4933 = vpop.f32.mrf.mxu0
        %v4934 = vadd.f32 %v205, %v4933
        %4935 = vmatmul.bf16.gmra.mxu0 %v4679
        %v4936 = vpop.f32.mrf.mxu0
        %v4937 = vadd.f32 %v206, %v4936
        %v4938 = vpop.f32.mrf.mxu0
        %v4939 = vadd.f32 %v207, %v4938
        %4940 = vmatmul.bf16.gmra.mxu0 %v4682
        %v4941 = vpop.f32.mrf.mxu0
        %v4942 = vadd.f32 %v208, %v4941
        %v4943 = vpop.f32.mrf.mxu0
        %v4944 = vadd.f32 %v209, %v4943
        %4945 = vmatmul.bf16.gmra.mxu0 %v4685
        %v4946 = vpop.f32.mrf.mxu0
        %v4947 = vadd.f32 %v210, %v4946
        %v4948 = vpop.f32.mrf.mxu0
        %v4949 = vadd.f32 %v211, %v4948
        %4950 = vmatmul.bf16.gmra.mxu0 %v4688
        %v4951 = vpop.f32.mrf.mxu0
        %v4952 = vadd.f32 %v212, %v4951
        %v4953 = vpop.f32.mrf.mxu0
        %v4954 = vadd.f32 %v213, %v4953
        %4955 = vmatmul.bf16.gmra.mxu0 %v4691
        %v4956 = vpop.f32.mrf.mxu0
        %v4957 = vadd.f32 %v214, %v4956
        %v4958 = vpop.f32.mrf.mxu0
        %v4959 = vadd.f32 %v215, %v4958
        %4960 = vmatmul.bf16.gmra.mxu0 %v4694
        %v4961 = vpop.f32.mrf.mxu0
        %v4962 = vadd.f32 %v216, %v4961
        %v4963 = vpop.f32.mrf.mxu0
        %v4964 = vadd.f32 %v217, %v4963
        %4965 = vmatmul.bf16.gmra.mxu0 %v4697
        %v4966 = vpop.f32.mrf.mxu0
        %v4967 = vadd.f32 %v218, %v4966
        %v4968 = vpop.f32.mrf.mxu0
        %v4969 = vadd.f32 %v219, %v4968
        %4970 = vmatmul.bf16.gmra.mxu0 %v4700
        %v4971 = vpop.f32.mrf.mxu0
        %v4972 = vadd.f32 %v220, %v4971
        %v4973 = vpop.f32.mrf.mxu0
        %v4974 = vadd.f32 %v221, %v4973
        %4975 = vmatmul.bf16.gmra.mxu0 %v4703
        %v4976 = vpop.f32.mrf.mxu0
        %v4977 = vadd.f32 %v222, %v4976
        %v4978 = vpop.f32.mrf.mxu0
        %v4979 = vadd.f32 %v223, %v4978
        %4980 = vmatmul.bf16.gmra.mxu0 %v4706
        %v4981 = vpop.f32.mrf.mxu0
        %v4982 = vadd.f32 %v224, %v4981
        %v4983 = vpop.f32.mrf.mxu0
        %v4984 = vadd.f32 %v225, %v4983
        %4985 = vdwg.mxu0
        %4986 = vmatpush.bf16.msra.mxu0 %v4828
        %4987 = vmatpush.bf16.msra.mxu0 %v4827
        %4988 = vmatpush.bf16.msra.mxu0 %v4826
        %4989 = vmatpush.bf16.msra.mxu0 %v4825
        %4990 = vmatpush.bf16.msra.mxu0 %v4824
        %4991 = vmatpush.bf16.msra.mxu0 %v4823
        %4992 = vmatpush.bf16.msra.mxu0 %v4822
        %4993 = vmatpush.bf16.msra.mxu0 %v4821
        %4994 = vmatmul.bf16.gmra.mxu0 %v4662
        %v4995 = vpop.f32.mrf.mxu0
        %v4996 = vadd.f32 %v4907, %v4995
        %v4997 = vpop.f32.mrf.mxu0
        %v4998 = vadd.f32 %v4909, %v4997
        %4999 = vmatmul.bf16.gmra.mxu0 %v4665
        %v5000 = vpop.f32.mrf.mxu0
        %v5001 = vadd.f32 %v4912, %v5000
        %v5002 = vpop.f32.mrf.mxu0
        %v5003 = vadd.f32 %v4914, %v5002
        %5004 = vmatmul.bf16.gmra.mxu0 %v4668
        %v5005 = vpop.f32.mrf.mxu0
        %v5006 = vadd.f32 %v4917, %v5005
        %v5007 = vpop.f32.mrf.mxu0
        %v5008 = vadd.f32 %v4919, %v5007
        %5009 = vmatmul.bf16.gmra.mxu0 %v4671
        %v5010 = vpop.f32.mrf.mxu0
        %v5011 = vadd.f32 %v4922, %v5010
        %v5012 = vpop.f32.mrf.mxu0
        %v5013 = vadd.f32 %v4924, %v5012
        %5014 = vmatmul.bf16.gmra.mxu0 %v4674
        %v5015 = vpop.f32.mrf.mxu0
        %v5016 = vadd.f32 %v4927, %v5015
        %v5017 = vpop.f32.mrf.mxu0
        %v5018 = vadd.f32 %v4929, %v5017
        %5019 = vmatmul.bf16.gmra.mxu0 %v4677
        %v5020 = vpop.f32.mrf.mxu0
        %v5021 = vadd.f32 %v4932, %v5020
        %v5022 = vpop.f32.mrf.mxu0
        %v5023 = vadd.f32 %v4934, %v5022
        %5024 = vmatmul.bf16.gmra.mxu0 %v4680
        %v5025 = vpop.f32.mrf.mxu0
        %v5026 = vadd.f32 %v4937, %v5025
        %v5027 = vpop.f32.mrf.mxu0
        %v5028 = vadd.f32 %v4939, %v5027
        %5029 = vmatmul.bf16.gmra.mxu0 %v4683
        %v5030 = vpop.f32.mrf.mxu0
        %v5031 = vadd.f32 %v4942, %v5030
        %v5032 = vpop.f32.mrf.mxu0
        %v5033 = vadd.f32 %v4944, %v5032
        %5034 = vmatmul.bf16.gmra.mxu0 %v4686
        %v5035 = vpop.f32.mrf.mxu0
        %v5036 = vadd.f32 %v4947, %v5035
        %v5037 = vpop.f32.mrf.mxu0
        %v5038 = vadd.f32 %v4949, %v5037
        %5039 = vmatmul.bf16.gmra.mxu0 %v4689
        %v5040 = vpop.f32.mrf.mxu0
        %v5041 = vadd.f32 %v4952, %v5040
        %v5042 = vpop.f32.mrf.mxu0
        %v5043 = vadd.f32 %v4954, %v5042
        %5044 = vmatmul.bf16.gmra.mxu0 %v4692
        %v5045 = vpop.f32.mrf.mxu0
        %v5046 = vadd.f32 %v4957, %v5045
        %v5047 = vpop.f32.mrf.mxu0
        %v5048 = vadd.f32 %v4959, %v5047
        %5049 = vmatmul.bf16.gmra.mxu0 %v4695
        %v5050 = vpop.f32.mrf.mxu0
        %v5051 = vadd.f32 %v4962, %v5050
        %v5052 = vpop.f32.mrf.mxu0
        %v5053 = vadd.f32 %v4964, %v5052
        %5054 = vmatmul.bf16.gmra.mxu0 %v4698
        %v5055 = vpop.f32.mrf.mxu0
        %v5056 = vadd.f32 %v4967, %v5055
        %v5057 = vpop.f32.mrf.mxu0
        %v5058 = vadd.f32 %v4969, %v5057
        %5059 = vmatmul.bf16.gmra.mxu0 %v4701
        %v5060 = vpop.f32.mrf.mxu0
        %v5061 = vadd.f32 %v4972, %v5060
        %v5062 = vpop.f32.mrf.mxu0
        %v5063 = vadd.f32 %v4974, %v5062
        %5064 = vmatmul.bf16.gmra.mxu0 %v4704
        %v5065 = vpop.f32.mrf.mxu0
        %v5066 = vadd.f32 %v4977, %v5065
        %v5067 = vpop.f32.mrf.mxu0
        %v5068 = vadd.f32 %v4979, %v5067
        %5069 = vmatmul.bf16.gmra.mxu0 %v4707
        %v5070 = vpop.f32.mrf.mxu0
        %v5071 = vadd.f32 %v4982, %v5070
        %v5072 = vpop.f32.mrf.mxu0
        %v5073 = vadd.f32 %v4984, %v5072
        %5074 = vdwg.mxu0
        %5075 = vmatpush.bf16.msra.mxu0 0
        %5076 = vmatpush.bf16.msra.mxu0 0
        %5077 = vmatpush.bf16.msra.mxu0 0
        %5078 = vmatpush.bf16.msra.mxu0 0
        %5079 = vmatpush.bf16.msra.mxu0 0
        %5080 = vmatpush.bf16.msra.mxu0 0
        %5081 = vmatpush.bf16.msra.mxu0 %v4830
        %5082 = vmatpush.bf16.msra.mxu0 %v4829
        %5083 = vmatmul.bf16.gmra.mxu0 %v4850
        %v5084 = vpop.f32.mrf.mxu0
        %v5085 = vadd.f32 %v4996, %v5084
        %v5086 = vpop.f32.mrf.mxu0
        %v5087 = vadd.f32 %v4998, %v5086
        %5088 = vmatmul.bf16.gmra.mxu0 %v4853
        %v5089 = vpop.f32.mrf.mxu0
        %v5090 = vadd.f32 %v5001, %v5089
        %v5091 = vpop.f32.mrf.mxu0
        %v5092 = vadd.f32 %v5003, %v5091
        %5093 = vmatmul.bf16.gmra.mxu0 %v4856
        %v5094 = vpop.f32.mrf.mxu0
        %v5095 = vadd.f32 %v5006, %v5094
        %v5096 = vpop.f32.mrf.mxu0
        %v5097 = vadd.f32 %v5008, %v5096
        %5098 = vmatmul.bf16.gmra.mxu0 %v4859
        %v5099 = vpop.f32.mrf.mxu0
        %v5100 = vadd.f32 %v5011, %v5099
        %v5101 = vpop.f32.mrf.mxu0
        %v5102 = vadd.f32 %v5013, %v5101
        %5103 = vmatmul.bf16.gmra.mxu0 %v4862
        %v5104 = vpop.f32.mrf.mxu0
        %v5105 = vadd.f32 %v5016, %v5104
        %v5106 = vpop.f32.mrf.mxu0
        %v5107 = vadd.f32 %v5018, %v5106
        %5108 = vmatmul.bf16.gmra.mxu0 %v4865
        %v5109 = vpop.f32.mrf.mxu0
        %v5110 = vadd.f32 %v5021, %v5109
        %v5111 = vpop.f32.mrf.mxu0
        %v5112 = vadd.f32 %v5023, %v5111
        %5113 = vmatmul.bf16.gmra.mxu0 %v4868
        %v5114 = vpop.f32.mrf.mxu0
        %v5115 = vadd.f32 %v5026, %v5114
        %v5116 = vpop.f32.mrf.mxu0
        %v5117 = vadd.f32 %v5028, %v5116
        %5118 = vmatmul.bf16.gmra.mxu0 %v4871
        %v5119 = vpop.f32.mrf.mxu0
        %v5120 = vadd.f32 %v5031, %v5119
        %v5121 = vpop.f32.mrf.mxu0
        %v5122 = vadd.f32 %v5033, %v5121
        %5123 = vmatmul.bf16.gmra.mxu0 %v4874
        %v5124 = vpop.f32.mrf.mxu0
        %v5125 = vadd.f32 %v5036, %v5124
        %v5126 = vpop.f32.mrf.mxu0
        %v5127 = vadd.f32 %v5038, %v5126
        %5128 = vmatmul.bf16.gmra.mxu0 %v4877
        %v5129 = vpop.f32.mrf.mxu0
        %v5130 = vadd.f32 %v5041, %v5129
        %v5131 = vpop.f32.mrf.mxu0
        %v5132 = vadd.f32 %v5043, %v5131
        %5133 = vmatmul.bf16.gmra.mxu0 %v4880
        %v5134 = vpop.f32.mrf.mxu0
        %v5135 = vadd.f32 %v5046, %v5134
        %v5136 = vpop.f32.mrf.mxu0
        %v5137 = vadd.f32 %v5048, %v5136
        %5138 = vmatmul.bf16.gmra.mxu0 %v4883
        %v5139 = vpop.f32.mrf.mxu0
        %v5140 = vadd.f32 %v5051, %v5139
        %v5141 = vpop.f32.mrf.mxu0
        %v5142 = vadd.f32 %v5053, %v5141
        %5143 = vmatmul.bf16.gmra.mxu0 %v4886
        %v5144 = vpop.f32.mrf.mxu0
        %v5145 = vadd.f32 %v5056, %v5144
        %v5146 = vpop.f32.mrf.mxu0
        %v5147 = vadd.f32 %v5058, %v5146
        %5148 = vmatmul.bf16.gmra.mxu0 %v4889
        %v5149 = vpop.f32.mrf.mxu0
        %v5150 = vadd.f32 %v5061, %v5149
        %v5151 = vpop.f32.mrf.mxu0
        %v5152 = vadd.f32 %v5063, %v5151
        %5153 = vmatmul.bf16.gmra.mxu0 %v4892
        %v5154 = vpop.f32.mrf.mxu0
        %v5155 = vadd.f32 %v5066, %v5154
        %v5156 = vpop.f32.mrf.mxu0
        %v5157 = vadd.f32 %v5068, %v5156
        %5158 = vmatmul.bf16.gmra.mxu0 %v4895
        %v5159 = vpop.f32.mrf.mxu0
        %v5160 = vadd.f32 %v5071, %v5159
        %v5161 = vpop.f32.mrf.mxu0
        %v5162 = vadd.f32 %v5073, %v5161
        %5163 = vdwg.mxu0
        %5164 = vst.msk [vmem:[%s192] sm:$0xff] %vm226, %v5085
        %5165 = vst.msk [vmem:[%s192 + $0x8] sm:$0xff] %vm226, %v5087
        %5166 = vst.msk [vmem:[%s192 + $0x10] sm:$0xff] %vm226, %v5090
        %5167 = vst.msk [vmem:[%s192 + $0x18] sm:$0xff] %vm226, %v5092
        %5168 = vst.msk [vmem:[%s192 + $0x20] sm:$0xff] %vm226, %v5095
        %5169 = vst.msk [vmem:[%s192 + $0x28] sm:$0xff] %vm226, %v5097
        %5170 = vst.msk [vmem:[%s192 + $0x30] sm:$0xff] %vm226, %v5100
        %5171 = vst.msk [vmem:[%s192 + $0x38] sm:$0xff] %vm226, %v5102
        %5172 = vst.msk [vmem:[%s192 + $0x40] sm:$0xff] %vm226, %v5105
        %5173 = vst.msk [vmem:[%s192 + $0x48] sm:$0xff] %vm226, %v5107
        %5174 = vst.msk [vmem:[%s192 + $0x50] sm:$0xff] %vm226, %v5110
        %5175 = vst.msk [vmem:[%s192 + $0x58] sm:$0xff] %vm226, %v5112
        %5176 = vst.msk [vmem:[%s192 + $0x60] sm:$0xff] %vm226, %v5115
        %5177 = vst.msk [vmem:[%s192 + $0x68] sm:$0xff] %vm226, %v5117
        %5178 = vst.msk [vmem:[%s192 + $0x70] sm:$0xff] %vm226, %v5120
        %5179 = vst.msk [vmem:[%s192 + $0x78] sm:$0xff] %vm226, %v5122
        %5180 = vst.msk [vmem:[%s192 + $0x80] sm:$0xff] %vm226, %v5125
        %5181 = vst.msk [vmem:[%s192 + $0x88] sm:$0xff] %vm226, %v5127
        %5182 = vst.msk [vmem:[%s192 + $0x90] sm:$0xff] %vm226, %v5130
        %5183 = vst.msk [vmem:[%s192 + $0x98] sm:$0xff] %vm226, %v5132
        %5184 = vst.msk [vmem:[%s192 + $0xa0] sm:$0xff] %vm226, %v5135
        %5185 = vst.msk [vmem:[%s192 + $0xa8] sm:$0xff] %vm226, %v5137
        %5186 = vst.msk [vmem:[%s192 + $0xb0] sm:$0xff] %vm226, %v5140
        %5187 = vst.msk [vmem:[%s192 + $0xb8] sm:$0xff] %vm226, %v5142
        %5188 = vst.msk [vmem:[%s192 + $0xc0] sm:$0xff] %vm226, %v5145
        %5189 = vst.msk [vmem:[%s192 + $0xc8] sm:$0xff] %vm226, %v5147
        %5190 = vst.msk [vmem:[%s192 + $0xd0] sm:$0xff] %vm226, %v5150
        %5191 = vst.msk [vmem:[%s192 + $0xd8] sm:$0xff] %vm226, %v5152
        %5192 = vst.msk [vmem:[%s192 + $0xe0] sm:$0xff] %vm226, %v5155
        %5193 = vst.msk [vmem:[%s192 + $0xe8] sm:$0xff] %vm226, %v5157
        %5194 = vst.msk [vmem:[%s192 + $0xf0] sm:$0xff] %vm226, %v5160
        %5195 = vst.msk [vmem:[%s192 + $0xf8] sm:$0xff] %vm226, %v5162
        %p5196 = scmp.lt.s32.totalorder %s17, 1
        %s5197 = scalar_select %p5196, %s17, 1
        %s5198 = smul.addr %s5197, 32
        %s5199 = smul.addr %s5198, 8
        %s5200 = scalar_lea.vmem %s3, %s5199
        // Predicated region
        $region37: #{tpu_custom_call.1} parent=31 // pred_check
          %p5201 = pneg %p103
        $region38: #{tpu_custom_call.1} parent=31 // pred_check_branch
          %5203 = sbr.rel (%p5201) target = $region40
        $region39: #{tpu_custom_call.1} parent=31 // pred_region
          _
        $region40: #{tpu_custom_call.1} parent=31 // pred_fallthru
          _
      $region32: #{tpu_custom_call.1} parent=5 // pred_fallthru
        _
      %p5204 = scmp.le.s32.totalorder 2, %s12
      // Predicated region
      $region41: #{tpu_custom_call.1} parent=5 // pred_check
        %p5205 = pneg %p5204
      $region42: #{tpu_custom_call.1} parent=5 // pred_check_branch
        %5207 = sbr.rel (%p5205) target = $region44
      $region43: #{tpu_custom_call.1} parent=5 // pred_region
        %s5208 = ssub.s32 %s12, 2
        // Predicated region
        $region45: #{tpu_custom_call.1} parent=43 // pred_check
          %p5209 = pneg %p109
        $region46: #{tpu_custom_call.1} parent=43 // pred_check_branch
          %5211 = sbr.rel (%p5209) target = $region48
        $region47: #{tpu_custom_call.1} parent=43 // pred_region
          %p5212 = scmp.lt.s32.totalorder %s18, 1
          %s5213 = scalar_select %p5212, %s18, 1
          %s5214 = smul.addr %s5213, 32
          %s5215 = smul.addr %s5214, 8
          %s5216 = scalar_lea.vmem %s3, %s5215
        $region48: #{tpu_custom_call.1} parent=43 // pred_fallthru
          _
      $region44: #{tpu_custom_call.1} parent=5 // pred_fallthru
        _
    $region6: #{tpu_custom_call.1} parent=1 // loop_footer
      %s16 = sadd.s32 1, %s12
    $region7: #{tpu_custom_call.1} parent=1 // loop_footer_branch
      %11 = sbr.rel target = $region3
    $region8: #{tpu_custom_call.1} parent=1 // loop_exit
      _
    %5217 = vsyncpa [#allocation5], 1
    %s5218 = scalar_lea.sflag [#allocation5], 1
    %5219 = vsyncpa %s5218, 1

</llo_original>
